<compile_context>
chip_gen: v5e
topology: v5e:2x2
jax: 0.10.0
libtpu: 0.0.40
codegen_flags: <defaults>
</compile_context>

<pallas_src>
import jax
import jax.numpy as jnp
from jax.experimental import pallas as pl
from jax.experimental.pallas import tpu as pltpu

# ------------- hyperparameters (small, consistent with the module) -------------
VOCAB_SIZE  = 50
EMBED_DIM   = 32
NUM_CLASSES = 4
SEQ_LEN     = 16
BATCH       = 2

C1_OUT, C1_K, C1_PAD = 256, 5, 1
C2_OUT, C2_K, C2_PAD = 512, 3, 1
FC1_OUT = 256

L1 = SEQ_LEN + 2 * C1_PAD - C1_K + 1      # conv1 output length per batch (= 14)
L2 = L1 + 2 * C2_PAD - C2_K + 1           # conv2 output length per batch (= 14)

PADLEN1 = SEQ_LEN + 2 * C1_PAD            # 18: per-batch padded input length for conv1
SLAB1   = 32                              # 8/16-aligned per-batch slab (>= PADLEN1)
SLAB2   = L1 + 2 * C2_PAD                 # 16: per-batch padded conv1-output slab (aligned)
XROWS   = BATCH * SLAB1                   # 64: flat (batch-folded) padded embedding rows
HROWS   = BATCH * SLAB2                   # 32: flat padded conv1-output rows
NV1     = ((BATCH - 1) * SLAB1 + L1 + 7) // 8 * 8   # 48: conv1 rows computed (covers valid)
NV2     = HROWS - C2_K + 1                # 30: conv2 rows computed over the flat buffer
# Rows whose convolution window crosses a slab boundary (or lands in the unwritten tail
# of a slab) are computed but ignored — never copied forward, never pooled — so the
# flat-buffer trick is exact.

assert SLAB1 >= PADLEN1 and SLAB1 % 8 == 0
assert NV1 >= (BATCH - 1) * SLAB1 + L1
assert NV1 + C1_K - 1 <= XROWS
assert NV2 >= (BATCH - 1) * SLAB2 + L2


def cnn_kernel(tok_ref,                 # (B*SEQ_LEN, 1) int32
               emb_ref,                 # (VOCAB, EMBED_DIM) f32
               w1_ref, b1_ref,          # (C1_K*EMBED_DIM, C1_OUT) bf16 (im2col), (1, C1_OUT) f32
               w2_hbm, b2_ref,          # (C2_K*C1_OUT, C2_OUT) bf16 in HBM (ANY), (1, C2_OUT) f32
               wfc1_hbm, bfc1_ref,      # (C2_OUT, FC1_OUT) bf16 in HBM (ANY), (1, FC1_OUT) f32
               wfc2_ref, bfc2_ref,      # (FC1_OUT, NUM_CLASSES) f32, (1, NUM_CLASSES) f32
               out_ref,                 # (B, NUM_CLASSES) f32
               w2_vmem,                 # VMEM (C2_K*C1_OUT, C2_OUT) bf16   (DMA landing)
               wfc1_vmem,               # VMEM (C2_OUT, FC1_OUT) bf16       (DMA landing)
               dma_sem,                 # DMA semaphores (2,)
               xpad,                    # VMEM (XROWS, EMBED_DIM) bf16
               col1,                    # VMEM (NV1, C1_K*EMBED_DIM) bf16
               h1pad,                   # VMEM (HROWS, C1_OUT) bf16
               col2,                    # VMEM (HROWS, C2_K*C1_OUT) bf16 (rows NV2.. unused)
               pooled):                 # VMEM (B, C2_OUT) f32
    f32 = jnp.float32
    bf16 = jnp.bfloat16

    # ---- start the two dominant weight DMAs; they overlap embedding + conv1 ----
    cp_w2  = pltpu.make_async_copy(w2_hbm,   w2_vmem,   dma_sem.at[0])
    cp_fc1 = pltpu.make_async_copy(wfc1_hbm, wfc1_vmem, dma_sem.at[1])
    cp_w2.start()
    cp_fc1.start()

    # ---- embedding lookup fused in-kernel as a one-hot MXU matmul (bf16-exact) ----
    vocab_iota = jax.lax.broadcasted_iota(jnp.int32, (BATCH * SEQ_LEN, VOCAB_SIZE), 1)
    onehot = (vocab_iota == tok_ref[...]).astype(bf16)                   # (B*S, V)
    emb = jnp.dot(onehot, emb_ref[...].astype(bf16),
                  preferred_element_type=f32).astype(bf16)               # (B*S, E)

    # ---- fused zero-pad for conv1: aligned slabs, only boundary rows zeroed -----
    zrow_e = jnp.zeros((1, EMBED_DIM), bf16)
    for b in range(BATCH):
        base = b * SLAB1
        xpad[base:base + 1, :] = zrow_e
        xpad[base + 1:base + 1 + SEQ_LEN, :] = emb[b * SEQ_LEN:(b + 1) * SEQ_LEN, :]
        xpad[base + 1 + SEQ_LEN:base + 2 + SEQ_LEN, :] = zrow_e
        # rows base+PADLEN1 .. base+SLAB1-1 left untouched: only feed garbage conv rows.

    # ---- Conv1d(E -> 256, k=5, pad=1): ONE im2col matmul (NV1,160)x(160,256) ----
    for k in range(C1_K):
        col1[:, k * EMBED_DIM:(k + 1) * EMBED_DIM] = xpad[k:k + NV1, :]
    h1 = jnp.dot(col1[...], w1_ref[...], preferred_element_type=f32)
    h1 = jnp.maximum(h1 + b1_ref[...], 0.0).astype(bf16)                 # (NV1, 256)

    # ---- fused zero-pad for conv2; copy only valid per-batch rows --------------
    zrow_c1 = jnp.zeros((1, C1_OUT), bf16)
    for b in range(BATCH):
        src = b * SLAB1
        dst = b * SLAB2
        h1pad[dst:dst + 1, :] = zrow_c1
        h1pad[dst + 1:dst + 1 + L1, :] = h1[src:src + L1, :]
        h1pad[dst + 1 + L1:dst + 2 + L1, :] = zrow_c1

    # ---- Conv1d(256 -> 512, k=3, pad=1): single im2col matmul, K = 768 ---------
    hp = h1pad[...]                                                      # (32, 256) bf16
    for k in range(C2_K):
        col2[0:NV2, k * C1_OUT:(k + 1) * C1_OUT] = hp[k:k + NV2, :]
    cp_w2.wait()                                                         # weight must be resident now
    h2 = jnp.dot(col2[...], w2_vmem[...], preferred_element_type=f32)
    h2 = jnp.maximum(h2 + b2_ref[...], 0.0)                              # (HROWS, 512) f32

    # ---- global max-pool over the length axis, per batch -----------------------
    for b in range(BATCH):
        base = b * SLAB2
        pooled[b:b + 1, :] = jnp.max(h2[base:base + L2, :], axis=0, keepdims=True)

    # dropout is identity at inference.
    # TODO(synk): training-mode dropout (random masking) not implemented.

    # ---- fc1 + ReLU, fc2, softmax(dim=1); one (B, NUM_CLASSES) store ------------
    cp_fc1.wait()
    pv = pooled[...].astype(bf16)                                        # (B, 512)
    z1 = jnp.maximum(
        jnp.dot(pv, wfc1_vmem[...], preferred_element_type=f32) + bfc1_ref[...],
        0.0)                                                             # (B, 256) f32
    logits = jnp.dot(z1, wfc2_ref[...], preferred_element_type=f32) + bfc2_ref[...]
    m = jnp.max(logits, axis=1, keepdims=True)
    e = jnp.exp(logits - m)
    out_ref[...] = e / jnp.sum(e, axis=1, keepdims=True)                 # exact softmax


@jax.jit
def cnn_forward(tokens, params):
    """tokens: (BATCH, SEQ_LEN) int32.  Returns (BATCH, NUM_CLASSES) f32 probs."""
    emb_table, w1f, b1, w2f, b2, wfc1, bfc1, wfc2, bfc2 = params
    tok = tokens.reshape(BATCH * SEQ_LEN, 1).astype(jnp.int32)

    vmem = pl.BlockSpec(memory_space=pltpu.MemorySpace.VMEM)
    hbm = pl.BlockSpec(memory_space=pl.ANY)      # big weights: kernel DMAs them itself
    return pl.pallas_call(
        cnn_kernel,
        out_shape=jax.ShapeDtypeStruct((BATCH, NUM_CLASSES), jnp.float32),
        in_specs=[vmem,            # tok
                  vmem,            # emb_table
                  vmem, vmem,      # w1f, b1
                  hbm, vmem,       # w2f (manual DMA), b2
                  hbm, vmem,       # wfc1 (manual DMA), bfc1
                  vmem, vmem],     # wfc2, bfc2
        out_specs=vmem,
        scratch_shapes=[
            pltpu.VMEM((C2_K * C1_OUT, C2_OUT), jnp.bfloat16),   # w2 landing buffer
            pltpu.VMEM((C2_OUT, FC1_OUT), jnp.bfloat16),         # wfc1 landing buffer
            pltpu.SemaphoreType.DMA((2,)),                       # DMA completion sems
            pltpu.VMEM((XROWS, EMBED_DIM), jnp.bfloat16),        # padded embedding (flat batch)
            pltpu.VMEM((NV1, C1_K * EMBED_DIM), jnp.bfloat16),   # conv1 im2col matrix
            pltpu.VMEM((HROWS, C1_OUT), jnp.bfloat16),           # padded conv1 output (flat batch)
            pltpu.VMEM((HROWS, C2_K * C1_OUT), jnp.bfloat16),    # conv2 im2col matrix
            pltpu.VMEM((BATCH, C2_OUT), jnp.float32),            # pooled features
        ],
    )(tok, emb_table, w1f, b1, w2f, b2, wfc1, bfc1, wfc2, bfc2)


def init_params(key):
    ks = jax.random.split(key, 9)

    def nrm(k, shape, scale, dtype=jnp.float32):
        return (scale * jax.random.normal(k, shape)).astype(dtype)

    emb_table = nrm(ks[0], (VOCAB_SIZE, EMBED_DIM), 1.0)
    # Conv/Linear weights stored in kernel-friendly layouts (bf16 for the big ones):
    #   w1f[k*E + e, cout]      <-> PyTorch conv1.weight[cout, e, k]   (im2col layout)
    #   w2f[k*Cin + cin, cout]  <-> PyTorch conv2.weight[cout, cin, k] (im2col layout)
    #   wfc*[in, out]           <-> PyTorch fc*.weight[out, in]
    # A loader of real PyTorch checkpoints must permute/reshape accordingly.
    w1f  = nrm(ks[1], (C1_K * EMBED_DIM, C1_OUT), 0.05, jnp.bfloat16)
    b1   = nrm(ks[2], (1, C1_OUT), 0.05)
    w2f  = nrm(ks[3], (C2_K * C1_OUT, C2_OUT), 0.02, jnp.bfloat16)
    b2   = nrm(ks[4], (1, C2_OUT), 0.02)
    wfc1 = nrm(ks[5], (C2_OUT, FC1_OUT), 0.02, jnp.bfloat16)
    bfc1 = nrm(ks[6], (1, FC1_OUT), 0.02)
    wfc2 = nrm(ks[7], (FC1_OUT, NUM_CLASSES), 0.05)
    bfc2 = nrm(ks[8], (1, NUM_CLASSES), 0.05)
    return (emb_table, w1f, b1, w2f, b2, wfc1, bfc1, wfc2, bfc2)


if __name__ == "__main__":
    root = jax.random.PRNGKey(0)
    k_tok, k_par = jax.random.split(root)
    tokens = jax.random.randint(k_tok, (BATCH, SEQ_LEN), 0, VOCAB_SIZE, dtype=jnp.int32)
    params = init_params(k_par)

    probs = jax.block_until_ready(cnn_forward(tokens, params))

    assert probs.shape == (BATCH, NUM_CLASSES)
    assert bool(jnp.all(jnp.isfinite(probs)))
    # exact (non-approx) softmax division => rows sum to 1 within f32 rounding
    assert bool(jnp.all(jnp.abs(jnp.sum(probs, axis=1) - 1.0) < 1e-4))
    print("KERNEL_OK")
</pallas_src>

<mosaic_0001>
module attributes {stable_mosaic.version = 11 : i64} {
  func.func @cnn_kernel(%arg0: memref<32x1xi32, #tpu.memory_space<vmem>>, %arg1: memref<50x32xf32, #tpu.memory_space<vmem>>, %arg2: memref<160x256xbf16, #tpu.memory_space<vmem>>, %arg3: memref<1x256xf32, #tpu.memory_space<vmem>>, %arg4: memref<768x512xbf16, #tpu.memory_space<any>>, %arg5: memref<1x512xf32, #tpu.memory_space<vmem>>, %arg6: memref<512x256xbf16, #tpu.memory_space<any>>, %arg7: memref<1x256xf32, #tpu.memory_space<vmem>>, %arg8: memref<256x4xf32, #tpu.memory_space<vmem>>, %arg9: memref<1x4xf32, #tpu.memory_space<vmem>>, %arg10: memref<2x4xf32, #tpu.memory_space<vmem>>, %arg11: memref<768x512xbf16, #tpu.memory_space<vmem>>, %arg12: memref<512x256xbf16, #tpu.memory_space<vmem>>, %arg13: memref<2x!tpu.dma_semaphore, #tpu.memory_space<semaphore_mem>>, %arg14: memref<64x32xbf16, #tpu.memory_space<vmem>>, %arg15: memref<48x160xbf16, #tpu.memory_space<vmem>>, %arg16: memref<32x256xbf16, #tpu.memory_space<vmem>>, %arg17: memref<32x768xbf16, #tpu.memory_space<vmem>>, %arg18: memref<2x512xf32, #tpu.memory_space<vmem>>) attributes {dimension_semantics = [], scalar_prefetch = 0 : i64, scratch_operands = 8 : i64, tpu.core_type = #tpu.core_type<tc>} {
    %c0_i32 = arith.constant 0 : i32
    %0 = tpu.memref_slice %arg13[%c0_i32] : memref<2x!tpu.dma_semaphore, #tpu.memory_space<semaphore_mem>> -> memref<1x!tpu.dma_semaphore, #tpu.memory_space<semaphore_mem>>
    %1 = tpu.memref_squeeze %0 : memref<1x!tpu.dma_semaphore, #tpu.memory_space<semaphore_mem>> -> memref<!tpu.dma_semaphore, #tpu.memory_space<semaphore_mem>>
    tpu.enqueue_dma source(%arg4 : memref<768x512xbf16, #tpu.memory_space<any>>) target(%arg11 : memref<768x512xbf16, #tpu.memory_space<vmem>>) target_semaphore(%1 : memref<!tpu.dma_semaphore, #tpu.memory_space<semaphore_mem>>)
    %c1_i32 = arith.constant 1 : i32
    %2 = tpu.memref_slice %arg13[%c1_i32] : memref<2x!tpu.dma_semaphore, #tpu.memory_space<semaphore_mem>> -> memref<1x!tpu.dma_semaphore, #tpu.memory_space<semaphore_mem>>
    %3 = tpu.memref_squeeze %2 : memref<1x!tpu.dma_semaphore, #tpu.memory_space<semaphore_mem>> -> memref<!tpu.dma_semaphore, #tpu.memory_space<semaphore_mem>>
    tpu.enqueue_dma source(%arg6 : memref<512x256xbf16, #tpu.memory_space<any>>) target(%arg12 : memref<512x256xbf16, #tpu.memory_space<vmem>>) target_semaphore(%3 : memref<!tpu.dma_semaphore, #tpu.memory_space<semaphore_mem>>)
    %4 = tpu.iota {dimensions = array<i32: 1>} : vector<32x50xi32>
    %c0 = arith.constant 0 : index
    %c0_0 = arith.constant 0 : index
    %5 = vector.load %arg0[%c0, %c0_0] : memref<32x1xi32, #tpu.memory_space<vmem>>, vector<32x1xi32>
    %6 = vector.broadcast %5 : vector<32x1xi32> to vector<32x50xi32>
    %7 = arith.cmpi eq, %4, %6 : vector<32x50xi32>
    %8 = arith.extui %7 : vector<32x50xi1> to vector<32x50xi32>
    %9 = arith.sitofp %8 : vector<32x50xi32> to vector<32x50xf32>
    %10 = arith.truncf %9 : vector<32x50xf32> to vector<32x50xbf16>
    %c0_1 = arith.constant 0 : index
    %c0_2 = arith.constant 0 : index
    %11 = vector.load %arg1[%c0_1, %c0_2] : memref<50x32xf32, #tpu.memory_space<vmem>>, vector<50x32xf32>
    %12 = arith.truncf %11 : vector<50x32xf32> to vector<50x32xbf16>
    %cst = arith.constant dense<0.000000e+00> : vector<32x32xf32>
    %13 = tpu.matmul %10, %12, %cst {dimension_numbers = #tpu.dot_dimension_numbers<[1], [0], [0], [1], [0, 0, 1, 1], [], []>} : vector<32x50xbf16>, vector<50x32xbf16>, vector<32x32xf32> -> vector<32x32xf32>
    %14 = arith.truncf %13 : vector<32x32xf32> to vector<32x32xbf16>
    %cst_3 = arith.constant 0.000000e+00 : bf16
    %15 = vector.broadcast %cst_3 : bf16 to vector<1x32xbf16>
    %c0_4 = arith.constant 0 : index
    %c0_5 = arith.constant 0 : index
    %16 = vector.load %arg14[%c0_4, %c0_5] : memref<64x32xbf16, #tpu.memory_space<vmem>>, vector<1x32xbf16>
    tpu.vector_store %arg14[%c0_4, %c0_5], %15 {strides = array<i32>} : memref<64x32xbf16, #tpu.memory_space<vmem>>, vector<1x32xbf16>,
    %17 = vector.extract_strided_slice %14 {offsets = [0, 0], sizes = [16, 32], strides = [1, 1]} : vector<32x32xbf16> to vector<16x32xbf16>
    %c1 = arith.constant 1 : index
    %c0_6 = arith.constant 0 : index
    %18 = vector.load %arg14[%c1, %c0_6] : memref<64x32xbf16, #tpu.memory_space<vmem>>, vector<16x32xbf16>
    tpu.vector_store %arg14[%c1, %c0_6], %17 {strides = array<i32>} : memref<64x32xbf16, #tpu.memory_space<vmem>>, vector<16x32xbf16>,
    %c17 = arith.constant 17 : index
    %c0_7 = arith.constant 0 : index
    %19 = vector.load %arg14[%c17, %c0_7] : memref<64x32xbf16, #tpu.memory_space<vmem>>, vector<1x32xbf16>
    tpu.vector_store %arg14[%c17, %c0_7], %15 {strides = array<i32>} : memref<64x32xbf16, #tpu.memory_space<vmem>>, vector<1x32xbf16>,
    %c32 = arith.constant 32 : index
    %c0_8 = arith.constant 0 : index
    %20 = vector.load %arg14[%c32, %c0_8] : memref<64x32xbf16, #tpu.memory_space<vmem>>, vector<1x32xbf16>
    tpu.vector_store %arg14[%c32, %c0_8], %15 {strides = array<i32>} : memref<64x32xbf16, #tpu.memory_space<vmem>>, vector<1x32xbf16>,
    %21 = vector.extract_strided_slice %14 {offsets = [16, 0], sizes = [16, 32], strides = [1, 1]} : vector<32x32xbf16> to vector<16x32xbf16>
    %c33 = arith.constant 33 : index
    %c0_9 = arith.constant 0 : index
    %22 = vector.load %arg14[%c33, %c0_9] : memref<64x32xbf16, #tpu.memory_space<vmem>>, vector<16x32xbf16>
    tpu.vector_store %arg14[%c33, %c0_9], %21 {strides = array<i32>} : memref<64x32xbf16, #tpu.memory_space<vmem>>, vector<16x32xbf16>,
    %c49 = arith.constant 49 : index
    %c0_10 = arith.constant 0 : index
    %23 = vector.load %arg14[%c49, %c0_10] : memref<64x32xbf16, #tpu.memory_space<vmem>>, vector<1x32xbf16>
    tpu.vector_store %arg14[%c49, %c0_10], %15 {strides = array<i32>} : memref<64x32xbf16, #tpu.memory_space<vmem>>, vector<1x32xbf16>,
    %c0_11 = arith.constant 0 : index
    %c0_12 = arith.constant 0 : index
    %24 = vector.load %arg14[%c0_11, %c0_12] : memref<64x32xbf16, #tpu.memory_space<vmem>>, vector<48x32xbf16>
    %c0_13 = arith.constant 0 : index
    %c0_14 = arith.constant 0 : index
    %25 = vector.load %arg15[%c0_13, %c0_14] : memref<48x160xbf16, #tpu.memory_space<vmem>>, vector<48x32xbf16>
    tpu.vector_store %arg15[%c0_13, %c0_14], %24 {strides = array<i32>} : memref<48x160xbf16, #tpu.memory_space<vmem>>, vector<48x32xbf16>,
    %c1_15 = arith.constant 1 : index
    %c0_16 = arith.constant 0 : index
    %26 = vector.load %arg14[%c1_15, %c0_16] : memref<64x32xbf16, #tpu.memory_space<vmem>>, vector<48x32xbf16>
    %c0_17 = arith.constant 0 : index
    %c32_18 = arith.constant 32 : index
    %27 = vector.load %arg15[%c0_17, %c32_18] : memref<48x160xbf16, #tpu.memory_space<vmem>>, vector<48x32xbf16>
    tpu.vector_store %arg15[%c0_17, %c32_18], %26 {strides = array<i32>} : memref<48x160xbf16, #tpu.memory_space<vmem>>, vector<48x32xbf16>,
    %c2 = arith.constant 2 : index
    %c0_19 = arith.constant 0 : index
    %28 = vector.load %arg14[%c2, %c0_19] : memref<64x32xbf16, #tpu.memory_space<vmem>>, vector<48x32xbf16>
    %c0_20 = arith.constant 0 : index
    %c64 = arith.constant 64 : index
    %29 = vector.load %arg15[%c0_20, %c64] : memref<48x160xbf16, #tpu.memory_space<vmem>>, vector<48x32xbf16>
    tpu.vector_store %arg15[%c0_20, %c64], %28 {strides = array<i32>} : memref<48x160xbf16, #tpu.memory_space<vmem>>, vector<48x32xbf16>,
    %c3 = arith.constant 3 : index
    %c0_21 = arith.constant 0 : index
    %30 = vector.load %arg14[%c3, %c0_21] : memref<64x32xbf16, #tpu.memory_space<vmem>>, vector<48x32xbf16>
    %c0_22 = arith.constant 0 : index
    %c96 = arith.constant 96 : index
    %31 = vector.load %arg15[%c0_22, %c96] : memref<48x160xbf16, #tpu.memory_space<vmem>>, vector<48x32xbf16>
    tpu.vector_store %arg15[%c0_22, %c96], %30 {strides = array<i32>} : memref<48x160xbf16, #tpu.memory_space<vmem>>, vector<48x32xbf16>,
    %c4 = arith.constant 4 : index
    %c0_23 = arith.constant 0 : index
    %32 = vector.load %arg14[%c4, %c0_23] : memref<64x32xbf16, #tpu.memory_space<vmem>>, vector<48x32xbf16>
    %c0_24 = arith.constant 0 : index
    %c128 = arith.constant 128 : index
    %33 = vector.load %arg15[%c0_24, %c128] : memref<48x160xbf16, #tpu.memory_space<vmem>>, vector<48x32xbf16>
    tpu.vector_store %arg15[%c0_24, %c128], %32 {strides = array<i32>} : memref<48x160xbf16, #tpu.memory_space<vmem>>, vector<48x32xbf16>,
    %c0_25 = arith.constant 0 : index
    %c0_26 = arith.constant 0 : index
    %34 = vector.load %arg15[%c0_25, %c0_26] : memref<48x160xbf16, #tpu.memory_space<vmem>>, vector<48x160xbf16>
    %c0_27 = arith.constant 0 : index
    %c0_28 = arith.constant 0 : index
    %35 = vector.load %arg2[%c0_27, %c0_28] : memref<160x256xbf16, #tpu.memory_space<vmem>>, vector<160x256xbf16>
    %cst_29 = arith.constant dense<0.000000e+00> : vector<48x256xf32>
    %36 = tpu.matmul %34, %35, %cst_29 {dimension_numbers = #tpu.dot_dimension_numbers<[1], [0], [0], [1], [0, 0, 1, 1], [], []>} : vector<48x160xbf16>, vector<160x256xbf16>, vector<48x256xf32> -> vector<48x256xf32>
    %c0_30 = arith.constant 0 : index
    %c0_31 = arith.constant 0 : index
    %37 = vector.load %arg3[%c0_30, %c0_31] : memref<1x256xf32, #tpu.memory_space<vmem>>, vector<1x256xf32>
    %38 = vector.broadcast %37 : vector<1x256xf32> to vector<48x256xf32>
    %39 = arith.addf %36, %38 : vector<48x256xf32>
    %cst_32 = arith.constant 0.000000e+00 : f32
    %40 = vector.broadcast %cst_32 : f32 to vector<48x256xf32>
    %41 = arith.maximumf %39, %40 : vector<48x256xf32>
    %42 = arith.truncf %41 : vector<48x256xf32> to vector<48x256xbf16>
    %cst_33 = arith.constant 0.000000e+00 : bf16
    %43 = vector.broadcast %cst_33 : bf16 to vector<1x256xbf16>
    %c0_34 = arith.constant 0 : index
    %c0_35 = arith.constant 0 : index
    %44 = vector.load %arg16[%c0_34, %c0_35] : memref<32x256xbf16, #tpu.memory_space<vmem>>, vector<1x256xbf16>
    tpu.vector_store %arg16[%c0_34, %c0_35], %43 {strides = array<i32>} : memref<32x256xbf16, #tpu.memory_space<vmem>>, vector<1x256xbf16>,
    %45 = vector.extract_strided_slice %42 {offsets = [0, 0], sizes = [14, 256], strides = [1, 1]} : vector<48x256xbf16> to vector<14x256xbf16>
    %c1_36 = arith.constant 1 : index
    %c0_37 = arith.constant 0 : index
    %46 = vector.load %arg16[%c1_36, %c0_37] : memref<32x256xbf16, #tpu.memory_space<vmem>>, vector<14x256xbf16>
    tpu.vector_store %arg16[%c1_36, %c0_37], %45 {strides = array<i32>} : memref<32x256xbf16, #tpu.memory_space<vmem>>, vector<14x256xbf16>,
    %c15 = arith.constant 15 : index
    %c0_38 = arith.constant 0 : index
    %47 = vector.load %arg16[%c15, %c0_38] : memref<32x256xbf16, #tpu.memory_space<vmem>>, vector<1x256xbf16>
    tpu.vector_store %arg16[%c15, %c0_38], %43 {strides = array<i32>} : memref<32x256xbf16, #tpu.memory_space<vmem>>, vector<1x256xbf16>,
    %c16 = arith.constant 16 : index
    %c0_39 = arith.constant 0 : index
    %48 = vector.load %arg16[%c16, %c0_39] : memref<32x256xbf16, #tpu.memory_space<vmem>>, vector<1x256xbf16>
    tpu.vector_store %arg16[%c16, %c0_39], %43 {strides = array<i32>} : memref<32x256xbf16, #tpu.memory_space<vmem>>, vector<1x256xbf16>,
    %49 = vector.extract_strided_slice %42 {offsets = [32, 0], sizes = [14, 256], strides = [1, 1]} : vector<48x256xbf16> to vector<14x256xbf16>
    %c17_40 = arith.constant 17 : index
    %c0_41 = arith.constant 0 : index
    %50 = vector.load %arg16[%c17_40, %c0_41] : memref<32x256xbf16, #tpu.memory_space<vmem>>, vector<14x256xbf16>
    tpu.vector_store %arg16[%c17_40, %c0_41], %49 {strides = array<i32>} : memref<32x256xbf16, #tpu.memory_space<vmem>>, vector<14x256xbf16>,
    %c31 = arith.constant 31 : index
    %c0_42 = arith.constant 0 : index
    %51 = vector.load %arg16[%c31, %c0_42] : memref<32x256xbf16, #tpu.memory_space<vmem>>, vector<1x256xbf16>
    tpu.vector_store %arg16[%c31, %c0_42], %43 {strides = array<i32>} : memref<32x256xbf16, #tpu.memory_space<vmem>>, vector<1x256xbf16>,
    %c0_43 = arith.constant 0 : index
    %c0_44 = arith.constant 0 : index
    %52 = vector.load %arg16[%c0_43, %c0_44] : memref<32x256xbf16, #tpu.memory_space<vmem>>, vector<32x256xbf16>
    %53 = vector.extract_strided_slice %52 {offsets = [0, 0], sizes = [30, 256], strides = [1, 1]} : vector<32x256xbf16> to vector<30x256xbf16>
    %c0_45 = arith.constant 0 : index
    %c0_46 = arith.constant 0 : index
    %54 = vector.load %arg17[%c0_45, %c0_46] : memref<32x768xbf16, #tpu.memory_space<vmem>>, vector<30x256xbf16>
    tpu.vector_store %arg17[%c0_45, %c0_46], %53 {strides = array<i32>} : memref<32x768xbf16, #tpu.memory_space<vmem>>, vector<30x256xbf16>,
    %55 = vector.extract_strided_slice %52 {offsets = [1, 0], sizes = [30, 256], strides = [1, 1]} : vector<32x256xbf16> to vector<30x256xbf16>
    %c0_47 = arith.constant 0 : index
    %c256 = arith.constant 256 : index
    %56 = vector.load %arg17[%c0_47, %c256] : memref<32x768xbf16, #tpu.memory_space<vmem>>, vector<30x256xbf16>
    tpu.vector_store %arg17[%c0_47, %c256], %55 {strides = array<i32>} : memref<32x768xbf16, #tpu.memory_space<vmem>>, vector<30x256xbf16>,
    %57 = vector.extract_strided_slice %52 {offsets = [2, 0], sizes = [30, 256], strides = [1, 1]} : vector<32x256xbf16> to vector<30x256xbf16>
    %c0_48 = arith.constant 0 : index
    %c512 = arith.constant 512 : index
    %58 = vector.load %arg17[%c0_48, %c512] : memref<32x768xbf16, #tpu.memory_space<vmem>>, vector<30x256xbf16>
    tpu.vector_store %arg17[%c0_48, %c512], %57 {strides = array<i32>} : memref<32x768xbf16, #tpu.memory_space<vmem>>, vector<30x256xbf16>,
    %c0_i32_49 = arith.constant 0 : i32
    %59 = tpu.memref_slice %arg13[%c0_i32_49] : memref<2x!tpu.dma_semaphore, #tpu.memory_space<semaphore_mem>> -> memref<1x!tpu.dma_semaphore, #tpu.memory_space<semaphore_mem>>
    %60 = tpu.memref_squeeze %59 : memref<1x!tpu.dma_semaphore, #tpu.memory_space<semaphore_mem>> -> memref<!tpu.dma_semaphore, #tpu.memory_space<semaphore_mem>>
    tpu.wait_dma2 semaphore(%60 : memref<!tpu.dma_semaphore, #tpu.memory_space<semaphore_mem>>) src(%arg4 : memref<768x512xbf16, #tpu.memory_space<any>>) dst(%arg11 : memref<768x512xbf16, #tpu.memory_space<vmem>>)
    %c0_50 = arith.constant 0 : index
    %c0_51 = arith.constant 0 : index
    %61 = vector.load %arg17[%c0_50, %c0_51] : memref<32x768xbf16, #tpu.memory_space<vmem>>, vector<32x768xbf16>
    %c0_52 = arith.constant 0 : index
    %c0_53 = arith.constant 0 : index
    %62 = vector.load %arg11[%c0_52, %c0_53] : memref<768x512xbf16, #tpu.memory_space<vmem>>, vector<768x512xbf16>
    %cst_54 = arith.constant dense<0.000000e+00> : vector<32x512xf32>
    %63 = tpu.matmul %61, %62, %cst_54 {dimension_numbers = #tpu.dot_dimension_numbers<[1], [0], [0], [1], [0, 0, 1, 1], [], []>} : vector<32x768xbf16>, vector<768x512xbf16>, vector<32x512xf32> -> vector<32x512xf32>
    %c0_55 = arith.constant 0 : index
    %c0_56 = arith.constant 0 : index
    %64 = vector.load %arg5[%c0_55, %c0_56] : memref<1x512xf32, #tpu.memory_space<vmem>>, vector<1x512xf32>
    %65 = vector.broadcast %64 : vector<1x512xf32> to vector<32x512xf32>
    %66 = arith.addf %63, %65 : vector<32x512xf32>
    %cst_57 = arith.constant 0.000000e+00 : f32
    %67 = vector.broadcast %cst_57 : f32 to vector<32x512xf32>
    %68 = arith.maximumf %66, %67 : vector<32x512xf32>
    %69 = vector.extract_strided_slice %68 {offsets = [0, 0], sizes = [14, 512], strides = [1, 1]} : vector<32x512xf32> to vector<14x512xf32>
    %cst_58 = arith.constant dense<0xFF800000> : vector<512xf32>
    %70 = vector.multi_reduction <maximumf>, %69, %cst_58 [0] : vector<14x512xf32> to vector<512xf32>
    %71 = vector.shape_cast %70 : vector<512xf32> to vector<1x512xf32>
    %c0_59 = arith.constant 0 : index
    %c0_60 = arith.constant 0 : index
    %72 = vector.load %arg18[%c0_59, %c0_60] : memref<2x512xf32, #tpu.memory_space<vmem>>, vector<1x512xf32>
    tpu.vector_store %arg18[%c0_59, %c0_60], %71 {strides = array<i32>} : memref<2x512xf32, #tpu.memory_space<vmem>>, vector<1x512xf32>,
    %73 = vector.extract_strided_slice %68 {offsets = [16, 0], sizes = [14, 512], strides = [1, 1]} : vector<32x512xf32> to vector<14x512xf32>
    %cst_61 = arith.constant dense<0xFF800000> : vector<512xf32>
    %74 = vector.multi_reduction <maximumf>, %73, %cst_61 [0] : vector<14x512xf32> to vector<512xf32>
    %75 = vector.shape_cast %74 : vector<512xf32> to vector<1x512xf32>
    %c1_62 = arith.constant 1 : index
    %c0_63 = arith.constant 0 : index
    %76 = vector.load %arg18[%c1_62, %c0_63] : memref<2x512xf32, #tpu.memory_space<vmem>>, vector<1x512xf32>
    tpu.vector_store %arg18[%c1_62, %c0_63], %75 {strides = array<i32>} : memref<2x512xf32, #tpu.memory_space<vmem>>, vector<1x512xf32>,
    %c1_i32_64 = arith.constant 1 : i32
    %77 = tpu.memref_slice %arg13[%c1_i32_64] : memref<2x!tpu.dma_semaphore, #tpu.memory_space<semaphore_mem>> -> memref<1x!tpu.dma_semaphore, #tpu.memory_space<semaphore_mem>>
    %78 = tpu.memref_squeeze %77 : memref<1x!tpu.dma_semaphore, #tpu.memory_space<semaphore_mem>> -> memref<!tpu.dma_semaphore, #tpu.memory_space<semaphore_mem>>
    tpu.wait_dma2 semaphore(%78 : memref<!tpu.dma_semaphore, #tpu.memory_space<semaphore_mem>>) src(%arg6 : memref<512x256xbf16, #tpu.memory_space<any>>) dst(%arg12 : memref<512x256xbf16, #tpu.memory_space<vmem>>)
    %c0_65 = arith.constant 0 : index
    %c0_66 = arith.constant 0 : index
    %79 = vector.load %arg18[%c0_65, %c0_66] : memref<2x512xf32, #tpu.memory_space<vmem>>, vector<2x512xf32>
    %80 = arith.truncf %79 : vector<2x512xf32> to vector<2x512xbf16>
    %c0_67 = arith.constant 0 : index
    %c0_68 = arith.constant 0 : index
    %81 = vector.load %arg12[%c0_67, %c0_68] : memref<512x256xbf16, #tpu.memory_space<vmem>>, vector<512x256xbf16>
    %cst_69 = arith.constant dense<0.000000e+00> : vector<2x256xf32>
    %82 = tpu.matmul %80, %81, %cst_69 {dimension_numbers = #tpu.dot_dimension_numbers<[1], [0], [0], [1], [0, 0, 1, 1], [], []>} : vector<2x512xbf16>, vector<512x256xbf16>, vector<2x256xf32> -> vector<2x256xf32>
    %c0_70 = arith.constant 0 : index
    %c0_71 = arith.constant 0 : index
    %83 = vector.load %arg7[%c0_70, %c0_71] : memref<1x256xf32, #tpu.memory_space<vmem>>, vector<1x256xf32>
    %84 = vector.broadcast %83 : vector<1x256xf32> to vector<2x256xf32>
    %85 = arith.addf %82, %84 : vector<2x256xf32>
    %cst_72 = arith.constant 0.000000e+00 : f32
    %86 = vector.broadcast %cst_72 : f32 to vector<2x256xf32>
    %87 = arith.maximumf %85, %86 : vector<2x256xf32>
    %c0_73 = arith.constant 0 : index
    %c0_74 = arith.constant 0 : index
    %88 = vector.load %arg8[%c0_73, %c0_74] : memref<256x4xf32, #tpu.memory_space<vmem>>, vector<256x4xf32>
    %cst_75 = arith.constant dense<0.000000e+00> : vector<2x4xf32>
    %89 = tpu.matmul %87, %88, %cst_75 {dimension_numbers = #tpu.dot_dimension_numbers<[1], [0], [0], [1], [0, 0, 1, 1], [], []>} : vector<2x256xf32>, vector<256x4xf32>, vector<2x4xf32> -> vector<2x4xf32>
    %c0_76 = arith.constant 0 : index
    %c0_77 = arith.constant 0 : index
    %90 = vector.load %arg9[%c0_76, %c0_77] : memref<1x4xf32, #tpu.memory_space<vmem>>, vector<1x4xf32>
    %91 = vector.broadcast %90 : vector<1x4xf32> to vector<2x4xf32>
    %92 = arith.addf %89, %91 : vector<2x4xf32>
    %cst_78 = arith.constant dense<0xFF800000> : vector<2xf32>
    %93 = vector.multi_reduction <maximumf>, %92, %cst_78 [1] : vector<2x4xf32> to vector<2xf32>
    %94 = vector.shape_cast %93 : vector<2xf32> to vector<2x1xf32>
    %95 = vector.broadcast %94 : vector<2x1xf32> to vector<2x4xf32>
    %96 = arith.subf %92, %95 : vector<2x4xf32>
    %97 = math.exp %96 : vector<2x4xf32>
    %cst_79 = arith.constant dense<0.000000e+00> : vector<2xf32>
    %98 = vector.multi_reduction <add>, %97, %cst_79 [1] : vector<2x4xf32> to vector<2xf32>
    %99 = vector.shape_cast %98 : vector<2xf32> to vector<2x1xf32>
    %100 = vector.broadcast %99 : vector<2x1xf32> to vector<2x4xf32>
    %101 = arith.divf %97, %100 : vector<2x4xf32>
    %c0_80 = arith.constant 0 : index
    %c0_81 = arith.constant 0 : index
    %102 = vector.load %arg10[%c0_80, %c0_81] : memref<2x4xf32, #tpu.memory_space<vmem>>, vector<2x4xf32>
    tpu.vector_store %arg10[%c0_80, %c0_81], %101 {strides = array<i32>} : memref<2x4xf32, #tpu.memory_space<vmem>>, vector<2x4xf32>,
    return
  }
}

</mosaic_0001>

<llo_original>
// kernel: cnn_forward.1
$region0: #{cnn_forward.1}
  #allocation0 [shape = 'u32[]', space=smem, size = 0x4, offset = 0x4, fixed_abs, tag = 'smem constant byte address 0x4 - core index']
  #allocation1 [shape = 'u32[72,128]{1,0:T(1,128)}', space=vmem, size = 0x9000, scoped, tag = 'internal scratch']
  #allocation2 [shape = 'bf16[768,512]{1,0:T(8,128)(2,1)}', space=vmem, size = 0xc0000, scoped, tag = 'scratch operand']
  #allocation3 [shape = 'bf16[512,256]{1,0:T(8,128)(2,1)}', space=vmem, size = 0x40000, scoped, tag = 'scratch operand']
  #allocation4 [shape = 's32[2]{0}', space=sflag, size = 0x8, scoped, tag = 'scratch operand']
  #allocation5 [shape = 'bf16[64,32]{1,0:T(8,128)(2,1)}', space=vmem, size = 0x4000, scoped, tag = 'scratch operand']
  #allocation6 [shape = 'bf16[48,160]{1,0:T(8,128)(2,1)}', space=vmem, size = 0x6000, scoped, tag = 'scratch operand']
  #allocation7 [shape = 'bf16[32,256]{1,0:T(8,128)(2,1)}', space=vmem, size = 0x4000, scoped, tag = 'scratch operand']
  #allocation8 [shape = 'bf16[32,768]{1,0:T(8,128)(2,1)}', space=vmem, size = 0xc000, scoped, tag = 'scratch operand']
  #allocation9 [shape = 'f32[2,512]{1,0:T(2,128)}', space=vmem, size = 0x1000, scoped, tag = 'scratch operand']
  #allocation12 [shape = 's32[]', space=sflag, size = 0x4, offset = 0, fixed_abs, tag = 'sflag constant byte address 0x0 - dummy sync flag']
  #allocation13 [shape = 's32[]', space=sflag, size = 0x4, offset = 0, fixed_abs, tag = 'sflag constant byte address 0x0 - dummy sync flag']
  #allocation14 [shape = 'u32[]', space=smem, size = 0x4, offset = 0x44, fixed_abs, tag = 'smem constant byte address 0x44 - assertion arg 0']
  #allocation15 [shape = 'u32[]', space=smem, size = 0x4, offset = 0x48, fixed_abs, tag = 'smem constant byte address 0x48 - assertion arg 1']
  #allocation16 [shape = 's32[]', space=sflag, size = 0x4, offset = 0, fixed_abs, tag = 'sflag constant byte address 0x0 - dummy sync flag']
  #allocation17 [shape = 's32[]', space=sflag, size = 0x4, offset = 0, fixed_abs, tag = 'sflag constant byte address 0x0 - dummy sync flag']
  %s0 = inlined_call_operand.vmem [shape: s32[32,1], index: 0, kind: input, shape index: {}]
  %s1 = inlined_call_operand.vmem [shape: f32[50,32], index: 1, kind: input, shape index: {}]
  %s2 = inlined_call_operand.vmem [shape: bf16[160,256], index: 2, kind: input, shape index: {}]
  %s3 = inlined_call_operand.vmem [shape: f32[1,256], index: 3, kind: input, shape index: {}]
  %s4 = inlined_call_operand.hbm [shape: bf16[768,512], index: 4, kind: input, shape index: {}]
  %s5 = inlined_call_operand.vmem [shape: f32[1,512], index: 5, kind: input, shape index: {}]
  %s6 = inlined_call_operand.hbm [shape: bf16[512,256], index: 6, kind: input, shape index: {}]
  %s7 = inlined_call_operand.vmem [shape: f32[1,256], index: 7, kind: input, shape index: {}]
  %s8 = inlined_call_operand.vmem [shape: f32[256,4], index: 8, kind: input, shape index: {}]
  %s9 = inlined_call_operand.vmem [shape: f32[1,4], index: 9, kind: input, shape index: {}]
  %s10 = inlined_call_operand.hbm [shape: f32[2,4], index: 10, kind: output, shape index: {}]
  %s11 = sld [smem:[#allocation0]]
  $region50: #{cnn_forward.1} parent=0
    _
  %s13 = ssub.s32 1, %s11
  %s14 = scalar_select 0, %s13, %s11
  $region1: #{cnn_forward.1} parent=0
    #allocation10 [shape = 'u8[1024]{0}', space=vmem, size = 0x400, scoped, tag = 'output window, operand 0, single buffered']
    #allocation11 [shape = 's32[1]{0}', space=sflag, size = 0x4, scoped, tag = 'scoped memory for cnn_forward.1']
    %15 = vsyncpa [#allocation11], 0
    // Predicated region
    $region2: #{cnn_forward.1} parent=1 // pred_check
      _
    $region3: #{cnn_forward.1} parent=1 // pred_check_branch
      %17 = sbr.rel (0) target = $region5
    $region4: #{cnn_forward.1} parent=1 // pred_region
      _
    $region5: #{cnn_forward.1} parent=1 // pred_fallthru
      _
    // Predicated region
    $region6: #{cnn_forward.1} parent=1 // pred_check
      _
    $region7: #{cnn_forward.1} parent=1 // pred_check_branch
      %19 = sbr.rel (0) target = $region9
    $region8: #{cnn_forward.1} parent=1 // pred_region
      _
    $region9: #{cnn_forward.1} parent=1 // pred_fallthru
      _
    // Predicated region
    $region10: #{cnn_forward.1} parent=1 // pred_check
      _
    $region11: #{cnn_forward.1} parent=1 // pred_check_branch
      %21 = sbr.rel (0) target = $region13
    $region12: #{cnn_forward.1} parent=1 // pred_region
      _
    $region13: #{cnn_forward.1} parent=1 // pred_fallthru
      _
    // Predicated region
    $region14: #{cnn_forward.1} parent=1 // pred_check
      _
    $region15: #{cnn_forward.1} parent=1 // pred_check_branch
      %23 = sbr.rel (0) target = $region17
    $region16: #{cnn_forward.1} parent=1 // pred_region
      _
    $region17: #{cnn_forward.1} parent=1 // pred_fallthru
      _
    // Predicated region
    $region18: #{cnn_forward.1} parent=1 // pred_check
      _
    $region19: #{cnn_forward.1} parent=1 // pred_check_branch
      %25 = sbr.rel (0) target = $region21
    $region20: #{cnn_forward.1} parent=1 // pred_region
      _
    $region21: #{cnn_forward.1} parent=1 // pred_fallthru
      _
    // Predicated region
    $region22: #{cnn_forward.1} parent=1 // pred_check
      _
    $region23: #{cnn_forward.1} parent=1 // pred_check_branch
      %27 = sbr.rel (0) target = $region25
    $region24: #{cnn_forward.1} parent=1 // pred_region
      _
    $region25: #{cnn_forward.1} parent=1 // pred_fallthru
      _
    // Predicated region
    $region26: #{cnn_forward.1} parent=1 // pred_check
      _
    $region27: #{cnn_forward.1} parent=1 // pred_check_branch
      %29 = sbr.rel (0) target = $region29
    $region28: #{cnn_forward.1} parent=1 // pred_region
      _
    $region29: #{cnn_forward.1} parent=1 // pred_fallthru
      _
    // Predicated region
    $region30: #{cnn_forward.1} parent=1 // pred_check
      _
    $region31: #{cnn_forward.1} parent=1 // pred_check_branch
      %31 = sbr.rel (0) target = $region33
    $region32: #{cnn_forward.1} parent=1 // pred_region
      _
    $region33: #{cnn_forward.1} parent=1 // pred_fallthru
      _
    // Predicated region
    $region34: #{cnn_forward.1} parent=1 // pred_check
      _
    $region35: #{cnn_forward.1} parent=1 // pred_check_branch
      %34 = sbr.rel target = $region37
    $region36: #{cnn_forward.1} parent=1 // pred_region
      %35 = sst [smem:[#allocation14]] [#allocation13]
      %36 = sst [smem:[#allocation15]] [#allocation12]
    $region37: #{cnn_forward.1} parent=1 // pred_fallthru
      _
    %38 = shalt.err (0)
    %s40 = sshll.u32 %s4, 4
    %s41 = int_to_ptr.hbm [resolvable:$true] %s40
    %s42 = sshll.u32 [#allocation2], 4
    %s43 = int_to_ptr.vmem [resolvable:$true] %s42
    %45 = dma.hbm_to_vmem [thread:$0]  %s41, 24576, %s43, [#allocation4]
    %s46 = scalar_lea.sflag [#allocation4], 1
    // Predicated region
    $region38: #{cnn_forward.1} parent=1 // pred_check
      _
    $region39: #{cnn_forward.1} parent=1 // pred_check_branch
      %48 = sbr.rel target = $region41
    $region40: #{cnn_forward.1} parent=1 // pred_region
      %49 = sst [smem:[#allocation14]] [#allocation17]
      %50 = sst [smem:[#allocation15]] [#allocation16]
    $region41: #{cnn_forward.1} parent=1 // pred_fallthru
      _
    %52 = shalt.err (0)
    %s54 = sshll.u32 %s6, 4
    %s55 = int_to_ptr.hbm [resolvable:$true] %s54
    %s56 = sshll.u32 [#allocation3], 4
    %s57 = int_to_ptr.vmem [resolvable:$true] %s56
    %59 = dma.hbm_to_vmem [thread:$0]  %s55, 8192, %s57, %s46
    %v60 = vlaneseq
    %v61 = vand.u32 %v60, 127
    %v62 = vld [vmem:[%s0] sm:$0xff]
    %v63 = vld [vmem:[%s0 + $0x8] sm:$0xff]
    %v64 = vld [vmem:[%s0 + $0x10] sm:$0xff]
    %v65 = vld [vmem:[%s0 + $0x18] sm:$0xff]
    %66 = vset.pattern.permute.xlu0 0
    %67 = vperm.xlu0 %66, %v62
    %v68 = vpop.permute.xlu0 %67
    %69 = vset.pattern.permute.xlu0 0
    %70 = vperm.xlu0 %69, %v63
    %v71 = vpop.permute.xlu0 %70
    %72 = vset.pattern.permute.xlu0 0
    %73 = vperm.xlu0 %72, %v64
    %v74 = vpop.permute.xlu0 %73
    %75 = vset.pattern.permute.xlu0 0
    %76 = vperm.xlu0 %75, %v65
    %v77 = vpop.permute.xlu0 %76
    %vm78 = vcmp.eq.s32.totalorder %v61, %v68
    %vm79 = vcmp.eq.s32.totalorder %v61, %v71
    %vm80 = vcmp.eq.s32.totalorder %v61, %v74
    %vm81 = vcmp.eq.s32.totalorder %v61, %v77
    %v82 = vsel %vm78, 1, 0
    %v83 = vsel %vm79, 1, 0
    %v84 = vsel %vm80, 1, 0
    %v85 = vsel %vm81, 1, 0
    %v86 = vcvt.s32.f32 %v82
    %v87 = vcvt.s32.f32 %v83
    %v88 = vcvt.s32.f32 %v84
    %v89 = vcvt.s32.f32 %v85
    %v90 = vpack.c.bf16 %v87, %v86
    %v91 = vpack.c.bf16 %v89, %v88
    %v92 = vld [vmem:[%s1] sm:$0xff]
    %v93 = vld [vmem:[%s1 + $0x8] sm:$0xff]
    %v94 = vld [vmem:[%s1 + $0x10] sm:$0xff]
    %v95 = vld [vmem:[%s1 + $0x18] sm:$0xff]
    %v96 = vld [vmem:[%s1 + $0x20] sm:$0xff]
    %v97 = vld [vmem:[%s1 + $0x28] sm:$0xff]
    %v98 = vld [vmem:[%s1 + $0x30] sm:$0x3]
    %v99 = vpack.c.bf16 %v93, %v92
    %v100 = vpack.c.bf16 %v95, %v94
    %v101 = vpack.c.bf16 %v97, %v96
    %v102 = vpack.c.bf16 %v98, %v98
    %vm103 = vcmask 408576
    %v105 = vsel %vm103, %v90, 0
    %v108 = vsel %vm103, %v91, 0
    %vm110 = vcmask 1040384
    %v112 = vsel %vm110, %v102, 0
    %114 = vmatpush.bf16.msra.mxu0 0
    %115 = vmatpush.bf16.msra.mxu0 0
    %116 = vmatpush.bf16.msra.mxu0 0
    %117 = vmatpush.bf16.msra.mxu0 0
    %118 = vmatpush.bf16.msra.mxu0 %v112
    %119 = vmatpush.bf16.msra.mxu0 %v101
    %120 = vmatpush.bf16.msra.mxu0 %v100
    %121 = vmatpush.bf16.msra.mxu0 %v99
    %122 = vmatmul.bf16.gmra.mxu0 %v105
    %v123 = vpop.f32.mrf.mxu0
    %v124 = vadd.f32 0.0, %v123
    %v125 = vpop.f32.mrf.mxu0
    %v126 = vadd.f32 0.0, %v125
    %127 = vmatmul.bf16.gmra.mxu0 %v108
    %v128 = vpop.f32.mrf.mxu0
    %v129 = vadd.f32 0.0, %v128
    %v130 = vpop.f32.mrf.mxu0
    %v131 = vadd.f32 0.0, %v130
    %132 = vdwg.mxu0
    %v133 = vpack.c.bf16 %v124, %v124
    %v134 = vpack.c.bf16 %v126, %v126
    %v135 = vpack.c.bf16 %v129, %v129
    %v136 = vpack.c.bf16 %v131, %v131
    %vm137 = vcmask 253952
    %vm138 = vsmask.f32 256
    %vm139 = vmand %vm137, %vm138
    %v140 = vld [vmem:[#allocation5] sm:$0x1]
    %v141 = vsel %vm139, 0, %v140
    %142 = vst [vmem:[#allocation5] sm:$0x1] %v141
    %vm143 = vsmask.f32 4368
    %vm144 = vmor %vm138, %vm143
    %v146 = vshrl.u32 %v133, 16
    %v148 = vrot.slane %v146, 7
    %v149 = vshll.u32 %v133, 16
    %v151 = vor.u32 %v148, %v149
    %v152 = vrot.slane %v148, 4
    %v154 = vshrl.u32 %v134, 16
    %v156 = vrot.slane %v154, 7
    %v157 = vshll.u32 %v134, 16
    %v159 = vor.u32 %v156, %v157
    %v160 = vsel %vm144, %v152, %v159
    %v161 = vrot.slane %v156, 4
    %vm165 = vcmask 257024
    %vm166 = vsmask.f32 7938
    %vm167 = vmand %vm165, %vm166
    %v168 = vld [vmem:[#allocation5] sm:$0xf]
    %v169 = vsel %vm167, %v151, %v168
    %170 = vst [vmem:[#allocation5] sm:$0xf] %v169
    %vm171 = vcmask 257024
    %172 = vst.msk [vmem:[#allocation5 + $0x4] sm:$0xf] %vm171, %v160
    %v173 = vld [vmem:[#allocation5 + $0x8] sm:$0x1]
    %v174 = vsel %vm139, %v161, %v173
    %175 = vst [vmem:[#allocation5 + $0x8] sm:$0x1] %v174
    %vm176 = vmand %vm137, %vm166
    %v177 = vld [vmem:[#allocation5 + $0x8] sm:$0x1]
    %v178 = vsel %vm176, 0, %v177
    %179 = vst [vmem:[#allocation5 + $0x8] sm:$0x1] %v178
    %v180 = vld [vmem:[#allocation5 + $0x10] sm:$0x1]
    %v181 = vsel %vm139, 0, %v180
    %182 = vst [vmem:[#allocation5 + $0x10] sm:$0x1] %v181
    %v184 = vshrl.u32 %v135, 16
    %v186 = vrot.slane %v184, 7
    %v187 = vshll.u32 %v135, 16
    %v189 = vor.u32 %v186, %v187
    %v190 = vrot.slane %v186, 4
    %v192 = vshrl.u32 %v136, 16
    %v194 = vrot.slane %v192, 7
    %v195 = vshll.u32 %v136, 16
    %v197 = vor.u32 %v194, %v195
    %v198 = vsel %vm144, %v190, %v197
    %v199 = vrot.slane %v194, 4
    %v203 = vld [vmem:[#allocation5 + $0x10] sm:$0xf]
    %v204 = vsel %vm167, %v189, %v203
    %205 = vst [vmem:[#allocation5 + $0x10] sm:$0xf] %v204
    %206 = vst.msk [vmem:[#allocation5 + $0x14] sm:$0xf] %vm171, %v198
    %v207 = vld [vmem:[#allocation5 + $0x18] sm:$0x1]
    %v208 = vsel %vm139, %v199, %v207
    %209 = vst [vmem:[#allocation5 + $0x18] sm:$0x1] %v208
    %v210 = vld [vmem:[#allocation5 + $0x18] sm:$0x1]
    %v211 = vsel %vm176, 0, %v210
    %212 = vst [vmem:[#allocation5 + $0x18] sm:$0x1] %v211
    %v213 = vld [vmem:[#allocation5] sm:$0xf]
    %v214 = vld [vmem:[#allocation5 + $0x4] sm:$0xf]
    %v215 = vld [vmem:[#allocation5 + $0x8] sm:$0xf]
    %v216 = vld [vmem:[#allocation5 + $0xc] sm:$0xf]
    %v217 = vld [vmem:[#allocation5 + $0x10] sm:$0xf]
    %v218 = vld [vmem:[#allocation5 + $0x14] sm:$0xf]
    %219 = vst.msk [vmem:[#allocation6] sm:$0xf] %vm171, %v213
    %220 = vst.msk [vmem:[#allocation6 + $0x8] sm:$0xf] %vm171, %v214
    %221 = vst.msk [vmem:[#allocation6 + $0x10] sm:$0xf] %vm171, %v215
    %222 = vst.msk [vmem:[#allocation6 + $0x18] sm:$0xf] %vm171, %v216
    %223 = vst.msk [vmem:[#allocation6 + $0x20] sm:$0xf] %vm171, %v217
    %224 = vst.msk [vmem:[#allocation6 + $0x28] sm:$0xf] %vm171, %v218
    %v225 = vld [vmem:[#allocation5] sm:$0xf]
    %v226 = vld [vmem:[#allocation5 + $0x4] sm:$0xf]
    %v227 = vld [vmem:[#allocation5 + $0x8] sm:$0xf]
    %v228 = vld [vmem:[#allocation5 + $0xc] sm:$0xf]
    %v229 = vld [vmem:[#allocation5 + $0x10] sm:$0xf]
    %v230 = vld [vmem:[#allocation5 + $0x14] sm:$0xf]
    %v231 = vld [vmem:[#allocation5 + $0x18] sm:$0x1]
    %vm232 = vsmask.f32 3328
    %vm233 = vsmask.f32 7440
    %vm234 = vmor %vm232, %vm233
    %v236 = vshrl.u32 %v225, 16
    %v238 = vrot.slane %v236, 4
    %v239 = vshll.u32 %v225, 16
    %v241 = vrot.slane %v239, 5
    %v242 = vor.u32 %v238, %v241
    %v243 = vrot.slane %v242, 4
    %v245 = vshll.u32 %v226, 16
    %v247 = vrot.slane %v245, 5
    %v248 = vsel %vm234, %v243, %v247
    %v249 = vshrl.u32 %v226, 16
    %v251 = vrot.slane %v249, 4
    %v252 = vor.u32 %v251, %v247
    %v253 = vrot.slane %v252, 4
    %v255 = vshll.u32 %v227, 16
    %v257 = vrot.slane %v255, 5
    %v258 = vsel %vm234, %v253, %v257
    %v259 = vshrl.u32 %v227, 16
    %v261 = vrot.slane %v259, 4
    %v262 = vor.u32 %v261, %v257
    %v263 = vrot.slane %v262, 4
    %v265 = vshll.u32 %v228, 16
    %v267 = vrot.slane %v265, 5
    %v268 = vsel %vm234, %v263, %v267
    %v269 = vshrl.u32 %v228, 16
    %v271 = vrot.slane %v269, 4
    %v272 = vor.u32 %v271, %v267
    %v273 = vrot.slane %v272, 4
    %v275 = vshll.u32 %v229, 16
    %v277 = vrot.slane %v275, 5
    %v278 = vsel %vm234, %v273, %v277
    %v279 = vshrl.u32 %v229, 16
    %v281 = vrot.slane %v279, 4
    %v282 = vor.u32 %v281, %v277
    %v283 = vrot.slane %v282, 4
    %v285 = vshll.u32 %v230, 16
    %v287 = vrot.slane %v285, 5
    %v288 = vsel %vm234, %v283, %v287
    %v289 = vshrl.u32 %v230, 16
    %v291 = vrot.slane %v289, 4
    %v292 = vor.u32 %v291, %v287
    %v293 = vrot.slane %v292, 4
    %v295 = vshll.u32 %v231, 16
    %v297 = vrot.slane %v295, 5
    %v298 = vsel %vm234, %v293, %v297
    %299 = vrot.lane.b32.xlu0 %v248, 32
    %v300 = vpop.permute.xlu0 %299
    %301 = vrot.lane.b32.xlu0 %v258, 32
    %v302 = vpop.permute.xlu0 %301
    %303 = vrot.lane.b32.xlu0 %v268, 32
    %v304 = vpop.permute.xlu0 %303
    %305 = vrot.lane.b32.xlu0 %v278, 32
    %v306 = vpop.permute.xlu0 %305
    %307 = vrot.lane.b32.xlu0 %v288, 32
    %v308 = vpop.permute.xlu0 %307
    %309 = vrot.lane.b32.xlu0 %v298, 32
    %v310 = vpop.permute.xlu0 %309
    %vm317 = vcmask 519424
    %318 = vst.msk [vmem:[#allocation6] sm:$0xf] %vm317, %v300
    %319 = vst.msk [vmem:[#allocation6 + $0x8] sm:$0xf] %vm317, %v302
    %320 = vst.msk [vmem:[#allocation6 + $0x10] sm:$0xf] %vm317, %v304
    %321 = vst.msk [vmem:[#allocation6 + $0x18] sm:$0xf] %vm317, %v306
    %322 = vst.msk [vmem:[#allocation6 + $0x20] sm:$0xf] %vm317, %v308
    %323 = vst.msk [vmem:[#allocation6 + $0x28] sm:$0xf] %vm317, %v310
    %v324 = vld [vmem:[#allocation5] sm:$0xe]
    %v325 = vld [vmem:[#allocation5 + $0x4] sm:$0xf]
    %v326 = vld [vmem:[#allocation5 + $0x8] sm:$0xf]
    %v327 = vld [vmem:[#allocation5 + $0xc] sm:$0xf]
    %v328 = vld [vmem:[#allocation5 + $0x10] sm:$0xf]
    %v329 = vld [vmem:[#allocation5 + $0x14] sm:$0xf]
    %v330 = vld [vmem:[#allocation5 + $0x18] sm:$0x1]
    %vm338 = vcmask 1042432
    %vm339 = vcmask 1046532
    %vm340 = vmor %vm338, %vm339
    %v341 = vrot.slane %v324, 5
    %v342 = vrot.slane %v341, 4
    %v343 = vrot.slane %v325, 5
    %v344 = vsel %vm340, %v342, %v343
    %v345 = vrot.slane %v343, 4
    %v346 = vrot.slane %v326, 5
    %v347 = vsel %vm340, %v345, %v346
    %v348 = vrot.slane %v346, 4
    %v349 = vrot.slane %v327, 5
    %v350 = vsel %vm340, %v348, %v349
    %v351 = vrot.slane %v349, 4
    %v352 = vrot.slane %v328, 5
    %v353 = vsel %vm340, %v351, %v352
    %v354 = vrot.slane %v352, 4
    %v355 = vrot.slane %v329, 5
    %v356 = vsel %vm340, %v354, %v355
    %v357 = vrot.slane %v355, 4
    %v358 = vrot.slane %v330, 5
    %v359 = vsel %vm340, %v357, %v358
    %360 = vrot.lane.b32.xlu0 %v344, 64
    %v361 = vpop.permute.xlu0 %360
    %362 = vrot.lane.b32.xlu0 %v347, 64
    %v363 = vpop.permute.xlu0 %362
    %364 = vrot.lane.b32.xlu0 %v350, 64
    %v365 = vpop.permute.xlu0 %364
    %366 = vrot.lane.b32.xlu0 %v353, 64
    %v367 = vpop.permute.xlu0 %366
    %368 = vrot.lane.b32.xlu0 %v356, 64
    %v369 = vpop.permute.xlu0 %368
    %370 = vrot.lane.b32.xlu0 %v359, 64
    %v371 = vpop.permute.xlu0 %370
    %vm378 = vcmask 781824
    %379 = vst.msk [vmem:[#allocation6] sm:$0xf] %vm378, %v361
    %380 = vst.msk [vmem:[#allocation6 + $0x8] sm:$0xf] %vm378, %v363
    %381 = vst.msk [vmem:[#allocation6 + $0x10] sm:$0xf] %vm378, %v365
    %382 = vst.msk [vmem:[#allocation6 + $0x18] sm:$0xf] %vm378, %v367
    %383 = vst.msk [vmem:[#allocation6 + $0x20] sm:$0xf] %vm378, %v369
    %384 = vst.msk [vmem:[#allocation6 + $0x28] sm:$0xf] %vm378, %v371
    %v385 = vld [vmem:[#allocation5] sm:$0xe]
    %v386 = vld [vmem:[#allocation5 + $0x4] sm:$0xf]
    %v387 = vld [vmem:[#allocation5 + $0x8] sm:$0xf]
    %v388 = vld [vmem:[#allocation5 + $0xc] sm:$0xf]
    %v389 = vld [vmem:[#allocation5 + $0x10] sm:$0xf]
    %v390 = vld [vmem:[#allocation5 + $0x14] sm:$0xf]
    %v391 = vld [vmem:[#allocation5 + $0x18] sm:$0x3]
    %vm392 = vsmask.f32 2304
    %vm393 = vsmask.f32 6416
    %vm394 = vmor %vm392, %vm393
    %v396 = vshrl.u32 %v385, 16
    %v398 = vrot.slane %v396, 5
    %v399 = vshll.u32 %v385, 16
    %v401 = vrot.slane %v399, 6
    %v402 = vor.u32 %v398, %v401
    %v403 = vrot.slane %v402, 4
    %v405 = vshrl.u32 %v386, 16
    %v407 = vrot.slane %v405, 5
    %v408 = vshll.u32 %v386, 16
    %v410 = vrot.slane %v408, 6
    %v411 = vor.u32 %v407, %v410
    %v412 = vsel %vm394, %v403, %v411
    %v413 = vrot.slane %v411, 4
    %v415 = vshrl.u32 %v387, 16
    %v417 = vrot.slane %v415, 5
    %v418 = vshll.u32 %v387, 16
    %v420 = vrot.slane %v418, 6
    %v421 = vor.u32 %v417, %v420
    %v422 = vsel %vm394, %v413, %v421
    %v423 = vrot.slane %v421, 4
    %v425 = vshrl.u32 %v388, 16
    %v427 = vrot.slane %v425, 5
    %v428 = vshll.u32 %v388, 16
    %v430 = vrot.slane %v428, 6
    %v431 = vor.u32 %v427, %v430
    %v432 = vsel %vm394, %v423, %v431
    %v433 = vrot.slane %v431, 4
    %v435 = vshrl.u32 %v389, 16
    %v437 = vrot.slane %v435, 5
    %v438 = vshll.u32 %v389, 16
    %v440 = vrot.slane %v438, 6
    %v441 = vor.u32 %v437, %v440
    %v442 = vsel %vm394, %v433, %v441
    %v443 = vrot.slane %v441, 4
    %v445 = vshrl.u32 %v390, 16
    %v447 = vrot.slane %v445, 5
    %v448 = vshll.u32 %v390, 16
    %v450 = vrot.slane %v448, 6
    %v451 = vor.u32 %v447, %v450
    %v452 = vsel %vm394, %v443, %v451
    %v453 = vrot.slane %v451, 4
    %v455 = vshrl.u32 %v391, 16
    %v457 = vrot.slane %v455, 5
    %v458 = vshll.u32 %v391, 16
    %v460 = vrot.slane %v458, 6
    %v461 = vor.u32 %v457, %v460
    %v462 = vsel %vm394, %v453, %v461
    %463 = vrot.lane.b32.xlu0 %v412, 96
    %v464 = vpop.permute.xlu0 %463
    %465 = vrot.lane.b32.xlu0 %v422, 96
    %v466 = vpop.permute.xlu0 %465
    %467 = vrot.lane.b32.xlu0 %v432, 96
    %v468 = vpop.permute.xlu0 %467
    %469 = vrot.lane.b32.xlu0 %v442, 96
    %v470 = vpop.permute.xlu0 %469
    %471 = vrot.lane.b32.xlu0 %v452, 96
    %v472 = vpop.permute.xlu0 %471
    %473 = vrot.lane.b32.xlu0 %v462, 96
    %v474 = vpop.permute.xlu0 %473
    %vm481 = vcmask 1044224
    %482 = vst.msk [vmem:[#allocation6] sm:$0xf] %vm481, %v464
    %483 = vst.msk [vmem:[#allocation6 + $0x8] sm:$0xf] %vm481, %v466
    %484 = vst.msk [vmem:[#allocation6 + $0x10] sm:$0xf] %vm481, %v468
    %485 = vst.msk [vmem:[#allocation6 + $0x18] sm:$0xf] %vm481, %v470
    %486 = vst.msk [vmem:[#allocation6 + $0x20] sm:$0xf] %vm481, %v472
    %487 = vst.msk [vmem:[#allocation6 + $0x28] sm:$0xf] %vm481, %v474
    %v488 = vld [vmem:[#allocation5] sm:$0xc]
    %v489 = vld [vmem:[#allocation5 + $0x4] sm:$0xf]
    %v490 = vld [vmem:[#allocation5 + $0x8] sm:$0xf]
    %v491 = vld [vmem:[#allocation5 + $0xc] sm:$0xf]
    %v492 = vld [vmem:[#allocation5 + $0x10] sm:$0xf]
    %v493 = vld [vmem:[#allocation5 + $0x14] sm:$0xf]
    %v494 = vld [vmem:[#allocation5 + $0x18] sm:$0x3]
    %vm502 = vcmask 1041408
    %vm503 = vcmask 1045508
    %vm504 = vmor %vm502, %vm503
    %v505 = vrot.slane %v488, 6
    %v506 = vrot.slane %v505, 4
    %v507 = vrot.slane %v489, 6
    %v508 = vsel %vm504, %v506, %v507
    %v509 = vrot.slane %v507, 4
    %v510 = vrot.slane %v490, 6
    %v511 = vsel %vm504, %v509, %v510
    %v512 = vrot.slane %v510, 4
    %v513 = vrot.slane %v491, 6
    %v514 = vsel %vm504, %v512, %v513
    %v515 = vrot.slane %v513, 4
    %v516 = vrot.slane %v492, 6
    %v517 = vsel %vm504, %v515, %v516
    %v518 = vrot.slane %v516, 4
    %v519 = vrot.slane %v493, 6
    %v520 = vsel %vm504, %v518, %v519
    %v521 = vrot.slane %v519, 4
    %v522 = vrot.slane %v494, 6
    %v523 = vsel %vm504, %v521, %v522
    %530 = vst.msk [vmem:[#allocation6 + $0x4] sm:$0xf] %vm171, %v508
    %531 = vst.msk [vmem:[#allocation6 + $0xc] sm:$0xf] %vm171, %v511
    %532 = vst.msk [vmem:[#allocation6 + $0x14] sm:$0xf] %vm171, %v514
    %533 = vst.msk [vmem:[#allocation6 + $0x1c] sm:$0xf] %vm171, %v517
    %534 = vst.msk [vmem:[#allocation6 + $0x24] sm:$0xf] %vm171, %v520
    %535 = vst.msk [vmem:[#allocation6 + $0x2c] sm:$0xf] %vm171, %v523
    %v536 = vld [vmem:[#allocation6] sm:$0xff]
    %v537 = vld [vmem:[#allocation6 + $0x8] sm:$0xff]
    %v538 = vld [vmem:[#allocation6 + $0x10] sm:$0xff]
    %v539 = vld [vmem:[#allocation6 + $0x18] sm:$0xff]
    %v540 = vld [vmem:[#allocation6 + $0x20] sm:$0xff]
    %v541 = vld [vmem:[#allocation6 + $0x28] sm:$0xff]
    %v542 = vld [vmem:[%s2] sm:$0xff]
    %v543 = vld [vmem:[%s2 + $0x8] sm:$0xff]
    %v544 = vld [vmem:[%s2 + $0x10] sm:$0xff]
    %v545 = vld [vmem:[%s2 + $0x18] sm:$0xff]
    %v546 = vld [vmem:[%s2 + $0x20] sm:$0xff]
    %v547 = vld [vmem:[%s2 + $0x28] sm:$0xff]
    %v548 = vld [vmem:[%s2 + $0x30] sm:$0xff]
    %v549 = vld [vmem:[%s2 + $0x38] sm:$0xff]
    %v550 = vld [vmem:[%s2 + $0x40] sm:$0xff]
    %v551 = vld [vmem:[%s2 + $0x48] sm:$0xff]
    %v552 = vld [vmem:[%s2 + $0x50] sm:$0xff]
    %v553 = vld [vmem:[%s2 + $0x58] sm:$0xff]
    %v554 = vld [vmem:[%s2 + $0x60] sm:$0xff]
    %v555 = vld [vmem:[%s2 + $0x68] sm:$0xff]
    %v556 = vld [vmem:[%s2 + $0x70] sm:$0xff]
    %v557 = vld [vmem:[%s2 + $0x78] sm:$0xff]
    %v558 = vld [vmem:[%s2 + $0x80] sm:$0xff]
    %v559 = vld [vmem:[%s2 + $0x88] sm:$0xff]
    %v560 = vld [vmem:[%s2 + $0x90] sm:$0xff]
    %v561 = vld [vmem:[%s2 + $0x98] sm:$0xff]
    %v562 = vld [vmem:[%s3] sm:$0x3]
    %v564 = vperm.slane %v562, 0
    %v565 = vperm.slane %v562, 1
    %v574 = vunpack.c.l.b16 %v536
    %v575 = vunpack.c.h.b16 %v536
    %v576 = vunpack.c.l.b16 %v537
    %v577 = vunpack.c.h.b16 %v537
    %v578 = vunpack.c.l.b16 %v538
    %v579 = vunpack.c.h.b16 %v538
    %v580 = vunpack.c.l.b16 %v539
    %v581 = vunpack.c.h.b16 %v539
    %v582 = vunpack.c.l.b16 %v540
    %v583 = vunpack.c.h.b16 %v540
    %v584 = vunpack.c.l.b16 %v541
    %v585 = vunpack.c.h.b16 %v541
    %v586 = vpack.c.b16 %v576, %v574
    %v587 = vpack.c.b16 %v577, %v575
    %v588 = vpack.c.b16 %v580, %v578
    %v589 = vpack.c.b16 %v581, %v579
    %v590 = vpack.c.b16 %v584, %v582
    %v591 = vpack.c.b16 %v585, %v583
    %v615 = vunpack.c.l.b16 %v542
    %v616 = vunpack.c.h.b16 %v542
    %v617 = vunpack.c.l.b16 %v543
    %v618 = vunpack.c.h.b16 %v543
    %v619 = vunpack.c.l.b16 %v544
    %v620 = vunpack.c.h.b16 %v544
    %v621 = vunpack.c.l.b16 %v545
    %v622 = vunpack.c.h.b16 %v545
    %v623 = vunpack.c.l.b16 %v546
    %v624 = vunpack.c.h.b16 %v546
    %v625 = vunpack.c.l.b16 %v547
    %v626 = vunpack.c.h.b16 %v547
    %v627 = vunpack.c.l.b16 %v548
    %v628 = vunpack.c.h.b16 %v548
    %v629 = vunpack.c.l.b16 %v549
    %v630 = vunpack.c.h.b16 %v549
    %v631 = vunpack.c.l.b16 %v550
    %v632 = vunpack.c.h.b16 %v550
    %v633 = vunpack.c.l.b16 %v551
    %v634 = vunpack.c.h.b16 %v551
    %v635 = vunpack.c.l.b16 %v552
    %v636 = vunpack.c.h.b16 %v552
    %v637 = vunpack.c.l.b16 %v553
    %v638 = vunpack.c.h.b16 %v553
    %v639 = vunpack.c.l.b16 %v554
    %v640 = vunpack.c.h.b16 %v554
    %v641 = vunpack.c.l.b16 %v555
    %v642 = vunpack.c.h.b16 %v555
    %v643 = vunpack.c.l.b16 %v556
    %v644 = vunpack.c.h.b16 %v556
    %v645 = vunpack.c.l.b16 %v557
    %v646 = vunpack.c.h.b16 %v557
    %v647 = vunpack.c.l.b16 %v558
    %v648 = vunpack.c.h.b16 %v558
    %v649 = vunpack.c.l.b16 %v559
    %v650 = vunpack.c.h.b16 %v559
    %v651 = vunpack.c.l.b16 %v560
    %v652 = vunpack.c.h.b16 %v560
    %v653 = vunpack.c.l.b16 %v561
    %v654 = vunpack.c.h.b16 %v561
    %v655 = vpack.c.b16 %v617, %v615
    %v656 = vpack.c.b16 %v618, %v616
    %v657 = vpack.c.b16 %v621, %v619
    %v658 = vpack.c.b16 %v622, %v620
    %v659 = vpack.c.b16 %v625, %v623
    %v660 = vpack.c.b16 %v626, %v624
    %v661 = vpack.c.b16 %v629, %v627
    %v662 = vpack.c.b16 %v630, %v628
    %v663 = vpack.c.b16 %v633, %v631
    %v664 = vpack.c.b16 %v634, %v632
    %v665 = vpack.c.b16 %v637, %v635
    %v666 = vpack.c.b16 %v638, %v636
    %v667 = vpack.c.b16 %v641, %v639
    %v668 = vpack.c.b16 %v642, %v640
    %v669 = vpack.c.b16 %v645, %v643
    %v670 = vpack.c.b16 %v646, %v644
    %v671 = vpack.c.b16 %v649, %v647
    %v672 = vpack.c.b16 %v650, %v648
    %v673 = vpack.c.b16 %v653, %v651
    %v674 = vpack.c.b16 %v654, %v652
    %vm695 = vcmask 261120
    %v697 = vsel %vm695, %v587, 0
    %v700 = vsel %vm695, %v589, 0
    %v703 = vsel %vm695, %v591, 0
    %705 = vmatpush.bf16.msra.mxu0 %v669
    %706 = vmatpush.bf16.msra.mxu0 %v667
    %707 = vmatpush.bf16.msra.mxu0 %v665
    %708 = vmatpush.bf16.msra.mxu0 %v663
    %709 = vmatpush.bf16.msra.mxu0 %v661
    %710 = vmatpush.bf16.msra.mxu0 %v659
    %711 = vmatpush.bf16.msra.mxu0 %v657
    %712 = vmatpush.bf16.msra.mxu0 %v655
    %713 = vmatmul.bf16.gmra.mxu0 %v586
    %v714 = vpop.f32.mrf.mxu0
    %v715 = vadd.f32 %v564, %v714
    %v716 = vpop.f32.mrf.mxu0
    %v717 = vadd.f32 %v564, %v716
    %718 = vmatmul.bf16.gmra.mxu0 %v588
    %v719 = vpop.f32.mrf.mxu0
    %v720 = vpop.f32.mrf.mxu0
    %721 = vmatmul.bf16.gmra.mxu0 %v590
    %v722 = vpop.f32.mrf.mxu0
    %v723 = vadd.f32 %v564, %v722
    %v724 = vpop.f32.mrf.mxu0
    %v725 = vadd.f32 %v564, %v724
    %726 = vdwg.mxu0
    %727 = vmatpush.bf16.msra.mxu0 0
    %728 = vmatpush.bf16.msra.mxu0 0
    %729 = vmatpush.bf16.msra.mxu0 0
    %730 = vmatpush.bf16.msra.mxu0 0
    %731 = vmatpush.bf16.msra.mxu0 0
    %732 = vmatpush.bf16.msra.mxu0 0
    %733 = vmatpush.bf16.msra.mxu0 %v673
    %734 = vmatpush.bf16.msra.mxu0 %v671
    %735 = vmatmul.bf16.gmra.mxu0 %v697
    %v736 = vpop.f32.mrf.mxu0
    %v737 = vadd.f32 %v715, %v736
    %v738 = vpop.f32.mrf.mxu0
    %v739 = vadd.f32 %v717, %v738
    %740 = vmatmul.bf16.gmra.mxu0 %v700
    %v741 = vpop.f32.mrf.mxu0
    %v742 = vpop.f32.mrf.mxu0
    %743 = vmatmul.bf16.gmra.mxu0 %v703
    %v744 = vpop.f32.mrf.mxu0
    %v745 = vadd.f32 %v723, %v744
    %v746 = vpop.f32.mrf.mxu0
    %v747 = vadd.f32 %v725, %v746
    %748 = vdwg.mxu0
    %749 = vmatpush.bf16.msra.mxu0 %v670
    %750 = vmatpush.bf16.msra.mxu0 %v668
    %751 = vmatpush.bf16.msra.mxu0 %v666
    %752 = vmatpush.bf16.msra.mxu0 %v664
    %753 = vmatpush.bf16.msra.mxu0 %v662
    %754 = vmatpush.bf16.msra.mxu0 %v660
    %755 = vmatpush.bf16.msra.mxu0 %v658
    %756 = vmatpush.bf16.msra.mxu0 %v656
    %757 = vmatmul.bf16.gmra.mxu0 %v586
    %v758 = vpop.f32.mrf.mxu0
    %v759 = vadd.f32 %v565, %v758
    %v760 = vpop.f32.mrf.mxu0
    %v761 = vadd.f32 %v565, %v760
    %762 = vmatmul.bf16.gmra.mxu0 %v588
    %v763 = vpop.f32.mrf.mxu0
    %v764 = vpop.f32.mrf.mxu0
    %765 = vmatmul.bf16.gmra.mxu0 %v590
    %v766 = vpop.f32.mrf.mxu0
    %v767 = vadd.f32 %v565, %v766
    %v768 = vpop.f32.mrf.mxu0
    %v769 = vadd.f32 %v565, %v768
    %770 = vdwg.mxu0
    %771 = vmatpush.bf16.msra.mxu0 0
    %772 = vmatpush.bf16.msra.mxu0 0
    %773 = vmatpush.bf16.msra.mxu0 0
    %774 = vmatpush.bf16.msra.mxu0 0
    %775 = vmatpush.bf16.msra.mxu0 0
    %776 = vmatpush.bf16.msra.mxu0 0
    %777 = vmatpush.bf16.msra.mxu0 %v674
    %778 = vmatpush.bf16.msra.mxu0 %v672
    %779 = vmatmul.bf16.gmra.mxu0 %v697
    %v780 = vpop.f32.mrf.mxu0
    %v781 = vadd.f32 %v759, %v780
    %v782 = vpop.f32.mrf.mxu0
    %v783 = vadd.f32 %v761, %v782
    %784 = vmatmul.bf16.gmra.mxu0 %v700
    %v785 = vpop.f32.mrf.mxu0
    %v786 = vpop.f32.mrf.mxu0
    %787 = vmatmul.bf16.gmra.mxu0 %v703
    %v788 = vpop.f32.mrf.mxu0
    %v789 = vadd.f32 %v767, %v788
    %v790 = vpop.f32.mrf.mxu0
    %v791 = vadd.f32 %v769, %v790
    %792 = vdwg.mxu0
    %v793 = vmax.f32 %v737, 0.0
    %v794 = vmax.f32 %v781, 0.0
    %v795 = vmax.f32 %v739, 0.0
    %v796 = vmax.f32 %v783, 0.0
    %v797 = vmax.f32 %v745, 0.0
    %v798 = vmax.f32 %v789, 0.0
    %v799 = vmax.f32 %v747, 0.0
    %v800 = vmax.f32 %v791, 0.0
    %v801 = vpack.c.bf16 %v794, %v793
    %v802 = vpack.c.bf16 %v796, %v795
    %v803 = vpack.c.bf16 %v798, %v797
    %v804 = vpack.c.bf16 %v800, %v799
    %vm805 = vcmask 1040384
    %vm806 = vmand %vm805, %vm138
    %vm807 = vcmask 1044484
    %vm808 = vsmask.f32 4352
    %vm809 = vmand %vm807, %vm808
    %vm810 = vmor %vm809, %vm806
    %v811 = vld [vmem:[#allocation7] sm:$0x11]
    %v812 = vsel %vm810, 0, %v811
    %813 = vst [vmem:[#allocation7] sm:$0x11] %v812
    %v815 = vshrl.u32 %v801, 16
    %v817 = vrot.slane %v815, 7
    %v818 = vshll.u32 %v801, 16
    %v820 = vor.u32 %v817, %v818
    %v821 = vrot.slane %v817, 4
    %v823 = vshrl.u32 %v802, 16
    %v825 = vrot.slane %v823, 7
    %v826 = vshll.u32 %v802, 16
    %v828 = vor.u32 %v825, %v826
    %v829 = vsel %vm144, %v821, %v828
    %vm832 = vcmask 1043456
    %vm833 = vmand %vm832, %vm166
    %vm834 = vcmask 1047556
    %vm835 = vsmask.f32 7954
    %vm836 = vmand %vm834, %vm835
    %vm837 = vmor %vm836, %vm833
    %v838 = vld [vmem:[#allocation7] sm:$0xff]
    %v839 = vsel %vm837, %v820, %v838
    %840 = vst [vmem:[#allocation7] sm:$0xff] %v839
    %vm841 = vmand %vm832, %vm232
    %vm842 = vsmask.f32 7424
    %vm843 = vmand %vm834, %vm842
    %vm844 = vmor %vm843, %vm841
    %v845 = vld [vmem:[#allocation7 + $0x8] sm:$0xff]
    %v846 = vsel %vm844, %v829, %v845
    %847 = vst [vmem:[#allocation7 + $0x8] sm:$0xff] %v846
    %vm848 = vcmask 1043459
    %vm849 = vsmask.f32 7950
    %vm850 = vmand %vm848, %vm849
    %vm851 = vcmask 1047559
    %vm852 = vsmask.f32 7966
    %vm853 = vmand %vm851, %vm852
    %vm854 = vmor %vm853, %vm850
    %v855 = vld [vmem:[#allocation7 + $0x8] sm:$0x88]
    %v856 = vsel %vm854, 0, %v855
    %857 = vst [vmem:[#allocation7 + $0x8] sm:$0x88] %v856
    %v858 = vld [vmem:[#allocation7 + $0x10] sm:$0x11]
    %v859 = vsel %vm810, 0, %v858
    %860 = vst [vmem:[#allocation7 + $0x10] sm:$0x11] %v859
    %v862 = vshrl.u32 %v803, 16
    %v864 = vrot.slane %v862, 7
    %v865 = vshll.u32 %v803, 16
    %v867 = vor.u32 %v864, %v865
    %v868 = vrot.slane %v864, 4
    %v870 = vshrl.u32 %v804, 16
    %v872 = vrot.slane %v870, 7
    %v873 = vshll.u32 %v804, 16
    %v875 = vor.u32 %v872, %v873
    %v876 = vsel %vm144, %v868, %v875
    %v879 = vld [vmem:[#allocation7 + $0x10] sm:$0xff]
    %v880 = vsel %vm837, %v867, %v879
    %881 = vst [vmem:[#allocation7 + $0x10] sm:$0xff] %v880
    %v882 = vld [vmem:[#allocation7 + $0x18] sm:$0xff]
    %v883 = vsel %vm844, %v876, %v882
    %884 = vst [vmem:[#allocation7 + $0x18] sm:$0xff] %v883
    %v885 = vld [vmem:[#allocation7 + $0x18] sm:$0x88]
    %v886 = vsel %vm854, 0, %v885
    %887 = vst [vmem:[#allocation7 + $0x18] sm:$0x88] %v886
    %v888 = vld [vmem:[#allocation7] sm:$0xff]
    %v889 = vld [vmem:[#allocation7 + $0x8] sm:$0xff]
    %v890 = vld [vmem:[#allocation7 + $0x10] sm:$0xff]
    %v891 = vld [vmem:[#allocation7 + $0x18] sm:$0xff]
    %892 = vst [vmem:[#allocation8] sm:$0xff] %v888
    %893 = vst [vmem:[#allocation8 + $0x18] sm:$0xff] %v889
    %894 = vst [vmem:[#allocation8 + $0x30] sm:$0xff] %v890
    %895 = vst [vmem:[#allocation8 + $0x48] sm:$0x77] %v891
    %v897 = vshrl.u32 %v888, 16
    %v899 = vrot.slane %v897, 4
    %v900 = vshll.u32 %v888, 16
    %v902 = vrot.slane %v900, 5
    %v903 = vor.u32 %v899, %v902
    %v904 = vrot.slane %v903, 4
    %v906 = vshll.u32 %v889, 16
    %v908 = vrot.slane %v906, 5
    %v909 = vsel %vm234, %v904, %v908
    %v910 = vshrl.u32 %v889, 16
    %v912 = vrot.slane %v910, 4
    %v913 = vor.u32 %v912, %v908
    %v914 = vrot.slane %v913, 4
    %v916 = vshll.u32 %v890, 16
    %v918 = vrot.slane %v916, 5
    %v919 = vsel %vm234, %v914, %v918
    %v920 = vshrl.u32 %v890, 16
    %v922 = vrot.slane %v920, 4
    %v923 = vor.u32 %v922, %v918
    %v924 = vrot.slane %v923, 4
    %v926 = vshll.u32 %v891, 16
    %v928 = vrot.slane %v926, 5
    %v929 = vsel %vm234, %v924, %v928
    %v930 = vshrl.u32 %v891, 16
    %v932 = vrot.slane %v930, 4
    %v933 = vor.u32 %v932, %v928
    %v934 = vrot.slane %v933, 4
    %939 = vst [vmem:[#allocation8 + $0x8] sm:$0xff] %v909
    %940 = vst [vmem:[#allocation8 + $0x20] sm:$0xff] %v919
    %941 = vst [vmem:[#allocation8 + $0x38] sm:$0xff] %v929
    %942 = vst [vmem:[#allocation8 + $0x50] sm:$0x77] %v934
    %v947 = vrot.slane %v888, 5
    %v948 = vrot.slane %v947, 4
    %v949 = vrot.slane %v889, 5
    %v950 = vsel %vm340, %v948, %v949
    %v951 = vrot.slane %v949, 4
    %v952 = vrot.slane %v890, 5
    %v953 = vsel %vm340, %v951, %v952
    %v954 = vrot.slane %v952, 4
    %v955 = vrot.slane %v891, 5
    %v956 = vsel %vm340, %v954, %v955
    %v957 = vrot.slane %v955, 4
    %962 = vst [vmem:[#allocation8 + $0x10] sm:$0xff] %v950
    %963 = vst [vmem:[#allocation8 + $0x28] sm:$0xff] %v953
    %964 = vst [vmem:[#allocation8 + $0x40] sm:$0xff] %v956
    %965 = vst [vmem:[#allocation8 + $0x58] sm:$0x77] %v957
    %s966 = smul.u32 4, 96
    %s967 = smul.u32 %s966, 4
    %s968 = sshll.u32 %s967, 4
    %969 = dma.done [#allocation4], %s968
    %v970 = vld [vmem:[#allocation8] sm:$0xff]
    %v971 = vld [vmem:[#allocation8 + $0x8] sm:$0xff]
    %v972 = vld [vmem:[#allocation8 + $0x10] sm:$0xff]
    %v973 = vld [vmem:[#allocation8 + $0x18] sm:$0xff]
    %v974 = vld [vmem:[#allocation8 + $0x20] sm:$0xff]
    %v975 = vld [vmem:[#allocation8 + $0x28] sm:$0xff]
    %v976 = vld [vmem:[#allocation8 + $0x30] sm:$0xff]
    %v977 = vld [vmem:[#allocation8 + $0x38] sm:$0xff]
    %v978 = vld [vmem:[#allocation8 + $0x40] sm:$0xff]
    %v979 = vld [vmem:[#allocation8 + $0x48] sm:$0xff]
    %v980 = vld [vmem:[#allocation8 + $0x50] sm:$0xff]
    %v981 = vld [vmem:[#allocation8 + $0x58] sm:$0xff]
    %v982 = vld [vmem:[#allocation2] sm:$0xff]
    %v983 = vld [vmem:[#allocation2 + $0x8] sm:$0xff]
    %v984 = vld [vmem:[#allocation2 + $0x10] sm:$0xff]
    %v985 = vld [vmem:[#allocation2 + $0x18] sm:$0xff]
    %v986 = vld [vmem:[#allocation2 + $0x20] sm:$0xff]
    %v987 = vld [vmem:[#allocation2 + $0x28] sm:$0xff]
    %v988 = vld [vmem:[#allocation2 + $0x30] sm:$0xff]
    %v989 = vld [vmem:[#allocation2 + $0x38] sm:$0xff]
    %v990 = vld [vmem:[#allocation2 + $0x40] sm:$0xff]
    %v991 = vld [vmem:[#allocation2 + $0x48] sm:$0xff]
    %v992 = vld [vmem:[#allocation2 + $0x50] sm:$0xff]
    %v993 = vld [vmem:[#allocation2 + $0x58] sm:$0xff]
    %v994 = vld [vmem:[#allocation2 + $0x60] sm:$0xff]
    %v995 = vld [vmem:[#allocation2 + $0x68] sm:$0xff]
    %v996 = vld [vmem:[#allocation2 + $0x70] sm:$0xff]
    %v997 = vld [vmem:[#allocation2 + $0x78] sm:$0xff]
    %v998 = vld [vmem:[#allocation2 + $0x80] sm:$0xff]
    %v999 = vld [vmem:[#allocation2 + $0x88] sm:$0xff]
    %v1000 = vld [vmem:[#allocation2 + $0x90] sm:$0xff]
    %v1001 = vld [vmem:[#allocation2 + $0x98] sm:$0xff]
    %v1002 = vld [vmem:[#allocation2 + $0xa0] sm:$0xff]
    %v1003 = vld [vmem:[#allocation2 + $0xa8] sm:$0xff]
    %v1004 = vld [vmem:[#allocation2 + $0xb0] sm:$0xff]
    %v1005 = vld [vmem:[#allocation2 + $0xb8] sm:$0xff]
    %v1006 = vld [vmem:[#allocation2 + $0xc0] sm:$0xff]
    %v1007 = vld [vmem:[#allocation2 + $0xc8] sm:$0xff]
    %v1008 = vld [vmem:[#allocation2 + $0xd0] sm:$0xff]
    %v1009 = vld [vmem:[#allocation2 + $0xd8] sm:$0xff]
    %v1010 = vld [vmem:[#allocation2 + $0xe0] sm:$0xff]
    %v1011 = vld [vmem:[#allocation2 + $0xe8] sm:$0xff]
    %v1012 = vld [vmem:[#allocation2 + $0xf0] sm:$0xff]
    %v1013 = vld [vmem:[#allocation2 + $0xf8] sm:$0xff]
    %v1014 = vld [vmem:[#allocation2 + $0x100] sm:$0xff]
    %v1015 = vld [vmem:[#allocation2 + $0x108] sm:$0xff]
    %v1016 = vld [vmem:[#allocation2 + $0x110] sm:$0xff]
    %v1017 = vld [vmem:[#allocation2 + $0x118] sm:$0xff]
    %v1018 = vld [vmem:[#allocation2 + $0x120] sm:$0xff]
    %v1019 = vld [vmem:[#allocation2 + $0x128] sm:$0xff]
    %v1020 = vld [vmem:[#allocation2 + $0x130] sm:$0xff]
    %v1021 = vld [vmem:[#allocation2 + $0x138] sm:$0xff]
    %v1022 = vld [vmem:[#allocation2 + $0x140] sm:$0xff]
    %v1023 = vld [vmem:[#allocation2 + $0x148] sm:$0xff]
    %v1024 = vld [vmem:[#allocation2 + $0x150] sm:$0xff]
    %v1025 = vld [vmem:[#allocation2 + $0x158] sm:$0xff]
    %v1026 = vld [vmem:[#allocation2 + $0x160] sm:$0xff]
    %v1027 = vld [vmem:[#allocation2 + $0x168] sm:$0xff]
    %v1028 = vld [vmem:[#allocation2 + $0x170] sm:$0xff]
    %v1029 = vld [vmem:[#allocation2 + $0x178] sm:$0xff]
    %v1030 = vld [vmem:[#allocation2 + $0x180] sm:$0xff]
    %v1031 = vld [vmem:[#allocation2 + $0x188] sm:$0xff]
    %v1032 = vld [vmem:[#allocation2 + $0x190] sm:$0xff]
    %v1033 = vld [vmem:[#allocation2 + $0x198] sm:$0xff]
    %v1034 = vld [vmem:[#allocation2 + $0x1a0] sm:$0xff]
    %v1035 = vld [vmem:[#allocation2 + $0x1a8] sm:$0xff]
    %v1036 = vld [vmem:[#allocation2 + $0x1b0] sm:$0xff]
    %v1037 = vld [vmem:[#allocation2 + $0x1b8] sm:$0xff]
    %v1038 = vld [vmem:[#allocation2 + $0x1c0] sm:$0xff]
    %v1039 = vld [vmem:[#allocation2 + $0x1c8] sm:$0xff]
    %v1040 = vld [vmem:[#allocation2 + $0x1d0] sm:$0xff]
    %v1041 = vld [vmem:[#allocation2 + $0x1d8] sm:$0xff]
    %v1042 = vld [vmem:[#allocation2 + $0x1e0] sm:$0xff]
    %v1043 = vld [vmem:[#allocation2 + $0x1e8] sm:$0xff]
    %v1044 = vld [vmem:[#allocation2 + $0x1f0] sm:$0xff]
    %v1045 = vld [vmem:[#allocation2 + $0x1f8] sm:$0xff]
    %v1046 = vld [vmem:[#allocation2 + $0x200] sm:$0xff]
    %v1047 = vld [vmem:[#allocation2 + $0x208] sm:$0xff]
    %v1048 = vld [vmem:[#allocation2 + $0x210] sm:$0xff]
    %v1049 = vld [vmem:[#allocation2 + $0x218] sm:$0xff]
    %v1050 = vld [vmem:[#allocation2 + $0x220] sm:$0xff]
    %v1051 = vld [vmem:[#allocation2 + $0x228] sm:$0xff]
    %v1052 = vld [vmem:[#allocation2 + $0x230] sm:$0xff]
    %v1053 = vld [vmem:[#allocation2 + $0x238] sm:$0xff]
    %v1054 = vld [vmem:[#allocation2 + $0x240] sm:$0xff]
    %v1055 = vld [vmem:[#allocation2 + $0x248] sm:$0xff]
    %v1056 = vld [vmem:[#allocation2 + $0x250] sm:$0xff]
    %v1057 = vld [vmem:[#allocation2 + $0x258] sm:$0xff]
    %v1058 = vld [vmem:[#allocation2 + $0x260] sm:$0xff]
    %v1059 = vld [vmem:[#allocation2 + $0x268] sm:$0xff]
    %v1060 = vld [vmem:[#allocation2 + $0x270] sm:$0xff]
    %v1061 = vld [vmem:[#allocation2 + $0x278] sm:$0xff]
    %v1062 = vld [vmem:[#allocation2 + $0x280] sm:$0xff]
    %v1063 = vld [vmem:[#allocation2 + $0x288] sm:$0xff]
    %v1064 = vld [vmem:[#allocation2 + $0x290] sm:$0xff]
    %v1065 = vld [vmem:[#allocation2 + $0x298] sm:$0xff]
    %v1066 = vld [vmem:[#allocation2 + $0x2a0] sm:$0xff]
    %v1067 = vld [vmem:[#allocation2 + $0x2a8] sm:$0xff]
    %v1068 = vld [vmem:[#allocation2 + $0x2b0] sm:$0xff]
    %v1069 = vld [vmem:[#allocation2 + $0x2b8] sm:$0xff]
    %v1070 = vld [vmem:[#allocation2 + $0x2c0] sm:$0xff]
    %v1071 = vld [vmem:[#allocation2 + $0x2c8] sm:$0xff]
    %v1072 = vld [vmem:[#allocation2 + $0x2d0] sm:$0xff]
    %v1073 = vld [vmem:[#allocation2 + $0x2d8] sm:$0xff]
    %v1074 = vld [vmem:[#allocation2 + $0x2e0] sm:$0xff]
    %v1075 = vld [vmem:[#allocation2 + $0x2e8] sm:$0xff]
    %v1076 = vld [vmem:[#allocation2 + $0x2f0] sm:$0xff]
    %v1077 = vld [vmem:[#allocation2 + $0x2f8] sm:$0xff]
    %v1078 = vld [vmem:[#allocation2 + $0x300] sm:$0xff]
    %v1079 = vld [vmem:[#allocation2 + $0x308] sm:$0xff]
    %v1080 = vld [vmem:[#allocation2 + $0x310] sm:$0xff]
    %v1081 = vld [vmem:[#allocation2 + $0x318] sm:$0xff]
    %v1082 = vld [vmem:[#allocation2 + $0x320] sm:$0xff]
    %v1083 = vld [vmem:[#allocation2 + $0x328] sm:$0xff]
    %v1084 = vld [vmem:[#allocation2 + $0x330] sm:$0xff]
    %v1085 = vld [vmem:[#allocation2 + $0x338] sm:$0xff]
    %v1086 = vld [vmem:[#allocation2 + $0x340] sm:$0xff]
    %v1087 = vld [vmem:[#allocation2 + $0x348] sm:$0xff]
    %v1088 = vld [vmem:[#allocation2 + $0x350] sm:$0xff]
    %v1089 = vld [vmem:[#allocation2 + $0x358] sm:$0xff]
    %v1090 = vld [vmem:[#allocation2 + $0x360] sm:$0xff]
    %v1091 = vld [vmem:[#allocation2 + $0x368] sm:$0xff]
    %v1092 = vld [vmem:[#allocation2 + $0x370] sm:$0xff]
    %v1093 = vld [vmem:[#allocation2 + $0x378] sm:$0xff]
    %v1094 = vld [vmem:[#allocation2 + $0x380] sm:$0xff]
    %v1095 = vld [vmem:[#allocation2 + $0x388] sm:$0xff]
    %v1096 = vld [vmem:[#allocation2 + $0x390] sm:$0xff]
    %v1097 = vld [vmem:[#allocation2 + $0x398] sm:$0xff]
    %v1098 = vld [vmem:[#allocation2 + $0x3a0] sm:$0xff]
    %v1099 = vld [vmem:[#allocation2 + $0x3a8] sm:$0xff]
    %v1100 = vld [vmem:[#allocation2 + $0x3b0] sm:$0xff]
    %v1101 = vld [vmem:[#allocation2 + $0x3b8] sm:$0xff]
    %v1102 = vld [vmem:[#allocation2 + $0x3c0] sm:$0xff]
    %v1103 = vld [vmem:[#allocation2 + $0x3c8] sm:$0xff]
    %v1104 = vld [vmem:[#allocation2 + $0x3d0] sm:$0xff]
    %v1105 = vld [vmem:[#allocation2 + $0x3d8] sm:$0xff]
    %v1106 = vld [vmem:[#allocation2 + $0x3e0] sm:$0xff]
    %v1107 = vld [vmem:[#allocation2 + $0x3e8] sm:$0xff]
    %v1108 = vld [vmem:[#allocation2 + $0x3f0] sm:$0xff]
    %v1109 = vld [vmem:[#allocation2 + $0x3f8] sm:$0xff]
    %v1110 = vld [vmem:[#allocation2 + $0x400] sm:$0xff]
    %v1111 = vld [vmem:[#allocation2 + $0x408] sm:$0xff]
    %v1112 = vld [vmem:[#allocation2 + $0x410] sm:$0xff]
    %v1113 = vld [vmem:[#allocation2 + $0x418] sm:$0xff]
    %v1114 = vld [vmem:[#allocation2 + $0x420] sm:$0xff]
    %v1115 = vld [vmem:[#allocation2 + $0x428] sm:$0xff]
    %v1116 = vld [vmem:[#allocation2 + $0x430] sm:$0xff]
    %v1117 = vld [vmem:[#allocation2 + $0x438] sm:$0xff]
    %v1118 = vld [vmem:[#allocation2 + $0x440] sm:$0xff]
    %v1119 = vld [vmem:[#allocation2 + $0x448] sm:$0xff]
    %v1120 = vld [vmem:[#allocation2 + $0x450] sm:$0xff]
    %v1121 = vld [vmem:[#allocation2 + $0x458] sm:$0xff]
    %v1122 = vld [vmem:[#allocation2 + $0x460] sm:$0xff]
    %v1123 = vld [vmem:[#allocation2 + $0x468] sm:$0xff]
    %v1124 = vld [vmem:[#allocation2 + $0x470] sm:$0xff]
    %v1125 = vld [vmem:[#allocation2 + $0x478] sm:$0xff]
    %v1126 = vld [vmem:[#allocation2 + $0x480] sm:$0xff]
    %v1127 = vld [vmem:[#allocation2 + $0x488] sm:$0xff]
    %v1128 = vld [vmem:[#allocation2 + $0x490] sm:$0xff]
    %v1129 = vld [vmem:[#allocation2 + $0x498] sm:$0xff]
    %v1130 = vld [vmem:[#allocation2 + $0x4a0] sm:$0xff]
    %v1131 = vld [vmem:[#allocation2 + $0x4a8] sm:$0xff]
    %v1132 = vld [vmem:[#allocation2 + $0x4b0] sm:$0xff]
    %v1133 = vld [vmem:[#allocation2 + $0x4b8] sm:$0xff]
    %v1134 = vld [vmem:[#allocation2 + $0x4c0] sm:$0xff]
    %v1135 = vld [vmem:[#allocation2 + $0x4c8] sm:$0xff]
    %v1136 = vld [vmem:[#allocation2 + $0x4d0] sm:$0xff]
    %v1137 = vld [vmem:[#allocation2 + $0x4d8] sm:$0xff]
    %v1138 = vld [vmem:[#allocation2 + $0x4e0] sm:$0xff]
    %v1139 = vld [vmem:[#allocation2 + $0x4e8] sm:$0xff]
    %v1140 = vld [vmem:[#allocation2 + $0x4f0] sm:$0xff]
    %v1141 = vld [vmem:[#allocation2 + $0x4f8] sm:$0xff]
    %v1142 = vld [vmem:[#allocation2 + $0x500] sm:$0xff]
    %v1143 = vld [vmem:[#allocation2 + $0x508] sm:$0xff]
    %v1144 = vld [vmem:[#allocation2 + $0x510] sm:$0xff]
    %v1145 = vld [vmem:[#allocation2 + $0x518] sm:$0xff]
    %v1146 = vld [vmem:[#allocation2 + $0x520] sm:$0xff]
    %v1147 = vld [vmem:[#allocation2 + $0x528] sm:$0xff]
    %v1148 = vld [vmem:[#allocation2 + $0x530] sm:$0xff]
    %v1149 = vld [vmem:[#allocation2 + $0x538] sm:$0xff]
    %v1150 = vld [vmem:[#allocation2 + $0x540] sm:$0xff]
    %v1151 = vld [vmem:[#allocation2 + $0x548] sm:$0xff]
    %v1152 = vld [vmem:[#allocation2 + $0x550] sm:$0xff]
    %v1153 = vld [vmem:[#allocation2 + $0x558] sm:$0xff]
    %v1154 = vld [vmem:[#allocation2 + $0x560] sm:$0xff]
    %v1155 = vld [vmem:[#allocation2 + $0x568] sm:$0xff]
    %v1156 = vld [vmem:[#allocation2 + $0x570] sm:$0xff]
    %v1157 = vld [vmem:[#allocation2 + $0x578] sm:$0xff]
    %v1158 = vld [vmem:[#allocation2 + $0x580] sm:$0xff]
    %v1159 = vld [vmem:[#allocation2 + $0x588] sm:$0xff]
    %v1160 = vld [vmem:[#allocation2 + $0x590] sm:$0xff]
    %v1161 = vld [vmem:[#allocation2 + $0x598] sm:$0xff]
    %v1162 = vld [vmem:[#allocation2 + $0x5a0] sm:$0xff]
    %v1163 = vld [vmem:[#allocation2 + $0x5a8] sm:$0xff]
    %v1164 = vld [vmem:[#allocation2 + $0x5b0] sm:$0xff]
    %v1165 = vld [vmem:[#allocation2 + $0x5b8] sm:$0xff]
    %v1166 = vld [vmem:[#allocation2 + $0x5c0] sm:$0xff]
    %v1167 = vld [vmem:[#allocation2 + $0x5c8] sm:$0xff]
    %v1168 = vld [vmem:[#allocation2 + $0x5d0] sm:$0xff]
    %v1169 = vld [vmem:[#allocation2 + $0x5d8] sm:$0xff]
    %v1170 = vld [vmem:[#allocation2 + $0x5e0] sm:$0xff]
    %v1171 = vld [vmem:[#allocation2 + $0x5e8] sm:$0xff]
    %v1172 = vld [vmem:[#allocation2 + $0x5f0] sm:$0xff]
    %v1173 = vld [vmem:[#allocation2 + $0x5f8] sm:$0xff]
    %v1174 = vld [vmem:[%s5] sm:$0xf]
    %v1176 = vperm.slane %v1174, 0
    %v1177 = vperm.slane %v1174, 1
    %v1178 = vperm.slane %v1174, 2
    %v1179 = vperm.slane %v1174, 3
    %v1196 = vunpack.c.l.b16 %v970
    %v1197 = vunpack.c.h.b16 %v970
    %v1198 = vunpack.c.l.b16 %v971
    %v1199 = vunpack.c.h.b16 %v971
    %v1200 = vunpack.c.l.b16 %v972
    %v1201 = vunpack.c.h.b16 %v972
    %v1202 = vunpack.c.l.b16 %v973
    %v1203 = vunpack.c.h.b16 %v973
    %v1204 = vunpack.c.l.b16 %v974
    %v1205 = vunpack.c.h.b16 %v974
    %v1206 = vunpack.c.l.b16 %v975
    %v1207 = vunpack.c.h.b16 %v975
    %v1208 = vunpack.c.l.b16 %v976
    %v1209 = vunpack.c.h.b16 %v976
    %v1210 = vunpack.c.l.b16 %v977
    %v1211 = vunpack.c.h.b16 %v977
    %v1212 = vunpack.c.l.b16 %v978
    %v1213 = vunpack.c.h.b16 %v978
    %v1214 = vunpack.c.l.b16 %v979
    %v1215 = vunpack.c.h.b16 %v979
    %v1216 = vunpack.c.l.b16 %v980
    %v1217 = vunpack.c.h.b16 %v980
    %v1218 = vunpack.c.l.b16 %v981
    %v1219 = vunpack.c.h.b16 %v981
    %v1220 = vpack.c.b16 %v1202, %v1196
    %v1221 = vpack.c.b16 %v1203, %v1197
    %v1222 = vpack.c.b16 %v1204, %v1198
    %v1223 = vpack.c.b16 %v1205, %v1199
    %v1224 = vpack.c.b16 %v1206, %v1200
    %v1225 = vpack.c.b16 %v1207, %v1201
    %v1226 = vpack.c.b16 %v1214, %v1208
    %v1227 = vpack.c.b16 %v1215, %v1209
    %v1228 = vpack.c.b16 %v1216, %v1210
    %v1229 = vpack.c.b16 %v1217, %v1211
    %v1230 = vpack.c.b16 %v1218, %v1212
    %v1231 = vpack.c.b16 %v1219, %v1213
    %v1436 = vunpack.c.l.b16 %v982
    %v1437 = vunpack.c.h.b16 %v982
    %v1438 = vunpack.c.l.b16 %v983
    %v1439 = vunpack.c.h.b16 %v983
    %v1440 = vunpack.c.l.b16 %v984
    %v1441 = vunpack.c.h.b16 %v984
    %v1442 = vunpack.c.l.b16 %v985
    %v1443 = vunpack.c.h.b16 %v985
    %v1444 = vunpack.c.l.b16 %v986
    %v1445 = vunpack.c.h.b16 %v986
    %v1446 = vunpack.c.l.b16 %v987
    %v1447 = vunpack.c.h.b16 %v987
    %v1448 = vunpack.c.l.b16 %v988
    %v1449 = vunpack.c.h.b16 %v988
    %v1450 = vunpack.c.l.b16 %v989
    %v1451 = vunpack.c.h.b16 %v989
    %v1452 = vunpack.c.l.b16 %v990
    %v1453 = vunpack.c.h.b16 %v990
    %v1454 = vunpack.c.l.b16 %v991
    %v1455 = vunpack.c.h.b16 %v991
    %v1456 = vunpack.c.l.b16 %v992
    %v1457 = vunpack.c.h.b16 %v992
    %v1458 = vunpack.c.l.b16 %v993
    %v1459 = vunpack.c.h.b16 %v993
    %v1460 = vunpack.c.l.b16 %v994
    %v1461 = vunpack.c.h.b16 %v994
    %v1462 = vunpack.c.l.b16 %v995
    %v1463 = vunpack.c.h.b16 %v995
    %v1464 = vunpack.c.l.b16 %v996
    %v1465 = vunpack.c.h.b16 %v996
    %v1466 = vunpack.c.l.b16 %v997
    %v1467 = vunpack.c.h.b16 %v997
    %v1468 = vunpack.c.l.b16 %v998
    %v1469 = vunpack.c.h.b16 %v998
    %v1470 = vunpack.c.l.b16 %v999
    %v1471 = vunpack.c.h.b16 %v999
    %v1472 = vunpack.c.l.b16 %v1000
    %v1473 = vunpack.c.h.b16 %v1000
    %v1474 = vunpack.c.l.b16 %v1001
    %v1475 = vunpack.c.h.b16 %v1001
    %v1476 = vunpack.c.l.b16 %v1002
    %v1477 = vunpack.c.h.b16 %v1002
    %v1478 = vunpack.c.l.b16 %v1003
    %v1479 = vunpack.c.h.b16 %v1003
    %v1480 = vunpack.c.l.b16 %v1004
    %v1481 = vunpack.c.h.b16 %v1004
    %v1482 = vunpack.c.l.b16 %v1005
    %v1483 = vunpack.c.h.b16 %v1005
    %v1484 = vunpack.c.l.b16 %v1006
    %v1485 = vunpack.c.h.b16 %v1006
    %v1486 = vunpack.c.l.b16 %v1007
    %v1487 = vunpack.c.h.b16 %v1007
    %v1488 = vunpack.c.l.b16 %v1008
    %v1489 = vunpack.c.h.b16 %v1008
    %v1490 = vunpack.c.l.b16 %v1009
    %v1491 = vunpack.c.h.b16 %v1009
    %v1492 = vunpack.c.l.b16 %v1010
    %v1493 = vunpack.c.h.b16 %v1010
    %v1494 = vunpack.c.l.b16 %v1011
    %v1495 = vunpack.c.h.b16 %v1011
    %v1496 = vunpack.c.l.b16 %v1012
    %v1497 = vunpack.c.h.b16 %v1012
    %v1498 = vunpack.c.l.b16 %v1013
    %v1499 = vunpack.c.h.b16 %v1013
    %v1500 = vunpack.c.l.b16 %v1014
    %v1501 = vunpack.c.h.b16 %v1014
    %v1502 = vunpack.c.l.b16 %v1015
    %v1503 = vunpack.c.h.b16 %v1015
    %v1504 = vunpack.c.l.b16 %v1016
    %v1505 = vunpack.c.h.b16 %v1016
    %v1506 = vunpack.c.l.b16 %v1017
    %v1507 = vunpack.c.h.b16 %v1017
    %v1508 = vunpack.c.l.b16 %v1018
    %v1509 = vunpack.c.h.b16 %v1018
    %v1510 = vunpack.c.l.b16 %v1019
    %v1511 = vunpack.c.h.b16 %v1019
    %v1512 = vunpack.c.l.b16 %v1020
    %v1513 = vunpack.c.h.b16 %v1020
    %v1514 = vunpack.c.l.b16 %v1021
    %v1515 = vunpack.c.h.b16 %v1021
    %v1516 = vunpack.c.l.b16 %v1022
    %v1517 = vunpack.c.h.b16 %v1022
    %v1518 = vunpack.c.l.b16 %v1023
    %v1519 = vunpack.c.h.b16 %v1023
    %v1520 = vunpack.c.l.b16 %v1024
    %v1521 = vunpack.c.h.b16 %v1024
    %v1522 = vunpack.c.l.b16 %v1025
    %v1523 = vunpack.c.h.b16 %v1025
    %v1524 = vunpack.c.l.b16 %v1026
    %v1525 = vunpack.c.h.b16 %v1026
    %v1526 = vunpack.c.l.b16 %v1027
    %v1527 = vunpack.c.h.b16 %v1027
    %v1528 = vunpack.c.l.b16 %v1028
    %v1529 = vunpack.c.h.b16 %v1028
    %v1530 = vunpack.c.l.b16 %v1029
    %v1531 = vunpack.c.h.b16 %v1029
    %v1532 = vunpack.c.l.b16 %v1030
    %v1533 = vunpack.c.h.b16 %v1030
    %v1534 = vunpack.c.l.b16 %v1031
    %v1535 = vunpack.c.h.b16 %v1031
    %v1536 = vunpack.c.l.b16 %v1032
    %v1537 = vunpack.c.h.b16 %v1032
    %v1538 = vunpack.c.l.b16 %v1033
    %v1539 = vunpack.c.h.b16 %v1033
    %v1540 = vunpack.c.l.b16 %v1034
    %v1541 = vunpack.c.h.b16 %v1034
    %v1542 = vunpack.c.l.b16 %v1035
    %v1543 = vunpack.c.h.b16 %v1035
    %v1544 = vunpack.c.l.b16 %v1036
    %v1545 = vunpack.c.h.b16 %v1036
    %v1546 = vunpack.c.l.b16 %v1037
    %v1547 = vunpack.c.h.b16 %v1037
    %v1548 = vunpack.c.l.b16 %v1038
    %v1549 = vunpack.c.h.b16 %v1038
    %v1550 = vunpack.c.l.b16 %v1039
    %v1551 = vunpack.c.h.b16 %v1039
    %v1552 = vunpack.c.l.b16 %v1040
    %v1553 = vunpack.c.h.b16 %v1040
    %v1554 = vunpack.c.l.b16 %v1041
    %v1555 = vunpack.c.h.b16 %v1041
    %v1556 = vunpack.c.l.b16 %v1042
    %v1557 = vunpack.c.h.b16 %v1042
    %v1558 = vunpack.c.l.b16 %v1043
    %v1559 = vunpack.c.h.b16 %v1043
    %v1560 = vunpack.c.l.b16 %v1044
    %v1561 = vunpack.c.h.b16 %v1044
    %v1562 = vunpack.c.l.b16 %v1045
    %v1563 = vunpack.c.h.b16 %v1045
    %v1564 = vunpack.c.l.b16 %v1046
    %v1565 = vunpack.c.h.b16 %v1046
    %v1566 = vunpack.c.l.b16 %v1047
    %v1567 = vunpack.c.h.b16 %v1047
    %v1568 = vunpack.c.l.b16 %v1048
    %v1569 = vunpack.c.h.b16 %v1048
    %v1570 = vunpack.c.l.b16 %v1049
    %v1571 = vunpack.c.h.b16 %v1049
    %v1572 = vunpack.c.l.b16 %v1050
    %v1573 = vunpack.c.h.b16 %v1050
    %v1574 = vunpack.c.l.b16 %v1051
    %v1575 = vunpack.c.h.b16 %v1051
    %v1576 = vunpack.c.l.b16 %v1052
    %v1577 = vunpack.c.h.b16 %v1052
    %v1578 = vunpack.c.l.b16 %v1053
    %v1579 = vunpack.c.h.b16 %v1053
    %v1580 = vunpack.c.l.b16 %v1054
    %v1581 = vunpack.c.h.b16 %v1054
    %v1582 = vunpack.c.l.b16 %v1055
    %v1583 = vunpack.c.h.b16 %v1055
    %v1584 = vunpack.c.l.b16 %v1056
    %v1585 = vunpack.c.h.b16 %v1056
    %v1586 = vunpack.c.l.b16 %v1057
    %v1587 = vunpack.c.h.b16 %v1057
    %v1588 = vunpack.c.l.b16 %v1058
    %v1589 = vunpack.c.h.b16 %v1058
    %v1590 = vunpack.c.l.b16 %v1059
    %v1591 = vunpack.c.h.b16 %v1059
    %v1592 = vunpack.c.l.b16 %v1060
    %v1593 = vunpack.c.h.b16 %v1060
    %v1594 = vunpack.c.l.b16 %v1061
    %v1595 = vunpack.c.h.b16 %v1061
    %v1596 = vunpack.c.l.b16 %v1062
    %v1597 = vunpack.c.h.b16 %v1062
    %v1598 = vunpack.c.l.b16 %v1063
    %v1599 = vunpack.c.h.b16 %v1063
    %v1600 = vunpack.c.l.b16 %v1064
    %v1601 = vunpack.c.h.b16 %v1064
    %v1602 = vunpack.c.l.b16 %v1065
    %v1603 = vunpack.c.h.b16 %v1065
    %v1604 = vunpack.c.l.b16 %v1066
    %v1605 = vunpack.c.h.b16 %v1066
    %v1606 = vunpack.c.l.b16 %v1067
    %v1607 = vunpack.c.h.b16 %v1067
    %v1608 = vunpack.c.l.b16 %v1068
    %v1609 = vunpack.c.h.b16 %v1068
    %v1610 = vunpack.c.l.b16 %v1069
    %v1611 = vunpack.c.h.b16 %v1069
    %v1612 = vunpack.c.l.b16 %v1070
    %v1613 = vunpack.c.h.b16 %v1070
    %v1614 = vunpack.c.l.b16 %v1071
    %v1615 = vunpack.c.h.b16 %v1071
    %v1616 = vunpack.c.l.b16 %v1072
    %v1617 = vunpack.c.h.b16 %v1072
    %v1618 = vunpack.c.l.b16 %v1073
    %v1619 = vunpack.c.h.b16 %v1073
    %v1620 = vunpack.c.l.b16 %v1074
    %v1621 = vunpack.c.h.b16 %v1074
    %v1622 = vunpack.c.l.b16 %v1075
    %v1623 = vunpack.c.h.b16 %v1075
    %v1624 = vunpack.c.l.b16 %v1076
    %v1625 = vunpack.c.h.b16 %v1076
    %v1626 = vunpack.c.l.b16 %v1077
    %v1627 = vunpack.c.h.b16 %v1077
    %v1628 = vunpack.c.l.b16 %v1078
    %v1629 = vunpack.c.h.b16 %v1078
    %v1630 = vunpack.c.l.b16 %v1079
    %v1631 = vunpack.c.h.b16 %v1079
    %v1632 = vunpack.c.l.b16 %v1080
    %v1633 = vunpack.c.h.b16 %v1080
    %v1634 = vunpack.c.l.b16 %v1081
    %v1635 = vunpack.c.h.b16 %v1081
    %v1636 = vunpack.c.l.b16 %v1082
    %v1637 = vunpack.c.h.b16 %v1082
    %v1638 = vunpack.c.l.b16 %v1083
    %v1639 = vunpack.c.h.b16 %v1083
    %v1640 = vunpack.c.l.b16 %v1084
    %v1641 = vunpack.c.h.b16 %v1084
    %v1642 = vunpack.c.l.b16 %v1085
    %v1643 = vunpack.c.h.b16 %v1085
    %v1644 = vunpack.c.l.b16 %v1086
    %v1645 = vunpack.c.h.b16 %v1086
    %v1646 = vunpack.c.l.b16 %v1087
    %v1647 = vunpack.c.h.b16 %v1087
    %v1648 = vunpack.c.l.b16 %v1088
    %v1649 = vunpack.c.h.b16 %v1088
    %v1650 = vunpack.c.l.b16 %v1089
    %v1651 = vunpack.c.h.b16 %v1089
    %v1652 = vunpack.c.l.b16 %v1090
    %v1653 = vunpack.c.h.b16 %v1090
    %v1654 = vunpack.c.l.b16 %v1091
    %v1655 = vunpack.c.h.b16 %v1091
    %v1656 = vunpack.c.l.b16 %v1092
    %v1657 = vunpack.c.h.b16 %v1092
    %v1658 = vunpack.c.l.b16 %v1093
    %v1659 = vunpack.c.h.b16 %v1093
    %v1660 = vunpack.c.l.b16 %v1094
    %v1661 = vunpack.c.h.b16 %v1094
    %v1662 = vunpack.c.l.b16 %v1095
    %v1663 = vunpack.c.h.b16 %v1095
    %v1664 = vunpack.c.l.b16 %v1096
    %v1665 = vunpack.c.h.b16 %v1096
    %v1666 = vunpack.c.l.b16 %v1097
    %v1667 = vunpack.c.h.b16 %v1097
    %v1668 = vunpack.c.l.b16 %v1098
    %v1669 = vunpack.c.h.b16 %v1098
    %v1670 = vunpack.c.l.b16 %v1099
    %v1671 = vunpack.c.h.b16 %v1099
    %v1672 = vunpack.c.l.b16 %v1100
    %v1673 = vunpack.c.h.b16 %v1100
    %v1674 = vunpack.c.l.b16 %v1101
    %v1675 = vunpack.c.h.b16 %v1101
    %v1676 = vunpack.c.l.b16 %v1102
    %v1677 = vunpack.c.h.b16 %v1102
    %v1678 = vunpack.c.l.b16 %v1103
    %v1679 = vunpack.c.h.b16 %v1103
    %v1680 = vunpack.c.l.b16 %v1104
    %v1681 = vunpack.c.h.b16 %v1104
    %v1682 = vunpack.c.l.b16 %v1105
    %v1683 = vunpack.c.h.b16 %v1105
    %v1684 = vunpack.c.l.b16 %v1106
    %v1685 = vunpack.c.h.b16 %v1106
    %v1686 = vunpack.c.l.b16 %v1107
    %v1687 = vunpack.c.h.b16 %v1107
    %v1688 = vunpack.c.l.b16 %v1108
    %v1689 = vunpack.c.h.b16 %v1108
    %v1690 = vunpack.c.l.b16 %v1109
    %v1691 = vunpack.c.h.b16 %v1109
    %v1692 = vunpack.c.l.b16 %v1110
    %v1693 = vunpack.c.h.b16 %v1110
    %v1694 = vunpack.c.l.b16 %v1111
    %v1695 = vunpack.c.h.b16 %v1111
    %v1696 = vunpack.c.l.b16 %v1112
    %v1697 = vunpack.c.h.b16 %v1112
    %v1698 = vunpack.c.l.b16 %v1113
    %v1699 = vunpack.c.h.b16 %v1113
    %v1700 = vunpack.c.l.b16 %v1114
    %v1701 = vunpack.c.h.b16 %v1114
    %v1702 = vunpack.c.l.b16 %v1115
    %v1703 = vunpack.c.h.b16 %v1115
    %v1704 = vunpack.c.l.b16 %v1116
    %v1705 = vunpack.c.h.b16 %v1116
    %v1706 = vunpack.c.l.b16 %v1117
    %v1707 = vunpack.c.h.b16 %v1117
    %v1708 = vunpack.c.l.b16 %v1118
    %v1709 = vunpack.c.h.b16 %v1118
    %v1710 = vunpack.c.l.b16 %v1119
    %v1711 = vunpack.c.h.b16 %v1119
    %v1712 = vunpack.c.l.b16 %v1120
    %v1713 = vunpack.c.h.b16 %v1120
    %v1714 = vunpack.c.l.b16 %v1121
    %v1715 = vunpack.c.h.b16 %v1121
    %v1716 = vunpack.c.l.b16 %v1122
    %v1717 = vunpack.c.h.b16 %v1122
    %v1718 = vunpack.c.l.b16 %v1123
    %v1719 = vunpack.c.h.b16 %v1123
    %v1720 = vunpack.c.l.b16 %v1124
    %v1721 = vunpack.c.h.b16 %v1124
    %v1722 = vunpack.c.l.b16 %v1125
    %v1723 = vunpack.c.h.b16 %v1125
    %v1724 = vunpack.c.l.b16 %v1126
    %v1725 = vunpack.c.h.b16 %v1126
    %v1726 = vunpack.c.l.b16 %v1127
    %v1727 = vunpack.c.h.b16 %v1127
    %v1728 = vunpack.c.l.b16 %v1128
    %v1729 = vunpack.c.h.b16 %v1128
    %v1730 = vunpack.c.l.b16 %v1129
    %v1731 = vunpack.c.h.b16 %v1129
    %v1732 = vunpack.c.l.b16 %v1130
    %v1733 = vunpack.c.h.b16 %v1130
    %v1734 = vunpack.c.l.b16 %v1131
    %v1735 = vunpack.c.h.b16 %v1131
    %v1736 = vunpack.c.l.b16 %v1132
    %v1737 = vunpack.c.h.b16 %v1132
    %v1738 = vunpack.c.l.b16 %v1133
    %v1739 = vunpack.c.h.b16 %v1133
    %v1740 = vunpack.c.l.b16 %v1134
    %v1741 = vunpack.c.h.b16 %v1134
    %v1742 = vunpack.c.l.b16 %v1135
    %v1743 = vunpack.c.h.b16 %v1135
    %v1744 = vunpack.c.l.b16 %v1136
    %v1745 = vunpack.c.h.b16 %v1136
    %v1746 = vunpack.c.l.b16 %v1137
    %v1747 = vunpack.c.h.b16 %v1137
    %v1748 = vunpack.c.l.b16 %v1138
    %v1749 = vunpack.c.h.b16 %v1138
    %v1750 = vunpack.c.l.b16 %v1139
    %v1751 = vunpack.c.h.b16 %v1139
    %v1752 = vunpack.c.l.b16 %v1140
    %v1753 = vunpack.c.h.b16 %v1140
    %v1754 = vunpack.c.l.b16 %v1141
    %v1755 = vunpack.c.h.b16 %v1141
    %v1756 = vunpack.c.l.b16 %v1142
    %v1757 = vunpack.c.h.b16 %v1142
    %v1758 = vunpack.c.l.b16 %v1143
    %v1759 = vunpack.c.h.b16 %v1143
    %v1760 = vunpack.c.l.b16 %v1144
    %v1761 = vunpack.c.h.b16 %v1144
    %v1762 = vunpack.c.l.b16 %v1145
    %v1763 = vunpack.c.h.b16 %v1145
    %v1764 = vunpack.c.l.b16 %v1146
    %v1765 = vunpack.c.h.b16 %v1146
    %v1766 = vunpack.c.l.b16 %v1147
    %v1767 = vunpack.c.h.b16 %v1147
    %v1768 = vunpack.c.l.b16 %v1148
    %v1769 = vunpack.c.h.b16 %v1148
    %v1770 = vunpack.c.l.b16 %v1149
    %v1771 = vunpack.c.h.b16 %v1149
    %v1772 = vunpack.c.l.b16 %v1150
    %v1773 = vunpack.c.h.b16 %v1150
    %v1774 = vunpack.c.l.b16 %v1151
    %v1775 = vunpack.c.h.b16 %v1151
    %v1776 = vunpack.c.l.b16 %v1152
    %v1777 = vunpack.c.h.b16 %v1152
    %v1778 = vunpack.c.l.b16 %v1153
    %v1779 = vunpack.c.h.b16 %v1153
    %v1780 = vunpack.c.l.b16 %v1154
    %v1781 = vunpack.c.h.b16 %v1154
    %v1782 = vunpack.c.l.b16 %v1155
    %v1783 = vunpack.c.h.b16 %v1155
    %v1784 = vunpack.c.l.b16 %v1156
    %v1785 = vunpack.c.h.b16 %v1156
    %v1786 = vunpack.c.l.b16 %v1157
    %v1787 = vunpack.c.h.b16 %v1157
    %v1788 = vunpack.c.l.b16 %v1158
    %v1789 = vunpack.c.h.b16 %v1158
    %v1790 = vunpack.c.l.b16 %v1159
    %v1791 = vunpack.c.h.b16 %v1159
    %v1792 = vunpack.c.l.b16 %v1160
    %v1793 = vunpack.c.h.b16 %v1160
    %v1794 = vunpack.c.l.b16 %v1161
    %v1795 = vunpack.c.h.b16 %v1161
    %v1796 = vunpack.c.l.b16 %v1162
    %v1797 = vunpack.c.h.b16 %v1162
    %v1798 = vunpack.c.l.b16 %v1163
    %v1799 = vunpack.c.h.b16 %v1163
    %v1800 = vunpack.c.l.b16 %v1164
    %v1801 = vunpack.c.h.b16 %v1164
    %v1802 = vunpack.c.l.b16 %v1165
    %v1803 = vunpack.c.h.b16 %v1165
    %v1804 = vunpack.c.l.b16 %v1166
    %v1805 = vunpack.c.h.b16 %v1166
    %v1806 = vunpack.c.l.b16 %v1167
    %v1807 = vunpack.c.h.b16 %v1167
    %v1808 = vunpack.c.l.b16 %v1168
    %v1809 = vunpack.c.h.b16 %v1168
    %v1810 = vunpack.c.l.b16 %v1169
    %v1811 = vunpack.c.h.b16 %v1169
    %v1812 = vunpack.c.l.b16 %v1170
    %v1813 = vunpack.c.h.b16 %v1170
    %v1814 = vunpack.c.l.b16 %v1171
    %v1815 = vunpack.c.h.b16 %v1171
    %v1816 = vunpack.c.l.b16 %v1172
    %v1817 = vunpack.c.h.b16 %v1172
    %v1818 = vunpack.c.l.b16 %v1173
    %v1819 = vunpack.c.h.b16 %v1173
    %v1820 = vpack.c.b16 %v1440, %v1436
    %v1821 = vpack.c.b16 %v1441, %v1437
    %v1822 = vpack.c.b16 %v1442, %v1438
    %v1823 = vpack.c.b16 %v1443, %v1439
    %v1824 = vpack.c.b16 %v1448, %v1444
    %v1825 = vpack.c.b16 %v1449, %v1445
    %v1826 = vpack.c.b16 %v1450, %v1446
    %v1827 = vpack.c.b16 %v1451, %v1447
    %v1828 = vpack.c.b16 %v1456, %v1452
    %v1829 = vpack.c.b16 %v1457, %v1453
    %v1830 = vpack.c.b16 %v1458, %v1454
    %v1831 = vpack.c.b16 %v1459, %v1455
    %v1832 = vpack.c.b16 %v1464, %v1460
    %v1833 = vpack.c.b16 %v1465, %v1461
    %v1834 = vpack.c.b16 %v1466, %v1462
    %v1835 = vpack.c.b16 %v1467, %v1463
    %v1836 = vpack.c.b16 %v1472, %v1468
    %v1837 = vpack.c.b16 %v1473, %v1469
    %v1838 = vpack.c.b16 %v1474, %v1470
    %v1839 = vpack.c.b16 %v1475, %v1471
    %v1840 = vpack.c.b16 %v1480, %v1476
    %v1841 = vpack.c.b16 %v1481, %v1477
    %v1842 = vpack.c.b16 %v1482, %v1478
    %v1843 = vpack.c.b16 %v1483, %v1479
    %v1844 = vpack.c.b16 %v1488, %v1484
    %v1845 = vpack.c.b16 %v1489, %v1485
    %v1846 = vpack.c.b16 %v1490, %v1486
    %v1847 = vpack.c.b16 %v1491, %v1487
    %v1848 = vpack.c.b16 %v1496, %v1492
    %v1849 = vpack.c.b16 %v1497, %v1493
    %v1850 = vpack.c.b16 %v1498, %v1494
    %v1851 = vpack.c.b16 %v1499, %v1495
    %v1852 = vpack.c.b16 %v1504, %v1500
    %v1853 = vpack.c.b16 %v1505, %v1501
    %v1854 = vpack.c.b16 %v1506, %v1502
    %v1855 = vpack.c.b16 %v1507, %v1503
    %v1856 = vpack.c.b16 %v1512, %v1508
    %v1857 = vpack.c.b16 %v1513, %v1509
    %v1858 = vpack.c.b16 %v1514, %v1510
    %v1859 = vpack.c.b16 %v1515, %v1511
    %v1860 = vpack.c.b16 %v1520, %v1516
    %v1861 = vpack.c.b16 %v1521, %v1517
    %v1862 = vpack.c.b16 %v1522, %v1518
    %v1863 = vpack.c.b16 %v1523, %v1519
    %v1864 = vpack.c.b16 %v1528, %v1524
    %v1865 = vpack.c.b16 %v1529, %v1525
    %v1866 = vpack.c.b16 %v1530, %v1526
    %v1867 = vpack.c.b16 %v1531, %v1527
    %v1868 = vpack.c.b16 %v1536, %v1532
    %v1869 = vpack.c.b16 %v1537, %v1533
    %v1870 = vpack.c.b16 %v1538, %v1534
    %v1871 = vpack.c.b16 %v1539, %v1535
    %v1872 = vpack.c.b16 %v1544, %v1540
    %v1873 = vpack.c.b16 %v1545, %v1541
    %v1874 = vpack.c.b16 %v1546, %v1542
    %v1875 = vpack.c.b16 %v1547, %v1543
    %v1876 = vpack.c.b16 %v1552, %v1548
    %v1877 = vpack.c.b16 %v1553, %v1549
    %v1878 = vpack.c.b16 %v1554, %v1550
    %v1879 = vpack.c.b16 %v1555, %v1551
    %v1880 = vpack.c.b16 %v1560, %v1556
    %v1881 = vpack.c.b16 %v1561, %v1557
    %v1882 = vpack.c.b16 %v1562, %v1558
    %v1883 = vpack.c.b16 %v1563, %v1559
    %v1884 = vpack.c.b16 %v1568, %v1564
    %v1885 = vpack.c.b16 %v1569, %v1565
    %v1886 = vpack.c.b16 %v1570, %v1566
    %v1887 = vpack.c.b16 %v1571, %v1567
    %v1888 = vpack.c.b16 %v1576, %v1572
    %v1889 = vpack.c.b16 %v1577, %v1573
    %v1890 = vpack.c.b16 %v1578, %v1574
    %v1891 = vpack.c.b16 %v1579, %v1575
    %v1892 = vpack.c.b16 %v1584, %v1580
    %v1893 = vpack.c.b16 %v1585, %v1581
    %v1894 = vpack.c.b16 %v1586, %v1582
    %v1895 = vpack.c.b16 %v1587, %v1583
    %v1896 = vpack.c.b16 %v1592, %v1588
    %v1897 = vpack.c.b16 %v1593, %v1589
    %v1898 = vpack.c.b16 %v1594, %v1590
    %v1899 = vpack.c.b16 %v1595, %v1591
    %v1900 = vpack.c.b16 %v1600, %v1596
    %v1901 = vpack.c.b16 %v1601, %v1597
    %v1902 = vpack.c.b16 %v1602, %v1598
    %v1903 = vpack.c.b16 %v1603, %v1599
    %v1904 = vpack.c.b16 %v1608, %v1604
    %v1905 = vpack.c.b16 %v1609, %v1605
    %v1906 = vpack.c.b16 %v1610, %v1606
    %v1907 = vpack.c.b16 %v1611, %v1607
    %v1908 = vpack.c.b16 %v1616, %v1612
    %v1909 = vpack.c.b16 %v1617, %v1613
    %v1910 = vpack.c.b16 %v1618, %v1614
    %v1911 = vpack.c.b16 %v1619, %v1615
    %v1912 = vpack.c.b16 %v1624, %v1620
    %v1913 = vpack.c.b16 %v1625, %v1621
    %v1914 = vpack.c.b16 %v1626, %v1622
    %v1915 = vpack.c.b16 %v1627, %v1623
    %v1916 = vpack.c.b16 %v1632, %v1628
    %v1917 = vpack.c.b16 %v1633, %v1629
    %v1918 = vpack.c.b16 %v1634, %v1630
    %v1919 = vpack.c.b16 %v1635, %v1631
    %v1920 = vpack.c.b16 %v1640, %v1636
    %v1921 = vpack.c.b16 %v1641, %v1637
    %v1922 = vpack.c.b16 %v1642, %v1638
    %v1923 = vpack.c.b16 %v1643, %v1639
    %v1924 = vpack.c.b16 %v1648, %v1644
    %v1925 = vpack.c.b16 %v1649, %v1645
    %v1926 = vpack.c.b16 %v1650, %v1646
    %v1927 = vpack.c.b16 %v1651, %v1647
    %v1928 = vpack.c.b16 %v1656, %v1652
    %v1929 = vpack.c.b16 %v1657, %v1653
    %v1930 = vpack.c.b16 %v1658, %v1654
    %v1931 = vpack.c.b16 %v1659, %v1655
    %v1932 = vpack.c.b16 %v1664, %v1660
    %v1933 = vpack.c.b16 %v1665, %v1661
    %v1934 = vpack.c.b16 %v1666, %v1662
    %v1935 = vpack.c.b16 %v1667, %v1663
    %v1936 = vpack.c.b16 %v1672, %v1668
    %v1937 = vpack.c.b16 %v1673, %v1669
    %v1938 = vpack.c.b16 %v1674, %v1670
    %v1939 = vpack.c.b16 %v1675, %v1671
    %v1940 = vpack.c.b16 %v1680, %v1676
    %v1941 = vpack.c.b16 %v1681, %v1677
    %v1942 = vpack.c.b16 %v1682, %v1678
    %v1943 = vpack.c.b16 %v1683, %v1679
    %v1944 = vpack.c.b16 %v1688, %v1684
    %v1945 = vpack.c.b16 %v1689, %v1685
    %v1946 = vpack.c.b16 %v1690, %v1686
    %v1947 = vpack.c.b16 %v1691, %v1687
    %v1948 = vpack.c.b16 %v1696, %v1692
    %v1949 = vpack.c.b16 %v1697, %v1693
    %v1950 = vpack.c.b16 %v1698, %v1694
    %v1951 = vpack.c.b16 %v1699, %v1695
    %v1952 = vpack.c.b16 %v1704, %v1700
    %v1953 = vpack.c.b16 %v1705, %v1701
    %v1954 = vpack.c.b16 %v1706, %v1702
    %v1955 = vpack.c.b16 %v1707, %v1703
    %v1956 = vpack.c.b16 %v1712, %v1708
    %v1957 = vpack.c.b16 %v1713, %v1709
    %v1958 = vpack.c.b16 %v1714, %v1710
    %v1959 = vpack.c.b16 %v1715, %v1711
    %v1960 = vpack.c.b16 %v1720, %v1716
    %v1961 = vpack.c.b16 %v1721, %v1717
    %v1962 = vpack.c.b16 %v1722, %v1718
    %v1963 = vpack.c.b16 %v1723, %v1719
    %v1964 = vpack.c.b16 %v1728, %v1724
    %v1965 = vpack.c.b16 %v1729, %v1725
    %v1966 = vpack.c.b16 %v1730, %v1726
    %v1967 = vpack.c.b16 %v1731, %v1727
    %v1968 = vpack.c.b16 %v1736, %v1732
    %v1969 = vpack.c.b16 %v1737, %v1733
    %v1970 = vpack.c.b16 %v1738, %v1734
    %v1971 = vpack.c.b16 %v1739, %v1735
    %v1972 = vpack.c.b16 %v1744, %v1740
    %v1973 = vpack.c.b16 %v1745, %v1741
    %v1974 = vpack.c.b16 %v1746, %v1742
    %v1975 = vpack.c.b16 %v1747, %v1743
    %v1976 = vpack.c.b16 %v1752, %v1748
    %v1977 = vpack.c.b16 %v1753, %v1749
    %v1978 = vpack.c.b16 %v1754, %v1750
    %v1979 = vpack.c.b16 %v1755, %v1751
    %v1980 = vpack.c.b16 %v1760, %v1756
    %v1981 = vpack.c.b16 %v1761, %v1757
    %v1982 = vpack.c.b16 %v1762, %v1758
    %v1983 = vpack.c.b16 %v1763, %v1759
    %v1984 = vpack.c.b16 %v1768, %v1764
    %v1985 = vpack.c.b16 %v1769, %v1765
    %v1986 = vpack.c.b16 %v1770, %v1766
    %v1987 = vpack.c.b16 %v1771, %v1767
    %v1988 = vpack.c.b16 %v1776, %v1772
    %v1989 = vpack.c.b16 %v1777, %v1773
    %v1990 = vpack.c.b16 %v1778, %v1774
    %v1991 = vpack.c.b16 %v1779, %v1775
    %v1992 = vpack.c.b16 %v1784, %v1780
    %v1993 = vpack.c.b16 %v1785, %v1781
    %v1994 = vpack.c.b16 %v1786, %v1782
    %v1995 = vpack.c.b16 %v1787, %v1783
    %v1996 = vpack.c.b16 %v1792, %v1788
    %v1997 = vpack.c.b16 %v1793, %v1789
    %v1998 = vpack.c.b16 %v1794, %v1790
    %v1999 = vpack.c.b16 %v1795, %v1791
    %v2000 = vpack.c.b16 %v1800, %v1796
    %v2001 = vpack.c.b16 %v1801, %v1797
    %v2002 = vpack.c.b16 %v1802, %v1798
    %v2003 = vpack.c.b16 %v1803, %v1799
    %v2004 = vpack.c.b16 %v1808, %v1804
    %v2005 = vpack.c.b16 %v1809, %v1805
    %v2006 = vpack.c.b16 %v1810, %v1806
    %v2007 = vpack.c.b16 %v1811, %v1807
    %v2008 = vpack.c.b16 %v1816, %v1812
    %v2009 = vpack.c.b16 %v1817, %v1813
    %v2010 = vpack.c.b16 %v1818, %v1814
    %v2011 = vpack.c.b16 %v1819, %v1815
    %2204 = vmatpush.bf16.msra.mxu0 %v1848
    %2205 = vmatpush.bf16.msra.mxu0 %v1844
    %2206 = vmatpush.bf16.msra.mxu0 %v1840
    %2207 = vmatpush.bf16.msra.mxu0 %v1836
    %2208 = vmatpush.bf16.msra.mxu0 %v1832
    %2209 = vmatpush.bf16.msra.mxu0 %v1828
    %2210 = vmatpush.bf16.msra.mxu0 %v1824
    %2211 = vmatpush.bf16.msra.mxu0 %v1820
    %2212 = vmatmul.bf16.gmra.mxu0 %v1220
    %v2213 = vpop.f32.mrf.mxu0
    %v2214 = vadd.f32 %v1176, %v2213
    %v2215 = vpop.f32.mrf.mxu0
    %v2216 = vadd.f32 %v1176, %v2215
    %2217 = vmatmul.bf16.gmra.mxu0 %v1226
    %v2218 = vpop.f32.mrf.mxu0
    %v2219 = vadd.f32 %v1176, %v2218
    %v2220 = vpop.f32.mrf.mxu0
    %v2221 = vadd.f32 %v1176, %v2220
    %2222 = vdwg.mxu0
    %2223 = vmatpush.bf16.msra.mxu0 %v1880
    %2224 = vmatpush.bf16.msra.mxu0 %v1876
    %2225 = vmatpush.bf16.msra.mxu0 %v1872
    %2226 = vmatpush.bf16.msra.mxu0 %v1868
    %2227 = vmatpush.bf16.msra.mxu0 %v1864
    %2228 = vmatpush.bf16.msra.mxu0 %v1860
    %2229 = vmatpush.bf16.msra.mxu0 %v1856
    %2230 = vmatpush.bf16.msra.mxu0 %v1852
    %2231 = vmatmul.bf16.gmra.mxu0 %v1221
    %v2232 = vpop.f32.mrf.mxu0
    %v2233 = vadd.f32 %v2214, %v2232
    %v2234 = vpop.f32.mrf.mxu0
    %v2235 = vadd.f32 %v2216, %v2234
    %2236 = vmatmul.bf16.gmra.mxu0 %v1227
    %v2237 = vpop.f32.mrf.mxu0
    %v2238 = vadd.f32 %v2219, %v2237
    %v2239 = vpop.f32.mrf.mxu0
    %v2240 = vadd.f32 %v2221, %v2239
    %2241 = vdwg.mxu0
    %2242 = vmatpush.bf16.msra.mxu0 %v1912
    %2243 = vmatpush.bf16.msra.mxu0 %v1908
    %2244 = vmatpush.bf16.msra.mxu0 %v1904
    %2245 = vmatpush.bf16.msra.mxu0 %v1900
    %2246 = vmatpush.bf16.msra.mxu0 %v1896
    %2247 = vmatpush.bf16.msra.mxu0 %v1892
    %2248 = vmatpush.bf16.msra.mxu0 %v1888
    %2249 = vmatpush.bf16.msra.mxu0 %v1884
    %2250 = vmatmul.bf16.gmra.mxu0 %v1222
    %v2251 = vpop.f32.mrf.mxu0
    %v2252 = vadd.f32 %v2233, %v2251
    %v2253 = vpop.f32.mrf.mxu0
    %v2254 = vadd.f32 %v2235, %v2253
    %2255 = vmatmul.bf16.gmra.mxu0 %v1228
    %v2256 = vpop.f32.mrf.mxu0
    %v2257 = vadd.f32 %v2238, %v2256
    %v2258 = vpop.f32.mrf.mxu0
    %v2259 = vadd.f32 %v2240, %v2258
    %2260 = vdwg.mxu0
    %2261 = vmatpush.bf16.msra.mxu0 %v1944
    %2262 = vmatpush.bf16.msra.mxu0 %v1940
    %2263 = vmatpush.bf16.msra.mxu0 %v1936
    %2264 = vmatpush.bf16.msra.mxu0 %v1932
    %2265 = vmatpush.bf16.msra.mxu0 %v1928
    %2266 = vmatpush.bf16.msra.mxu0 %v1924
    %2267 = vmatpush.bf16.msra.mxu0 %v1920
    %2268 = vmatpush.bf16.msra.mxu0 %v1916
    %2269 = vmatmul.bf16.gmra.mxu0 %v1223
    %v2270 = vpop.f32.mrf.mxu0
    %v2271 = vadd.f32 %v2252, %v2270
    %v2272 = vpop.f32.mrf.mxu0
    %v2273 = vadd.f32 %v2254, %v2272
    %2274 = vmatmul.bf16.gmra.mxu0 %v1229
    %v2275 = vpop.f32.mrf.mxu0
    %v2276 = vadd.f32 %v2257, %v2275
    %v2277 = vpop.f32.mrf.mxu0
    %v2278 = vadd.f32 %v2259, %v2277
    %2279 = vdwg.mxu0
    %2280 = vmatpush.bf16.msra.mxu0 %v1976
    %2281 = vmatpush.bf16.msra.mxu0 %v1972
    %2282 = vmatpush.bf16.msra.mxu0 %v1968
    %2283 = vmatpush.bf16.msra.mxu0 %v1964
    %2284 = vmatpush.bf16.msra.mxu0 %v1960
    %2285 = vmatpush.bf16.msra.mxu0 %v1956
    %2286 = vmatpush.bf16.msra.mxu0 %v1952
    %2287 = vmatpush.bf16.msra.mxu0 %v1948
    %2288 = vmatmul.bf16.gmra.mxu0 %v1224
    %v2289 = vpop.f32.mrf.mxu0
    %v2290 = vadd.f32 %v2271, %v2289
    %v2291 = vpop.f32.mrf.mxu0
    %v2292 = vadd.f32 %v2273, %v2291
    %2293 = vmatmul.bf16.gmra.mxu0 %v1230
    %v2294 = vpop.f32.mrf.mxu0
    %v2295 = vadd.f32 %v2276, %v2294
    %v2296 = vpop.f32.mrf.mxu0
    %v2297 = vadd.f32 %v2278, %v2296
    %2298 = vdwg.mxu0
    %2299 = vmatpush.bf16.msra.mxu0 %v2008
    %2300 = vmatpush.bf16.msra.mxu0 %v2004
    %2301 = vmatpush.bf16.msra.mxu0 %v2000
    %2302 = vmatpush.bf16.msra.mxu0 %v1996
    %2303 = vmatpush.bf16.msra.mxu0 %v1992
    %2304 = vmatpush.bf16.msra.mxu0 %v1988
    %2305 = vmatpush.bf16.msra.mxu0 %v1984
    %2306 = vmatpush.bf16.msra.mxu0 %v1980
    %2307 = vmatmul.bf16.gmra.mxu0 %v1225
    %v2308 = vpop.f32.mrf.mxu0
    %v2309 = vadd.f32 %v2290, %v2308
    %v2310 = vpop.f32.mrf.mxu0
    %v2311 = vadd.f32 %v2292, %v2310
    %2312 = vmatmul.bf16.gmra.mxu0 %v1231
    %v2313 = vpop.f32.mrf.mxu0
    %v2314 = vadd.f32 %v2295, %v2313
    %v2315 = vpop.f32.mrf.mxu0
    %v2316 = vadd.f32 %v2297, %v2315
    %2317 = vdwg.mxu0
    %2318 = vmatpush.bf16.msra.mxu0 %v1849
    %2319 = vmatpush.bf16.msra.mxu0 %v1845
    %2320 = vmatpush.bf16.msra.mxu0 %v1841
    %2321 = vmatpush.bf16.msra.mxu0 %v1837
    %2322 = vmatpush.bf16.msra.mxu0 %v1833
    %2323 = vmatpush.bf16.msra.mxu0 %v1829
    %2324 = vmatpush.bf16.msra.mxu0 %v1825
    %2325 = vmatpush.bf16.msra.mxu0 %v1821
    %2326 = vmatmul.bf16.gmra.mxu0 %v1220
    %v2327 = vpop.f32.mrf.mxu0
    %v2328 = vadd.f32 %v1177, %v2327
    %v2329 = vpop.f32.mrf.mxu0
    %v2330 = vadd.f32 %v1177, %v2329
    %2331 = vmatmul.bf16.gmra.mxu0 %v1226
    %v2332 = vpop.f32.mrf.mxu0
    %v2333 = vadd.f32 %v1177, %v2332
    %v2334 = vpop.f32.mrf.mxu0
    %v2335 = vadd.f32 %v1177, %v2334
    %2336 = vdwg.mxu0
    %2337 = vmatpush.bf16.msra.mxu0 %v1881
    %2338 = vmatpush.bf16.msra.mxu0 %v1877
    %2339 = vmatpush.bf16.msra.mxu0 %v1873
    %2340 = vmatpush.bf16.msra.mxu0 %v1869
    %2341 = vmatpush.bf16.msra.mxu0 %v1865
    %2342 = vmatpush.bf16.msra.mxu0 %v1861
    %2343 = vmatpush.bf16.msra.mxu0 %v1857
    %2344 = vmatpush.bf16.msra.mxu0 %v1853
    %2345 = vmatmul.bf16.gmra.mxu0 %v1221
    %v2346 = vpop.f32.mrf.mxu0
    %v2347 = vadd.f32 %v2328, %v2346
    %v2348 = vpop.f32.mrf.mxu0
    %v2349 = vadd.f32 %v2330, %v2348
    %2350 = vmatmul.bf16.gmra.mxu0 %v1227
    %v2351 = vpop.f32.mrf.mxu0
    %v2352 = vadd.f32 %v2333, %v2351
    %v2353 = vpop.f32.mrf.mxu0
    %v2354 = vadd.f32 %v2335, %v2353
    %2355 = vdwg.mxu0
    %2356 = vmatpush.bf16.msra.mxu0 %v1913
    %2357 = vmatpush.bf16.msra.mxu0 %v1909
    %2358 = vmatpush.bf16.msra.mxu0 %v1905
    %2359 = vmatpush.bf16.msra.mxu0 %v1901
    %2360 = vmatpush.bf16.msra.mxu0 %v1897
    %2361 = vmatpush.bf16.msra.mxu0 %v1893
    %2362 = vmatpush.bf16.msra.mxu0 %v1889
    %2363 = vmatpush.bf16.msra.mxu0 %v1885
    %2364 = vmatmul.bf16.gmra.mxu0 %v1222
    %v2365 = vpop.f32.mrf.mxu0
    %v2366 = vadd.f32 %v2347, %v2365
    %v2367 = vpop.f32.mrf.mxu0
    %v2368 = vadd.f32 %v2349, %v2367
    %2369 = vmatmul.bf16.gmra.mxu0 %v1228
    %v2370 = vpop.f32.mrf.mxu0
    %v2371 = vadd.f32 %v2352, %v2370
    %v2372 = vpop.f32.mrf.mxu0
    %v2373 = vadd.f32 %v2354, %v2372
    %2374 = vdwg.mxu0
    %2375 = vmatpush.bf16.msra.mxu0 %v1945
    %2376 = vmatpush.bf16.msra.mxu0 %v1941
    %2377 = vmatpush.bf16.msra.mxu0 %v1937
    %2378 = vmatpush.bf16.msra.mxu0 %v1933
    %2379 = vmatpush.bf16.msra.mxu0 %v1929
    %2380 = vmatpush.bf16.msra.mxu0 %v1925
    %2381 = vmatpush.bf16.msra.mxu0 %v1921
    %2382 = vmatpush.bf16.msra.mxu0 %v1917
    %2383 = vmatmul.bf16.gmra.mxu0 %v1223
    %v2384 = vpop.f32.mrf.mxu0
    %v2385 = vadd.f32 %v2366, %v2384
    %v2386 = vpop.f32.mrf.mxu0
    %v2387 = vadd.f32 %v2368, %v2386
    %2388 = vmatmul.bf16.gmra.mxu0 %v1229
    %v2389 = vpop.f32.mrf.mxu0
    %v2390 = vadd.f32 %v2371, %v2389
    %v2391 = vpop.f32.mrf.mxu0
    %v2392 = vadd.f32 %v2373, %v2391
    %2393 = vdwg.mxu0
    %2394 = vmatpush.bf16.msra.mxu0 %v1977
    %2395 = vmatpush.bf16.msra.mxu0 %v1973
    %2396 = vmatpush.bf16.msra.mxu0 %v1969
    %2397 = vmatpush.bf16.msra.mxu0 %v1965
    %2398 = vmatpush.bf16.msra.mxu0 %v1961
    %2399 = vmatpush.bf16.msra.mxu0 %v1957
    %2400 = vmatpush.bf16.msra.mxu0 %v1953
    %2401 = vmatpush.bf16.msra.mxu0 %v1949
    %2402 = vmatmul.bf16.gmra.mxu0 %v1224
    %v2403 = vpop.f32.mrf.mxu0
    %v2404 = vadd.f32 %v2385, %v2403
    %v2405 = vpop.f32.mrf.mxu0
    %v2406 = vadd.f32 %v2387, %v2405
    %2407 = vmatmul.bf16.gmra.mxu0 %v1230
    %v2408 = vpop.f32.mrf.mxu0
    %v2409 = vadd.f32 %v2390, %v2408
    %v2410 = vpop.f32.mrf.mxu0
    %v2411 = vadd.f32 %v2392, %v2410
    %2412 = vdwg.mxu0
    %2413 = vmatpush.bf16.msra.mxu0 %v2009
    %2414 = vmatpush.bf16.msra.mxu0 %v2005
    %2415 = vmatpush.bf16.msra.mxu0 %v2001
    %2416 = vmatpush.bf16.msra.mxu0 %v1997
    %2417 = vmatpush.bf16.msra.mxu0 %v1993
    %2418 = vmatpush.bf16.msra.mxu0 %v1989
    %2419 = vmatpush.bf16.msra.mxu0 %v1985
    %2420 = vmatpush.bf16.msra.mxu0 %v1981
    %2421 = vmatmul.bf16.gmra.mxu0 %v1225
    %v2422 = vpop.f32.mrf.mxu0
    %v2423 = vadd.f32 %v2404, %v2422
    %v2424 = vpop.f32.mrf.mxu0
    %v2425 = vadd.f32 %v2406, %v2424
    %2426 = vmatmul.bf16.gmra.mxu0 %v1231
    %v2427 = vpop.f32.mrf.mxu0
    %v2428 = vadd.f32 %v2409, %v2427
    %v2429 = vpop.f32.mrf.mxu0
    %v2430 = vadd.f32 %v2411, %v2429
    %2431 = vdwg.mxu0
    %2432 = vmatpush.bf16.msra.mxu0 %v1850
    %2433 = vmatpush.bf16.msra.mxu0 %v1846
    %2434 = vmatpush.bf16.msra.mxu0 %v1842
    %2435 = vmatpush.bf16.msra.mxu0 %v1838
    %2436 = vmatpush.bf16.msra.mxu0 %v1834
    %2437 = vmatpush.bf16.msra.mxu0 %v1830
    %2438 = vmatpush.bf16.msra.mxu0 %v1826
    %2439 = vmatpush.bf16.msra.mxu0 %v1822
    %2440 = vmatmul.bf16.gmra.mxu0 %v1220
    %v2441 = vpop.f32.mrf.mxu0
    %v2442 = vadd.f32 %v1178, %v2441
    %v2443 = vpop.f32.mrf.mxu0
    %v2444 = vadd.f32 %v1178, %v2443
    %2445 = vmatmul.bf16.gmra.mxu0 %v1226
    %v2446 = vpop.f32.mrf.mxu0
    %v2447 = vadd.f32 %v1178, %v2446
    %v2448 = vpop.f32.mrf.mxu0
    %v2449 = vadd.f32 %v1178, %v2448
    %2450 = vdwg.mxu0
    %2451 = vmatpush.bf16.msra.mxu0 %v1882
    %2452 = vmatpush.bf16.msra.mxu0 %v1878
    %2453 = vmatpush.bf16.msra.mxu0 %v1874
    %2454 = vmatpush.bf16.msra.mxu0 %v1870
    %2455 = vmatpush.bf16.msra.mxu0 %v1866
    %2456 = vmatpush.bf16.msra.mxu0 %v1862
    %2457 = vmatpush.bf16.msra.mxu0 %v1858
    %2458 = vmatpush.bf16.msra.mxu0 %v1854
    %2459 = vmatmul.bf16.gmra.mxu0 %v1221
    %v2460 = vpop.f32.mrf.mxu0
    %v2461 = vadd.f32 %v2442, %v2460
    %v2462 = vpop.f32.mrf.mxu0
    %v2463 = vadd.f32 %v2444, %v2462
    %2464 = vmatmul.bf16.gmra.mxu0 %v1227
    %v2465 = vpop.f32.mrf.mxu0
    %v2466 = vadd.f32 %v2447, %v2465
    %v2467 = vpop.f32.mrf.mxu0
    %v2468 = vadd.f32 %v2449, %v2467
    %2469 = vdwg.mxu0
    %2470 = vmatpush.bf16.msra.mxu0 %v1914
    %2471 = vmatpush.bf16.msra.mxu0 %v1910
    %2472 = vmatpush.bf16.msra.mxu0 %v1906
    %2473 = vmatpush.bf16.msra.mxu0 %v1902
    %2474 = vmatpush.bf16.msra.mxu0 %v1898
    %2475 = vmatpush.bf16.msra.mxu0 %v1894
    %2476 = vmatpush.bf16.msra.mxu0 %v1890
    %2477 = vmatpush.bf16.msra.mxu0 %v1886
    %2478 = vmatmul.bf16.gmra.mxu0 %v1222
    %v2479 = vpop.f32.mrf.mxu0
    %v2480 = vadd.f32 %v2461, %v2479
    %v2481 = vpop.f32.mrf.mxu0
    %v2482 = vadd.f32 %v2463, %v2481
    %2483 = vmatmul.bf16.gmra.mxu0 %v1228
    %v2484 = vpop.f32.mrf.mxu0
    %v2485 = vadd.f32 %v2466, %v2484
    %v2486 = vpop.f32.mrf.mxu0
    %v2487 = vadd.f32 %v2468, %v2486
    %2488 = vdwg.mxu0
    %2489 = vmatpush.bf16.msra.mxu0 %v1946
    %2490 = vmatpush.bf16.msra.mxu0 %v1942
    %2491 = vmatpush.bf16.msra.mxu0 %v1938
    %2492 = vmatpush.bf16.msra.mxu0 %v1934
    %2493 = vmatpush.bf16.msra.mxu0 %v1930
    %2494 = vmatpush.bf16.msra.mxu0 %v1926
    %2495 = vmatpush.bf16.msra.mxu0 %v1922
    %2496 = vmatpush.bf16.msra.mxu0 %v1918
    %2497 = vmatmul.bf16.gmra.mxu0 %v1223
    %v2498 = vpop.f32.mrf.mxu0
    %v2499 = vadd.f32 %v2480, %v2498
    %v2500 = vpop.f32.mrf.mxu0
    %v2501 = vadd.f32 %v2482, %v2500
    %2502 = vmatmul.bf16.gmra.mxu0 %v1229
    %v2503 = vpop.f32.mrf.mxu0
    %v2504 = vadd.f32 %v2485, %v2503
    %v2505 = vpop.f32.mrf.mxu0
    %v2506 = vadd.f32 %v2487, %v2505
    %2507 = vdwg.mxu0
    %2508 = vmatpush.bf16.msra.mxu0 %v1978
    %2509 = vmatpush.bf16.msra.mxu0 %v1974
    %2510 = vmatpush.bf16.msra.mxu0 %v1970
    %2511 = vmatpush.bf16.msra.mxu0 %v1966
    %2512 = vmatpush.bf16.msra.mxu0 %v1962
    %2513 = vmatpush.bf16.msra.mxu0 %v1958
    %2514 = vmatpush.bf16.msra.mxu0 %v1954
    %2515 = vmatpush.bf16.msra.mxu0 %v1950
    %2516 = vmatmul.bf16.gmra.mxu0 %v1224
    %v2517 = vpop.f32.mrf.mxu0
    %v2518 = vadd.f32 %v2499, %v2517
    %v2519 = vpop.f32.mrf.mxu0
    %v2520 = vadd.f32 %v2501, %v2519
    %2521 = vmatmul.bf16.gmra.mxu0 %v1230
    %v2522 = vpop.f32.mrf.mxu0
    %v2523 = vadd.f32 %v2504, %v2522
    %v2524 = vpop.f32.mrf.mxu0
    %v2525 = vadd.f32 %v2506, %v2524
    %2526 = vdwg.mxu0
    %2527 = vmatpush.bf16.msra.mxu0 %v2010
    %2528 = vmatpush.bf16.msra.mxu0 %v2006
    %2529 = vmatpush.bf16.msra.mxu0 %v2002
    %2530 = vmatpush.bf16.msra.mxu0 %v1998
    %2531 = vmatpush.bf16.msra.mxu0 %v1994
    %2532 = vmatpush.bf16.msra.mxu0 %v1990
    %2533 = vmatpush.bf16.msra.mxu0 %v1986
    %2534 = vmatpush.bf16.msra.mxu0 %v1982
    %2535 = vmatmul.bf16.gmra.mxu0 %v1225
    %v2536 = vpop.f32.mrf.mxu0
    %v2537 = vadd.f32 %v2518, %v2536
    %v2538 = vpop.f32.mrf.mxu0
    %v2539 = vadd.f32 %v2520, %v2538
    %2540 = vmatmul.bf16.gmra.mxu0 %v1231
    %v2541 = vpop.f32.mrf.mxu0
    %v2542 = vadd.f32 %v2523, %v2541
    %v2543 = vpop.f32.mrf.mxu0
    %v2544 = vadd.f32 %v2525, %v2543
    %2545 = vdwg.mxu0
    %2546 = vmatpush.bf16.msra.mxu0 %v1851
    %2547 = vmatpush.bf16.msra.mxu0 %v1847
    %2548 = vmatpush.bf16.msra.mxu0 %v1843
    %2549 = vmatpush.bf16.msra.mxu0 %v1839
    %2550 = vmatpush.bf16.msra.mxu0 %v1835
    %2551 = vmatpush.bf16.msra.mxu0 %v1831
    %2552 = vmatpush.bf16.msra.mxu0 %v1827
    %2553 = vmatpush.bf16.msra.mxu0 %v1823
    %2554 = vmatmul.bf16.gmra.mxu0 %v1220
    %v2555 = vpop.f32.mrf.mxu0
    %v2556 = vadd.f32 %v1179, %v2555
    %v2557 = vpop.f32.mrf.mxu0
    %v2558 = vadd.f32 %v1179, %v2557
    %2559 = vmatmul.bf16.gmra.mxu0 %v1226
    %v2560 = vpop.f32.mrf.mxu0
    %v2561 = vadd.f32 %v1179, %v2560
    %v2562 = vpop.f32.mrf.mxu0
    %v2563 = vadd.f32 %v1179, %v2562
    %2564 = vdwg.mxu0
    %2565 = vmatpush.bf16.msra.mxu0 %v1883
    %2566 = vmatpush.bf16.msra.mxu0 %v1879
    %2567 = vmatpush.bf16.msra.mxu0 %v1875
    %2568 = vmatpush.bf16.msra.mxu0 %v1871
    %2569 = vmatpush.bf16.msra.mxu0 %v1867
    %2570 = vmatpush.bf16.msra.mxu0 %v1863
    %2571 = vmatpush.bf16.msra.mxu0 %v1859
    %2572 = vmatpush.bf16.msra.mxu0 %v1855
    %2573 = vmatmul.bf16.gmra.mxu0 %v1221
    %v2574 = vpop.f32.mrf.mxu0
    %v2575 = vadd.f32 %v2556, %v2574
    %v2576 = vpop.f32.mrf.mxu0
    %v2577 = vadd.f32 %v2558, %v2576
    %2578 = vmatmul.bf16.gmra.mxu0 %v1227
    %v2579 = vpop.f32.mrf.mxu0
    %v2580 = vadd.f32 %v2561, %v2579
    %v2581 = vpop.f32.mrf.mxu0
    %v2582 = vadd.f32 %v2563, %v2581
    %2583 = vdwg.mxu0
    %2584 = vmatpush.bf16.msra.mxu0 %v1915
    %2585 = vmatpush.bf16.msra.mxu0 %v1911
    %2586 = vmatpush.bf16.msra.mxu0 %v1907
    %2587 = vmatpush.bf16.msra.mxu0 %v1903
    %2588 = vmatpush.bf16.msra.mxu0 %v1899
    %2589 = vmatpush.bf16.msra.mxu0 %v1895
    %2590 = vmatpush.bf16.msra.mxu0 %v1891
    %2591 = vmatpush.bf16.msra.mxu0 %v1887
    %2592 = vmatmul.bf16.gmra.mxu0 %v1222
    %v2593 = vpop.f32.mrf.mxu0
    %v2594 = vadd.f32 %v2575, %v2593
    %v2595 = vpop.f32.mrf.mxu0
    %v2596 = vadd.f32 %v2577, %v2595
    %2597 = vmatmul.bf16.gmra.mxu0 %v1228
    %v2598 = vpop.f32.mrf.mxu0
    %v2599 = vadd.f32 %v2580, %v2598
    %v2600 = vpop.f32.mrf.mxu0
    %v2601 = vadd.f32 %v2582, %v2600
    %2602 = vdwg.mxu0
    %2603 = vmatpush.bf16.msra.mxu0 %v1947
    %2604 = vmatpush.bf16.msra.mxu0 %v1943
    %2605 = vmatpush.bf16.msra.mxu0 %v1939
    %2606 = vmatpush.bf16.msra.mxu0 %v1935
    %2607 = vmatpush.bf16.msra.mxu0 %v1931
    %2608 = vmatpush.bf16.msra.mxu0 %v1927
    %2609 = vmatpush.bf16.msra.mxu0 %v1923
    %2610 = vmatpush.bf16.msra.mxu0 %v1919
    %2611 = vmatmul.bf16.gmra.mxu0 %v1223
    %v2612 = vpop.f32.mrf.mxu0
    %v2613 = vadd.f32 %v2594, %v2612
    %v2614 = vpop.f32.mrf.mxu0
    %v2615 = vadd.f32 %v2596, %v2614
    %2616 = vmatmul.bf16.gmra.mxu0 %v1229
    %v2617 = vpop.f32.mrf.mxu0
    %v2618 = vadd.f32 %v2599, %v2617
    %v2619 = vpop.f32.mrf.mxu0
    %v2620 = vadd.f32 %v2601, %v2619
    %2621 = vdwg.mxu0
    %2622 = vmatpush.bf16.msra.mxu0 %v1979
    %2623 = vmatpush.bf16.msra.mxu0 %v1975
    %2624 = vmatpush.bf16.msra.mxu0 %v1971
    %2625 = vmatpush.bf16.msra.mxu0 %v1967
    %2626 = vmatpush.bf16.msra.mxu0 %v1963
    %2627 = vmatpush.bf16.msra.mxu0 %v1959
    %2628 = vmatpush.bf16.msra.mxu0 %v1955
    %2629 = vmatpush.bf16.msra.mxu0 %v1951
    %2630 = vmatmul.bf16.gmra.mxu0 %v1224
    %v2631 = vpop.f32.mrf.mxu0
    %v2632 = vadd.f32 %v2613, %v2631
    %v2633 = vpop.f32.mrf.mxu0
    %v2634 = vadd.f32 %v2615, %v2633
    %2635 = vmatmul.bf16.gmra.mxu0 %v1230
    %v2636 = vpop.f32.mrf.mxu0
    %v2637 = vadd.f32 %v2618, %v2636
    %v2638 = vpop.f32.mrf.mxu0
    %v2639 = vadd.f32 %v2620, %v2638
    %2640 = vdwg.mxu0
    %2641 = vmatpush.bf16.msra.mxu0 %v2011
    %2642 = vmatpush.bf16.msra.mxu0 %v2007
    %2643 = vmatpush.bf16.msra.mxu0 %v2003
    %2644 = vmatpush.bf16.msra.mxu0 %v1999
    %2645 = vmatpush.bf16.msra.mxu0 %v1995
    %2646 = vmatpush.bf16.msra.mxu0 %v1991
    %2647 = vmatpush.bf16.msra.mxu0 %v1987
    %2648 = vmatpush.bf16.msra.mxu0 %v1983
    %2649 = vmatmul.bf16.gmra.mxu0 %v1225
    %v2650 = vpop.f32.mrf.mxu0
    %v2651 = vadd.f32 %v2632, %v2650
    %v2652 = vpop.f32.mrf.mxu0
    %v2653 = vadd.f32 %v2634, %v2652
    %2654 = vmatmul.bf16.gmra.mxu0 %v1231
    %v2655 = vpop.f32.mrf.mxu0
    %v2656 = vadd.f32 %v2637, %v2655
    %v2657 = vpop.f32.mrf.mxu0
    %v2658 = vadd.f32 %v2639, %v2657
    %2659 = vdwg.mxu0
    %v2660 = vmax.f32 %v2309, 0.0
    %v2661 = vmax.f32 %v2423, 0.0
    %v2662 = vmax.f32 %v2537, 0.0
    %v2663 = vmax.f32 %v2651, 0.0
    %v2664 = vmax.f32 %v2311, 0.0
    %v2665 = vmax.f32 %v2425, 0.0
    %v2666 = vmax.f32 %v2539, 0.0
    %v2667 = vmax.f32 %v2653, 0.0
    %v2668 = vmax.f32 %v2314, 0.0
    %v2669 = vmax.f32 %v2428, 0.0
    %v2670 = vmax.f32 %v2542, 0.0
    %v2671 = vmax.f32 %v2656, 0.0
    %v2672 = vmax.f32 %v2316, 0.0
    %v2673 = vmax.f32 %v2430, 0.0
    %v2674 = vmax.f32 %v2544, 0.0
    %v2675 = vmax.f32 %v2658, 0.0
    %vm2676 = vcmask 1045504
    %v2677 = vsel %vm2676, %v2664, -inf
    %v2678 = vmax.f32 %v2660, %v2677
    %v2679 = vrot.slane %v2678, 4
    %v2680 = vmax.f32 %v2678, %v2679
    %v2681 = vrot.slane %v2680, 2
    %v2682 = vmax.f32 %v2680, %v2681
    %v2683 = vrot.slane %v2682, 1
    %v2684 = vmax.f32 %v2682, %v2683
    %v2685 = vsel %vm2676, %v2665, -inf
    %v2686 = vmax.f32 %v2661, %v2685
    %v2687 = vrot.slane %v2686, 4
    %v2688 = vmax.f32 %v2686, %v2687
    %v2689 = vrot.slane %v2688, 2
    %v2690 = vmax.f32 %v2688, %v2689
    %v2691 = vrot.slane %v2690, 1
    %v2692 = vmax.f32 %v2690, %v2691
    %v2693 = vsel %vm2676, %v2666, -inf
    %v2694 = vmax.f32 %v2662, %v2693
    %v2695 = vrot.slane %v2694, 4
    %v2696 = vmax.f32 %v2694, %v2695
    %v2697 = vrot.slane %v2696, 2
    %v2698 = vmax.f32 %v2696, %v2697
    %v2699 = vrot.slane %v2698, 1
    %v2700 = vmax.f32 %v2698, %v2699
    %v2701 = vsel %vm2676, %v2667, -inf
    %v2702 = vmax.f32 %v2663, %v2701
    %v2703 = vrot.slane %v2702, 4
    %v2704 = vmax.f32 %v2702, %v2703
    %v2705 = vrot.slane %v2704, 2
    %v2706 = vmax.f32 %v2704, %v2705
    %v2707 = vrot.slane %v2706, 1
    %v2708 = vmax.f32 %v2706, %v2707
    %v2713 = vrot.slane %v2692, 7
    %v2714 = vrot.slane %v2700, 6
    %v2715 = vrot.slane %v2708, 5
    %v2716 = vsel %vm110, %v2684, %v2713
    %vm2717 = vcmask 1042434
    %v2718 = vsel %vm2717, %v2714, %v2715
    %vm2719 = vcmask 1041408
    %v2720 = vsel %vm2719, %v2716, %v2718
    %v2722 = vlaneseq
    %vm2723 = vcmp.ge.s32.totalorder %v2722, 0
    %vm2724 = vcmp.lt.s32.totalorder %v2722, 512
    %vm2725 = vmand %vm2723, %vm2724
    %2726 = vst.msk [vmem:[#allocation9] ss:$2 sm:$0xf] %vm2725, %v2720
    %v2727 = vsel %vm2676, %v2672, -inf
    %v2728 = vmax.f32 %v2668, %v2727
    %v2729 = vrot.slane %v2728, 4
    %v2730 = vmax.f32 %v2728, %v2729
    %v2731 = vrot.slane %v2730, 2
    %v2732 = vmax.f32 %v2730, %v2731
    %v2733 = vrot.slane %v2732, 1
    %v2734 = vmax.f32 %v2732, %v2733
    %v2735 = vsel %vm2676, %v2673, -inf
    %v2736 = vmax.f32 %v2669, %v2735
    %v2737 = vrot.slane %v2736, 4
    %v2738 = vmax.f32 %v2736, %v2737
    %v2739 = vrot.slane %v2738, 2
    %v2740 = vmax.f32 %v2738, %v2739
    %v2741 = vrot.slane %v2740, 1
    %v2742 = vmax.f32 %v2740, %v2741
    %v2743 = vsel %vm2676, %v2674, -inf
    %v2744 = vmax.f32 %v2670, %v2743
    %v2745 = vrot.slane %v2744, 4
    %v2746 = vmax.f32 %v2744, %v2745
    %v2747 = vrot.slane %v2746, 2
    %v2748 = vmax.f32 %v2746, %v2747
    %v2749 = vrot.slane %v2748, 1
    %v2750 = vmax.f32 %v2748, %v2749
    %v2751 = vsel %vm2676, %v2675, -inf
    %v2752 = vmax.f32 %v2671, %v2751
    %v2753 = vrot.slane %v2752, 4
    %v2754 = vmax.f32 %v2752, %v2753
    %v2755 = vrot.slane %v2754, 2
    %v2756 = vmax.f32 %v2754, %v2755
    %v2757 = vrot.slane %v2756, 1
    %v2758 = vmax.f32 %v2756, %v2757
    %v2763 = vrot.slane %v2742, 7
    %v2764 = vrot.slane %v2750, 6
    %v2765 = vrot.slane %v2758, 5
    %v2766 = vsel %vm110, %v2734, %v2763
    %v2767 = vsel %vm2717, %v2764, %v2765
    %v2768 = vsel %vm2719, %v2766, %v2767
    %s2770 = scalar_lea.vmem [#allocation9], 1
    %2771 = vst.msk [vmem:[%s2770] ss:$2 sm:$0xf] %vm2725, %v2768
    %s2772 = smul.u32 4, 64
    %s2773 = smul.u32 %s2772, 2
    %s2774 = sshll.u32 %s2773, 4
    %2775 = dma.done %s46, %s2774
    %v2776 = vld [vmem:[#allocation9] sm:$0xff]
    %2778 = vst [vmem:[#allocation1] ss:$4 sm:$0xff] %v2776
    %v2779 = vld.sshfl [vmem:[#allocation1] sm:$0xff pattern:$0x73625140]
    %v2780 = vld.sshfl [vmem:[#allocation1 + $0x8] sm:$0xff pattern:$0x73625140]
    %v2781 = vld.sshfl [vmem:[#allocation1 + $0x10] sm:$0xff pattern:$0x73625140]
    %v2782 = vld.sshfl [vmem:[#allocation1 + $0x18] sm:$0xff pattern:$0x73625140]
    %v2787 = vpack.c.bf16 %v2779, %v2779
    %v2788 = vpack.c.bf16 %v2780, %v2780
    %v2789 = vpack.c.bf16 %v2781, %v2781
    %v2790 = vpack.c.bf16 %v2782, %v2782
    %v2791 = vld [vmem:[#allocation3] sm:$0xff]
    %v2792 = vld [vmem:[#allocation3 + $0x8] sm:$0xff]
    %v2793 = vld [vmem:[#allocation3 + $0x10] sm:$0xff]
    %v2794 = vld [vmem:[#allocation3 + $0x18] sm:$0xff]
    %v2795 = vld [vmem:[#allocation3 + $0x20] sm:$0xff]
    %v2796 = vld [vmem:[#allocation3 + $0x28] sm:$0xff]
    %v2797 = vld [vmem:[#allocation3 + $0x30] sm:$0xff]
    %v2798 = vld [vmem:[#allocation3 + $0x38] sm:$0xff]
    %v2799 = vld [vmem:[#allocation3 + $0x40] sm:$0xff]
    %v2800 = vld [vmem:[#allocation3 + $0x48] sm:$0xff]
    %v2801 = vld [vmem:[#allocation3 + $0x50] sm:$0xff]
    %v2802 = vld [vmem:[#allocation3 + $0x58] sm:$0xff]
    %v2803 = vld [vmem:[#allocation3 + $0x60] sm:$0xff]
    %v2804 = vld [vmem:[#allocation3 + $0x68] sm:$0xff]
    %v2805 = vld [vmem:[#allocation3 + $0x70] sm:$0xff]
    %v2806 = vld [vmem:[#allocation3 + $0x78] sm:$0xff]
    %v2807 = vld [vmem:[#allocation3 + $0x80] sm:$0xff]
    %v2808 = vld [vmem:[#allocation3 + $0x88] sm:$0xff]
    %v2809 = vld [vmem:[#allocation3 + $0x90] sm:$0xff]
    %v2810 = vld [vmem:[#allocation3 + $0x98] sm:$0xff]
    %v2811 = vld [vmem:[#allocation3 + $0xa0] sm:$0xff]
    %v2812 = vld [vmem:[#allocation3 + $0xa8] sm:$0xff]
    %v2813 = vld [vmem:[#allocation3 + $0xb0] sm:$0xff]
    %v2814 = vld [vmem:[#allocation3 + $0xb8] sm:$0xff]
    %v2815 = vld [vmem:[#allocation3 + $0xc0] sm:$0xff]
    %v2816 = vld [vmem:[#allocation3 + $0xc8] sm:$0xff]
    %v2817 = vld [vmem:[#allocation3 + $0xd0] sm:$0xff]
    %v2818 = vld [vmem:[#allocation3 + $0xd8] sm:$0xff]
    %v2819 = vld [vmem:[#allocation3 + $0xe0] sm:$0xff]
    %v2820 = vld [vmem:[#allocation3 + $0xe8] sm:$0xff]
    %v2821 = vld [vmem:[#allocation3 + $0xf0] sm:$0xff]
    %v2822 = vld [vmem:[#allocation3 + $0xf8] sm:$0xff]
    %v2823 = vld [vmem:[#allocation3 + $0x100] sm:$0xff]
    %v2824 = vld [vmem:[#allocation3 + $0x108] sm:$0xff]
    %v2825 = vld [vmem:[#allocation3 + $0x110] sm:$0xff]
    %v2826 = vld [vmem:[#allocation3 + $0x118] sm:$0xff]
    %v2827 = vld [vmem:[#allocation3 + $0x120] sm:$0xff]
    %v2828 = vld [vmem:[#allocation3 + $0x128] sm:$0xff]
    %v2829 = vld [vmem:[#allocation3 + $0x130] sm:$0xff]
    %v2830 = vld [vmem:[#allocation3 + $0x138] sm:$0xff]
    %v2831 = vld [vmem:[#allocation3 + $0x140] sm:$0xff]
    %v2832 = vld [vmem:[#allocation3 + $0x148] sm:$0xff]
    %v2833 = vld [vmem:[#allocation3 + $0x150] sm:$0xff]
    %v2834 = vld [vmem:[#allocation3 + $0x158] sm:$0xff]
    %v2835 = vld [vmem:[#allocation3 + $0x160] sm:$0xff]
    %v2836 = vld [vmem:[#allocation3 + $0x168] sm:$0xff]
    %v2837 = vld [vmem:[#allocation3 + $0x170] sm:$0xff]
    %v2838 = vld [vmem:[#allocation3 + $0x178] sm:$0xff]
    %v2839 = vld [vmem:[#allocation3 + $0x180] sm:$0xff]
    %v2840 = vld [vmem:[#allocation3 + $0x188] sm:$0xff]
    %v2841 = vld [vmem:[#allocation3 + $0x190] sm:$0xff]
    %v2842 = vld [vmem:[#allocation3 + $0x198] sm:$0xff]
    %v2843 = vld [vmem:[#allocation3 + $0x1a0] sm:$0xff]
    %v2844 = vld [vmem:[#allocation3 + $0x1a8] sm:$0xff]
    %v2845 = vld [vmem:[#allocation3 + $0x1b0] sm:$0xff]
    %v2846 = vld [vmem:[#allocation3 + $0x1b8] sm:$0xff]
    %v2847 = vld [vmem:[#allocation3 + $0x1c0] sm:$0xff]
    %v2848 = vld [vmem:[#allocation3 + $0x1c8] sm:$0xff]
    %v2849 = vld [vmem:[#allocation3 + $0x1d0] sm:$0xff]
    %v2850 = vld [vmem:[#allocation3 + $0x1d8] sm:$0xff]
    %v2851 = vld [vmem:[#allocation3 + $0x1e0] sm:$0xff]
    %v2852 = vld [vmem:[#allocation3 + $0x1e8] sm:$0xff]
    %v2853 = vld [vmem:[#allocation3 + $0x1f0] sm:$0xff]
    %v2854 = vld [vmem:[#allocation3 + $0x1f8] sm:$0xff]
    %v2855 = vld [vmem:[%s7] sm:$0x3]
    %v2857 = vperm.slane %v2855, 0
    %v2858 = vperm.slane %v2855, 1
    %v2925 = vunpack.c.l.b16 %v2791
    %v2926 = vunpack.c.h.b16 %v2791
    %v2927 = vunpack.c.l.b16 %v2792
    %v2928 = vunpack.c.h.b16 %v2792
    %v2929 = vunpack.c.l.b16 %v2793
    %v2930 = vunpack.c.h.b16 %v2793
    %v2931 = vunpack.c.l.b16 %v2794
    %v2932 = vunpack.c.h.b16 %v2794
    %v2933 = vunpack.c.l.b16 %v2795
    %v2934 = vunpack.c.h.b16 %v2795
    %v2935 = vunpack.c.l.b16 %v2796
    %v2936 = vunpack.c.h.b16 %v2796
    %v2937 = vunpack.c.l.b16 %v2797
    %v2938 = vunpack.c.h.b16 %v2797
    %v2939 = vunpack.c.l.b16 %v2798
    %v2940 = vunpack.c.h.b16 %v2798
    %v2941 = vunpack.c.l.b16 %v2799
    %v2942 = vunpack.c.h.b16 %v2799
    %v2943 = vunpack.c.l.b16 %v2800
    %v2944 = vunpack.c.h.b16 %v2800
    %v2945 = vunpack.c.l.b16 %v2801
    %v2946 = vunpack.c.h.b16 %v2801
    %v2947 = vunpack.c.l.b16 %v2802
    %v2948 = vunpack.c.h.b16 %v2802
    %v2949 = vunpack.c.l.b16 %v2803
    %v2950 = vunpack.c.h.b16 %v2803
    %v2951 = vunpack.c.l.b16 %v2804
    %v2952 = vunpack.c.h.b16 %v2804
    %v2953 = vunpack.c.l.b16 %v2805
    %v2954 = vunpack.c.h.b16 %v2805
    %v2955 = vunpack.c.l.b16 %v2806
    %v2956 = vunpack.c.h.b16 %v2806
    %v2957 = vunpack.c.l.b16 %v2807
    %v2958 = vunpack.c.h.b16 %v2807
    %v2959 = vunpack.c.l.b16 %v2808
    %v2960 = vunpack.c.h.b16 %v2808
    %v2961 = vunpack.c.l.b16 %v2809
    %v2962 = vunpack.c.h.b16 %v2809
    %v2963 = vunpack.c.l.b16 %v2810
    %v2964 = vunpack.c.h.b16 %v2810
    %v2965 = vunpack.c.l.b16 %v2811
    %v2966 = vunpack.c.h.b16 %v2811
    %v2967 = vunpack.c.l.b16 %v2812
    %v2968 = vunpack.c.h.b16 %v2812
    %v2969 = vunpack.c.l.b16 %v2813
    %v2970 = vunpack.c.h.b16 %v2813
    %v2971 = vunpack.c.l.b16 %v2814
    %v2972 = vunpack.c.h.b16 %v2814
    %v2973 = vunpack.c.l.b16 %v2815
    %v2974 = vunpack.c.h.b16 %v2815
    %v2975 = vunpack.c.l.b16 %v2816
    %v2976 = vunpack.c.h.b16 %v2816
    %v2977 = vunpack.c.l.b16 %v2817
    %v2978 = vunpack.c.h.b16 %v2817
    %v2979 = vunpack.c.l.b16 %v2818
    %v2980 = vunpack.c.h.b16 %v2818
    %v2981 = vunpack.c.l.b16 %v2819
    %v2982 = vunpack.c.h.b16 %v2819
    %v2983 = vunpack.c.l.b16 %v2820
    %v2984 = vunpack.c.h.b16 %v2820
    %v2985 = vunpack.c.l.b16 %v2821
    %v2986 = vunpack.c.h.b16 %v2821
    %v2987 = vunpack.c.l.b16 %v2822
    %v2988 = vunpack.c.h.b16 %v2822
    %v2989 = vunpack.c.l.b16 %v2823
    %v2990 = vunpack.c.h.b16 %v2823
    %v2991 = vunpack.c.l.b16 %v2824
    %v2992 = vunpack.c.h.b16 %v2824
    %v2993 = vunpack.c.l.b16 %v2825
    %v2994 = vunpack.c.h.b16 %v2825
    %v2995 = vunpack.c.l.b16 %v2826
    %v2996 = vunpack.c.h.b16 %v2826
    %v2997 = vunpack.c.l.b16 %v2827
    %v2998 = vunpack.c.h.b16 %v2827
    %v2999 = vunpack.c.l.b16 %v2828
    %v3000 = vunpack.c.h.b16 %v2828
    %v3001 = vunpack.c.l.b16 %v2829
    %v3002 = vunpack.c.h.b16 %v2829
    %v3003 = vunpack.c.l.b16 %v2830
    %v3004 = vunpack.c.h.b16 %v2830
    %v3005 = vunpack.c.l.b16 %v2831
    %v3006 = vunpack.c.h.b16 %v2831
    %v3007 = vunpack.c.l.b16 %v2832
    %v3008 = vunpack.c.h.b16 %v2832
    %v3009 = vunpack.c.l.b16 %v2833
    %v3010 = vunpack.c.h.b16 %v2833
    %v3011 = vunpack.c.l.b16 %v2834
    %v3012 = vunpack.c.h.b16 %v2834
    %v3013 = vunpack.c.l.b16 %v2835
    %v3014 = vunpack.c.h.b16 %v2835
    %v3015 = vunpack.c.l.b16 %v2836
    %v3016 = vunpack.c.h.b16 %v2836
    %v3017 = vunpack.c.l.b16 %v2837
    %v3018 = vunpack.c.h.b16 %v2837
    %v3019 = vunpack.c.l.b16 %v2838
    %v3020 = vunpack.c.h.b16 %v2838
    %v3021 = vunpack.c.l.b16 %v2839
    %v3022 = vunpack.c.h.b16 %v2839
    %v3023 = vunpack.c.l.b16 %v2840
    %v3024 = vunpack.c.h.b16 %v2840
    %v3025 = vunpack.c.l.b16 %v2841
    %v3026 = vunpack.c.h.b16 %v2841
    %v3027 = vunpack.c.l.b16 %v2842
    %v3028 = vunpack.c.h.b16 %v2842
    %v3029 = vunpack.c.l.b16 %v2843
    %v3030 = vunpack.c.h.b16 %v2843
    %v3031 = vunpack.c.l.b16 %v2844
    %v3032 = vunpack.c.h.b16 %v2844
    %v3033 = vunpack.c.l.b16 %v2845
    %v3034 = vunpack.c.h.b16 %v2845
    %v3035 = vunpack.c.l.b16 %v2846
    %v3036 = vunpack.c.h.b16 %v2846
    %v3037 = vunpack.c.l.b16 %v2847
    %v3038 = vunpack.c.h.b16 %v2847
    %v3039 = vunpack.c.l.b16 %v2848
    %v3040 = vunpack.c.h.b16 %v2848
    %v3041 = vunpack.c.l.b16 %v2849
    %v3042 = vunpack.c.h.b16 %v2849
    %v3043 = vunpack.c.l.b16 %v2850
    %v3044 = vunpack.c.h.b16 %v2850
    %v3045 = vunpack.c.l.b16 %v2851
    %v3046 = vunpack.c.h.b16 %v2851
    %v3047 = vunpack.c.l.b16 %v2852
    %v3048 = vunpack.c.h.b16 %v2852
    %v3049 = vunpack.c.l.b16 %v2853
    %v3050 = vunpack.c.h.b16 %v2853
    %v3051 = vunpack.c.l.b16 %v2854
    %v3052 = vunpack.c.h.b16 %v2854
    %v3053 = vpack.c.b16 %v2927, %v2925
    %v3054 = vpack.c.b16 %v2928, %v2926
    %v3055 = vpack.c.b16 %v2931, %v2929
    %v3056 = vpack.c.b16 %v2932, %v2930
    %v3057 = vpack.c.b16 %v2935, %v2933
    %v3058 = vpack.c.b16 %v2936, %v2934
    %v3059 = vpack.c.b16 %v2939, %v2937
    %v3060 = vpack.c.b16 %v2940, %v2938
    %v3061 = vpack.c.b16 %v2943, %v2941
    %v3062 = vpack.c.b16 %v2944, %v2942
    %v3063 = vpack.c.b16 %v2947, %v2945
    %v3064 = vpack.c.b16 %v2948, %v2946
    %v3065 = vpack.c.b16 %v2951, %v2949
    %v3066 = vpack.c.b16 %v2952, %v2950
    %v3067 = vpack.c.b16 %v2955, %v2953
    %v3068 = vpack.c.b16 %v2956, %v2954
    %v3069 = vpack.c.b16 %v2959, %v2957
    %v3070 = vpack.c.b16 %v2960, %v2958
    %v3071 = vpack.c.b16 %v2963, %v2961
    %v3072 = vpack.c.b16 %v2964, %v2962
    %v3073 = vpack.c.b16 %v2967, %v2965
    %v3074 = vpack.c.b16 %v2968, %v2966
    %v3075 = vpack.c.b16 %v2971, %v2969
    %v3076 = vpack.c.b16 %v2972, %v2970
    %v3077 = vpack.c.b16 %v2975, %v2973
    %v3078 = vpack.c.b16 %v2976, %v2974
    %v3079 = vpack.c.b16 %v2979, %v2977
    %v3080 = vpack.c.b16 %v2980, %v2978
    %v3081 = vpack.c.b16 %v2983, %v2981
    %v3082 = vpack.c.b16 %v2984, %v2982
    %v3083 = vpack.c.b16 %v2987, %v2985
    %v3084 = vpack.c.b16 %v2988, %v2986
    %v3085 = vpack.c.b16 %v2991, %v2989
    %v3086 = vpack.c.b16 %v2992, %v2990
    %v3087 = vpack.c.b16 %v2995, %v2993
    %v3088 = vpack.c.b16 %v2996, %v2994
    %v3089 = vpack.c.b16 %v2999, %v2997
    %v3090 = vpack.c.b16 %v3000, %v2998
    %v3091 = vpack.c.b16 %v3003, %v3001
    %v3092 = vpack.c.b16 %v3004, %v3002
    %v3093 = vpack.c.b16 %v3007, %v3005
    %v3094 = vpack.c.b16 %v3008, %v3006
    %v3095 = vpack.c.b16 %v3011, %v3009
    %v3096 = vpack.c.b16 %v3012, %v3010
    %v3097 = vpack.c.b16 %v3015, %v3013
    %v3098 = vpack.c.b16 %v3016, %v3014
    %v3099 = vpack.c.b16 %v3019, %v3017
    %v3100 = vpack.c.b16 %v3020, %v3018
    %v3101 = vpack.c.b16 %v3023, %v3021
    %v3102 = vpack.c.b16 %v3024, %v3022
    %v3103 = vpack.c.b16 %v3027, %v3025
    %v3104 = vpack.c.b16 %v3028, %v3026
    %v3105 = vpack.c.b16 %v3031, %v3029
    %v3106 = vpack.c.b16 %v3032, %v3030
    %v3107 = vpack.c.b16 %v3035, %v3033
    %v3108 = vpack.c.b16 %v3036, %v3034
    %v3109 = vpack.c.b16 %v3039, %v3037
    %v3110 = vpack.c.b16 %v3040, %v3038
    %v3111 = vpack.c.b16 %v3043, %v3041
    %v3112 = vpack.c.b16 %v3044, %v3042
    %v3113 = vpack.c.b16 %v3047, %v3045
    %v3114 = vpack.c.b16 %v3048, %v3046
    %v3115 = vpack.c.b16 %v3051, %v3049
    %v3116 = vpack.c.b16 %v3052, %v3050
    %3181 = vmatpush.bf16.msra.mxu0 %v3067
    %3182 = vmatpush.bf16.msra.mxu0 %v3065
    %3183 = vmatpush.bf16.msra.mxu0 %v3063
    %3184 = vmatpush.bf16.msra.mxu0 %v3061
    %3185 = vmatpush.bf16.msra.mxu0 %v3059
    %3186 = vmatpush.bf16.msra.mxu0 %v3057
    %3187 = vmatpush.bf16.msra.mxu0 %v3055
    %3188 = vmatpush.bf16.msra.mxu0 %v3053
    %3189 = vmatmul.bf16.gmra.mxu0 %v2787
    %v3190 = vpop.f32.mrf.mxu0
    %v3191 = vadd.f32 %v2857, %v3190
    %v3192 = vpop.f32.mrf.mxu0
    %3193 = vdwg.mxu0
    %3194 = vmatpush.bf16.msra.mxu0 %v3083
    %3195 = vmatpush.bf16.msra.mxu0 %v3081
    %3196 = vmatpush.bf16.msra.mxu0 %v3079
    %3197 = vmatpush.bf16.msra.mxu0 %v3077
    %3198 = vmatpush.bf16.msra.mxu0 %v3075
    %3199 = vmatpush.bf16.msra.mxu0 %v3073
    %3200 = vmatpush.bf16.msra.mxu0 %v3071
    %3201 = vmatpush.bf16.msra.mxu0 %v3069
    %3202 = vmatmul.bf16.gmra.mxu0 %v2788
    %v3203 = vpop.f32.mrf.mxu0
    %v3204 = vadd.f32 %v3191, %v3203
    %v3205 = vpop.f32.mrf.mxu0
    %3206 = vdwg.mxu0
    %3207 = vmatpush.bf16.msra.mxu0 %v3099
    %3208 = vmatpush.bf16.msra.mxu0 %v3097
    %3209 = vmatpush.bf16.msra.mxu0 %v3095
    %3210 = vmatpush.bf16.msra.mxu0 %v3093
    %3211 = vmatpush.bf16.msra.mxu0 %v3091
    %3212 = vmatpush.bf16.msra.mxu0 %v3089
    %3213 = vmatpush.bf16.msra.mxu0 %v3087
    %3214 = vmatpush.bf16.msra.mxu0 %v3085
    %3215 = vmatmul.bf16.gmra.mxu0 %v2789
    %v3216 = vpop.f32.mrf.mxu0
    %v3217 = vadd.f32 %v3204, %v3216
    %v3218 = vpop.f32.mrf.mxu0
    %3219 = vdwg.mxu0
    %3220 = vmatpush.bf16.msra.mxu0 %v3115
    %3221 = vmatpush.bf16.msra.mxu0 %v3113
    %3222 = vmatpush.bf16.msra.mxu0 %v3111
    %3223 = vmatpush.bf16.msra.mxu0 %v3109
    %3224 = vmatpush.bf16.msra.mxu0 %v3107
    %3225 = vmatpush.bf16.msra.mxu0 %v3105
    %3226 = vmatpush.bf16.msra.mxu0 %v3103
    %3227 = vmatpush.bf16.msra.mxu0 %v3101
    %3228 = vmatmul.bf16.gmra.mxu0 %v2790
    %v3229 = vpop.f32.mrf.mxu0
    %v3230 = vadd.f32 %v3217, %v3229
    %v3231 = vpop.f32.mrf.mxu0
    %3232 = vdwg.mxu0
    %3233 = vmatpush.bf16.msra.mxu0 %v3068
    %3234 = vmatpush.bf16.msra.mxu0 %v3066
    %3235 = vmatpush.bf16.msra.mxu0 %v3064
    %3236 = vmatpush.bf16.msra.mxu0 %v3062
    %3237 = vmatpush.bf16.msra.mxu0 %v3060
    %3238 = vmatpush.bf16.msra.mxu0 %v3058
    %3239 = vmatpush.bf16.msra.mxu0 %v3056
    %3240 = vmatpush.bf16.msra.mxu0 %v3054
    %3241 = vmatmul.bf16.gmra.mxu0 %v2787
    %v3242 = vpop.f32.mrf.mxu0
    %v3243 = vadd.f32 %v2858, %v3242
    %v3244 = vpop.f32.mrf.mxu0
    %3245 = vdwg.mxu0
    %3246 = vmatpush.bf16.msra.mxu0 %v3084
    %3247 = vmatpush.bf16.msra.mxu0 %v3082
    %3248 = vmatpush.bf16.msra.mxu0 %v3080
    %3249 = vmatpush.bf16.msra.mxu0 %v3078
    %3250 = vmatpush.bf16.msra.mxu0 %v3076
    %3251 = vmatpush.bf16.msra.mxu0 %v3074
    %3252 = vmatpush.bf16.msra.mxu0 %v3072
    %3253 = vmatpush.bf16.msra.mxu0 %v3070
    %3254 = vmatmul.bf16.gmra.mxu0 %v2788
    %v3255 = vpop.f32.mrf.mxu0
    %v3256 = vadd.f32 %v3243, %v3255
    %v3257 = vpop.f32.mrf.mxu0
    %3258 = vdwg.mxu0
    %3259 = vmatpush.bf16.msra.mxu0 %v3100
    %3260 = vmatpush.bf16.msra.mxu0 %v3098
    %3261 = vmatpush.bf16.msra.mxu0 %v3096
    %3262 = vmatpush.bf16.msra.mxu0 %v3094
    %3263 = vmatpush.bf16.msra.mxu0 %v3092
    %3264 = vmatpush.bf16.msra.mxu0 %v3090
    %3265 = vmatpush.bf16.msra.mxu0 %v3088
    %3266 = vmatpush.bf16.msra.mxu0 %v3086
    %3267 = vmatmul.bf16.gmra.mxu0 %v2789
    %v3268 = vpop.f32.mrf.mxu0
    %v3269 = vadd.f32 %v3256, %v3268
    %v3270 = vpop.f32.mrf.mxu0
    %3271 = vdwg.mxu0
    %3272 = vmatpush.bf16.msra.mxu0 %v3116
    %3273 = vmatpush.bf16.msra.mxu0 %v3114
    %3274 = vmatpush.bf16.msra.mxu0 %v3112
    %3275 = vmatpush.bf16.msra.mxu0 %v3110
    %3276 = vmatpush.bf16.msra.mxu0 %v3108
    %3277 = vmatpush.bf16.msra.mxu0 %v3106
    %3278 = vmatpush.bf16.msra.mxu0 %v3104
    %3279 = vmatpush.bf16.msra.mxu0 %v3102
    %3280 = vmatmul.bf16.gmra.mxu0 %v2790
    %v3281 = vpop.f32.mrf.mxu0
    %v3282 = vadd.f32 %v3269, %v3281
    %v3283 = vpop.f32.mrf.mxu0
    %3284 = vdwg.mxu0
    %v3285 = vmax.f32 %v3230, 0.0
    %v3286 = vmax.f32 %v3282, 0.0
    %v3287 = vld [vmem:[%s8] sm:$0xff]
    %v3288 = vld [vmem:[%s8 + $0x8] sm:$0xff]
    %v3289 = vld [vmem:[%s8 + $0x10] sm:$0xff]
    %v3290 = vld [vmem:[%s8 + $0x18] sm:$0xff]
    %v3291 = vld [vmem:[%s8 + $0x20] sm:$0xff]
    %v3292 = vld [vmem:[%s8 + $0x28] sm:$0xff]
    %v3293 = vld [vmem:[%s8 + $0x30] sm:$0xff]
    %v3294 = vld [vmem:[%s8 + $0x38] sm:$0xff]
    %v3295 = vld [vmem:[%s8 + $0x40] sm:$0xff]
    %v3296 = vld [vmem:[%s8 + $0x48] sm:$0xff]
    %v3297 = vld [vmem:[%s8 + $0x50] sm:$0xff]
    %v3298 = vld [vmem:[%s8 + $0x58] sm:$0xff]
    %v3299 = vld [vmem:[%s8 + $0x60] sm:$0xff]
    %v3300 = vld [vmem:[%s8 + $0x68] sm:$0xff]
    %v3301 = vld [vmem:[%s8 + $0x70] sm:$0xff]
    %v3302 = vld [vmem:[%s8 + $0x78] sm:$0xff]
    %v3303 = vld [vmem:[%s8 + $0x80] sm:$0xff]
    %v3304 = vld [vmem:[%s8 + $0x88] sm:$0xff]
    %v3305 = vld [vmem:[%s8 + $0x90] sm:$0xff]
    %v3306 = vld [vmem:[%s8 + $0x98] sm:$0xff]
    %v3307 = vld [vmem:[%s8 + $0xa0] sm:$0xff]
    %v3308 = vld [vmem:[%s8 + $0xa8] sm:$0xff]
    %v3309 = vld [vmem:[%s8 + $0xb0] sm:$0xff]
    %v3310 = vld [vmem:[%s8 + $0xb8] sm:$0xff]
    %v3311 = vld [vmem:[%s8 + $0xc0] sm:$0xff]
    %v3312 = vld [vmem:[%s8 + $0xc8] sm:$0xff]
    %v3313 = vld [vmem:[%s8 + $0xd0] sm:$0xff]
    %v3314 = vld [vmem:[%s8 + $0xd8] sm:$0xff]
    %v3315 = vld [vmem:[%s8 + $0xe0] sm:$0xff]
    %v3316 = vld [vmem:[%s8 + $0xe8] sm:$0xff]
    %v3317 = vld [vmem:[%s8 + $0xf0] sm:$0xff]
    %v3318 = vld [vmem:[%s8 + $0xf8] sm:$0xff]
    %v3319 = vld [vmem:[%s9] sm:$0x1]
    %v3321 = vperm.slane %v3319, 0
    %3323 = vmatpush.msra.mxu0 %v3302
    %3324 = vmatpush.msra.mxu0 %v3301
    %3325 = vmatpush.msra.mxu0 %v3300
    %3326 = vmatpush.msra.mxu0 %v3299
    %3327 = vmatpush.msra.mxu0 %v3298
    %3328 = vmatpush.msra.mxu0 %v3297
    %3329 = vmatpush.msra.mxu0 %v3296
    %3330 = vmatpush.msra.mxu0 %v3295
    %3331 = vmatpush.msra.mxu0 %v3294
    %3332 = vmatpush.msra.mxu0 %v3293
    %3333 = vmatpush.msra.mxu0 %v3292
    %3334 = vmatpush.msra.mxu0 %v3291
    %3335 = vmatpush.msra.mxu0 %v3290
    %3336 = vmatpush.msra.mxu0 %v3289
    %3337 = vmatpush.msra.mxu0 %v3288
    %3338 = vmatpush.msra.mxu0 %v3287
    %3339 = vmatmul.f32.gmra.mxu0 %v3285
    %v3340 = vpop.f32.mrf.mxu0
    %v3341 = vadd.f32 %v3321, %v3340
    %3342 = vdwg.mxu0
    %3343 = vmatpush.msra.mxu0 %v3318
    %3344 = vmatpush.msra.mxu0 %v3317
    %3345 = vmatpush.msra.mxu0 %v3316
    %3346 = vmatpush.msra.mxu0 %v3315
    %3347 = vmatpush.msra.mxu0 %v3314
    %3348 = vmatpush.msra.mxu0 %v3313
    %3349 = vmatpush.msra.mxu0 %v3312
    %3350 = vmatpush.msra.mxu0 %v3311
    %3351 = vmatpush.msra.mxu0 %v3310
    %3352 = vmatpush.msra.mxu0 %v3309
    %3353 = vmatpush.msra.mxu0 %v3308
    %3354 = vmatpush.msra.mxu0 %v3307
    %3355 = vmatpush.msra.mxu0 %v3306
    %3356 = vmatpush.msra.mxu0 %v3305
    %3357 = vmatpush.msra.mxu0 %v3304
    %3358 = vmatpush.msra.mxu0 %v3303
    %3359 = vmatmul.f32.gmra.mxu0 %v3286
    %v3360 = vpop.f32.mrf.mxu0
    %v3361 = vadd.f32 %v3341, %v3360
    %3362 = vdwg.mxu0
    %vm3363 = vcmask 25600
    %v3364 = vsel %vm3363, %v3361, -inf
    %3365 = vmax.xlane.f32.xlu0 %v3364
    %v3366 = vpop.xlane.xlu0 %3365
    %v3367 = vsub.f32 %v3361, %v3366
    %v3368 = vmul.f32 %v3367, 1.442695
    %v3369 = vpow.pop %v3368
    %v3370 = vsel %vm3363, %v3369, 0.0
    %3371 = vadd.xlane.f32.xlu0 %v3370
    %v3372 = vpop.xlane.xlu0 %3371
    %v3373 = vrcp.pop %v3372
    %v3374 = vmul.f32 %v3372, %v3373
    %v3375 = vsub.f32 1.0, %v3374
    %v3376 = vmul.f32 %v3373, %v3375
    %v3377 = vadd.f32 %v3373, %v3376
    %vm3378 = vweird.f32 %v3372
    %vm3379 = vweird.f32 %v3373
    %vm3380 = vmor %vm3378, %vm3379
    %v3381 = vsel %vm3380, %v3373, %v3377
    %v3382 = vand.u32 2147483647, %v3372
    %vm3383 = vcmp.eq.f32.partialorder %v3382, 8.507059e+37
    %v3384 = vand.u32 %v3372, 2147483648
    %v3385 = vor.u32 1.1754944e-38, %v3384
    %v3386 = vsel %vm3383, %v3385, %v3381
    %v3387 = vmul.f32 %v3369, %v3386
    %3388 = vst.msk [vmem:[#allocation10] sm:$0x3] %vm3363, %v3387
    // Predicated region
    $region42: #{cnn_forward.1} parent=1 // pred_check
      _
    $region43: #{cnn_forward.1} parent=1 // pred_check_branch
      %3390 = sbr.rel (0) target = $region45
    $region44: #{cnn_forward.1} parent=1 // pred_region
      %3392 = vsyncadd [#allocation11], 0
      %s3394 = sshll.u32 [#allocation10], 4
      %s3395 = int_to_ptr.vmem [resolvable:$true] %s3394
      %s3396 = sshll.u32 %s10, 4
      %s3397 = int_to_ptr.hbm [resolvable:$true] %s3396
      %3399 = dma.vmem_to_hbm [thread:$0]  %s3395, 32, %s3397, [#allocation11]
    $region45: #{cnn_forward.1} parent=1 // pred_fallthru
      _
    // Predicated region
    $region46: #{cnn_forward.1} parent=1 // pred_check
      _
    $region47: #{cnn_forward.1} parent=1 // pred_check_branch
      %3401 = sbr.rel (0) target = $region49
    $region48: #{cnn_forward.1} parent=1 // pred_region
      %3403 = dma.done [#allocation11], 32
    $region49: #{cnn_forward.1} parent=1 // pred_fallthru
      _
    %3404 = vsyncpa [#allocation11], 1
  %3405 = vsyncmov [#allocation4]
  %s3406 = vpop.sfrf %3405
  %p3407 = scmp.eq.s32.totalorder %s3406, 0
  %p3408 = pneg %p3407
  %3410 = shalt.err (%p3408)
  %s3411 = scalar_lea.sflag [#allocation4], 1
  %3412 = vsyncmov %s3411
  %s3413 = vpop.sfrf %3412
  %p3414 = scmp.eq.s32.totalorder %s3413, 0
  %p3415 = pneg %p3414
  %3417 = shalt.err (%p3415)

</llo_original>
